<compile_context>
chip_gen: v5e
topology: v5e:2x2
jax: 0.10.0
libtpu: 0.0.40
codegen_flags: <defaults>
</compile_context>

<pallas_src>
import functools
import math

import jax
import jax.numpy as jnp
from jax.experimental import pallas as pl
from jax.experimental.pallas import tpu as pltpu


# ----------------------------------------------------------------------------
# Target-chip knobs (v5e / v6e / v7x) and graceful-degradation flags
# ----------------------------------------------------------------------------

def _device_kind():
    try:
        return jax.devices()[0].device_kind.lower()
    except Exception:
        return ""


_KIND = _device_kind()
_IS_V7 = "v7" in _KIND
# bf16 transcendental (EUP) path exists on v6e/v7x; v5e would emulate it.
_BF16_EUP = ("v6" in _KIND) or _IS_V7
# Row-tile cap: 512-row tiles sit near the HBM roofline on v5e/v6e (128 MiB VMEM);
# keep 256 on v7x (64 MiB VMEM).
_ROW_CAP = 256 if _IS_V7 else 512
# Scoped-VMEM request ceiling (leave headroom below physical VMEM).
_VMEM_CAP = (48 if _IS_V7 else 96) * (1 << 20)

# Flags the __main__ driver can flip to a conservative configuration if this
# jax/libtpu build rejects them (keeps the script runnable everywhere).
_FLAGS = {
    "single_buffer_weights": True,   # pipeline_mode=pl.Buffered(1) on grid-invariant operands
    "batched_heads": True,           # batched (H, L, Dh) attention vs per-head unroll
}


def _vmem_limit(nbytes):
    return int(min(_VMEM_CAP, max(24 << 20, 2 * nbytes)))


def _const_spec(shape):
    """BlockSpec for a grid-invariant operand (weights / biases / mask).

    The index_map is constant, so double-buffering buys nothing; request a single
    buffer to halve its VMEM footprint (critical at real CLIP widths on v7x)."""
    index_map = lambda *args: (0,) * len(shape)
    if _FLAGS["single_buffer_weights"]:
        try:
            return pl.BlockSpec(shape, index_map, pipeline_mode=pl.Buffered(1))
        except Exception:
            pass
    return pl.BlockSpec(shape, index_map)


def _pick_block_rows(M, cap):
    if M <= cap:
        return M
    for bm in (cap, 512, 384, 256, 128, 64, 32, 16, 8):
        if bm <= cap and M % bm == 0:
            return bm
    return M


def _pick_hidden_tile(Cf, cap=512):
    if Cf <= cap:
        return Cf
    for tf in range(cap, 127, -128):
        if Cf % tf == 0:
            return tf
    return Cf


# ----------------------------------------------------------------------------
# Fused attention-block kernel:  x + out_proj(MHA(ln_1(x)))
# ----------------------------------------------------------------------------

def _mha_core(qkv, n_head, scale, mask_add, batched):
    """Scaled dot-product attention over all heads of one batch element.

    qkv: (L, 3C) f32.  mask_add: None or (L, L) f32 additive mask.
    Returns the merged head outputs, (L, C) f32."""
    L, three_c = qkv.shape
    C = three_c // 3
    Dh = C // n_head

    # Scale Q once on (L, C) instead of every (H, L, L) score tile.
    # TODO(synk): fold the scale into the Q slice of in_proj_w/b at weight-load time.
    q = qkv[:, 0 * C:1 * C] * scale
    k = qkv[:, 1 * C:2 * C]
    v = qkv[:, 2 * C:3 * C]

    if batched:
        # One relayout to (H, L, Dh), then a single batched QK^T, single softmax and
        # single batched PV: fills the MXU/EUP pipelines, no per-head unroll, no
        # lane-offset concatenate, far lower vreg pressure at n_head=16.
        q3 = q.reshape(L, n_head, Dh).swapaxes(0, 1).astype(jnp.bfloat16)
        k3 = k.reshape(L, n_head, Dh).swapaxes(0, 1).astype(jnp.bfloat16)
        v3 = v.reshape(L, n_head, Dh).swapaxes(0, 1).astype(jnp.bfloat16)
        s = jnp.einsum("hqd,hkd->hqk", q3, k3, preferred_element_type=jnp.float32)
        if mask_add is not None:
            s = s + mask_add[None, :, :]
        s = s - jnp.max(s, axis=-1, keepdims=True)
        p = jnp.exp(s)
        p = p * pl.reciprocal(jnp.sum(p, axis=-1, keepdims=True), approx=True)
        o = jnp.einsum("hqk,hkd->hqd", p.astype(jnp.bfloat16), v3,
                       preferred_element_type=jnp.float32)
        return o.swapaxes(0, 1).reshape(L, C)

    # Conservative fallback path: static per-head loop, 2-D dots only.
    outs = []
    for hd in range(n_head):
        sl = slice(hd * Dh, (hd + 1) * Dh)
        qh = q[:, sl].astype(jnp.bfloat16)
        kh = k[:, sl].astype(jnp.bfloat16)
        vh = v[:, sl].astype(jnp.bfloat16)
        s = jax.lax.dot_general(qh, kh, (((1,), (1,)), ((), ())),
                                preferred_element_type=jnp.float32)
        if mask_add is not None:
            s = s + mask_add
        s = s - jnp.max(s, axis=-1, keepdims=True)
        p = jnp.exp(s)
        p = p * pl.reciprocal(jnp.sum(p, axis=-1, keepdims=True), approx=True)
        outs.append(jnp.dot(p.astype(jnp.bfloat16), vh,
                            preferred_element_type=jnp.float32))
    return jnp.concatenate(outs, axis=-1)


def _attn_block_kernel(x_ref, g_ref, b_ref, wqkv_ref, bqkv_ref, wout_ref, bout_ref,
                       *rest, n_head, scale, mask_kind, eps, batched):
    if mask_kind == "array":
        mask_ref, o_ref = rest
    else:
        (o_ref,) = rest

    x = x_ref[0].astype(jnp.float32)                        # (L, C)
    L, C = x.shape

    # LayerNorm in f32 (matches the fp16-safe LayerNorm subclass).
    mu = jnp.mean(x, axis=-1, keepdims=True)
    var = jnp.mean(jnp.square(x - mu), axis=-1, keepdims=True)
    h = (x - mu) * jax.lax.rsqrt(var + eps)
    h = h * g_ref[...].astype(jnp.float32) + b_ref[...].astype(jnp.float32)

    # QKV projection: bf16 operands on the MXU, f32 accumulation.
    qkv = jnp.dot(h.astype(jnp.bfloat16), wqkv_ref[...],
                  preferred_element_type=jnp.float32)
    qkv = qkv + bqkv_ref[...].astype(jnp.float32)           # (L, 3C)

    if mask_kind == "array":
        mask_add = mask_ref[...].astype(jnp.float32)
    elif mask_kind == "causal":
        # Build the causal mask in-kernel (cheap VPU iota + select): no L^2 HBM DMA.
        row = jax.lax.broadcasted_iota(jnp.int32, (L, L), 0)
        col = jax.lax.broadcasted_iota(jnp.int32, (L, L), 1)
        mask_add = jnp.where(col > row, jnp.float32(-1e9), jnp.float32(0.0))
    else:
        mask_add = None

    o_cat = _mha_core(qkv, n_head, scale, mask_add, batched)  # (L, C) f32

    attn = jnp.dot(o_cat.astype(jnp.bfloat16), wout_ref[...],
                   preferred_element_type=jnp.float32)
    attn = attn + bout_ref[...].astype(jnp.float32)

    o_ref[0] = (x + attn).astype(o_ref.dtype)


def attention_block(x, p, n_head, attn_mask=None, causal=False):
    """x + out_proj(MHA(ln_1(x))) in a single pallas_call (one batch element per step).

    attn_mask: optional (L, L) additive mask array (DMA'd once, single-buffered), or
    set causal=True to generate the standard CLIP causal mask in-kernel for free."""
    B, L, C = x.shape
    scale = 1.0 / math.sqrt(C // n_head)
    if causal and attn_mask is not None:
        raise ValueError("pass either attn_mask or causal=True, not both")
    mask_kind = "causal" if causal else ("array" if attn_mask is not None else "none")

    in_specs = [
        pl.BlockSpec((1, L, C), lambda b: (b, 0, 0)),   # x (per batch element)
        _const_spec((1, C)),                            # ln_1 gamma
        _const_spec((1, C)),                            # ln_1 beta
        _const_spec((C, 3 * C)),                        # in_proj weight (bf16)
        _const_spec((1, 3 * C)),                        # in_proj bias
        _const_spec((C, C)),                            # out_proj weight (bf16)
        _const_spec((1, C)),                            # out_proj bias
    ]
    args = [x,
            p["ln1_g"].reshape(1, C), p["ln1_b"].reshape(1, C),
            p["in_proj_w"], p["in_proj_b"].reshape(1, 3 * C),
            p["out_proj_w"], p["out_proj_b"].reshape(1, C)]
    if mask_kind == "array":
        in_specs.append(_const_spec((L, L)))
        args.append(attn_mask.astype(jnp.float32))

    resident = ((C * 3 * C + C * C) * 2              # bf16 weights (single-buffered)
                + (3 * C + 4 * C) * 4                # biases / LN params (f32)
                + 4 * L * C * 4                      # x + out, double buffered
                + (3 * L * C + 2 * L * C) * 4        # qkv + merged head outputs (f32)
                + 3 * L * C * 2                      # bf16 q/k/v copies
                + 3 * n_head * L * L * 4             # scores / probs
                + (L * L * 4 if mask_kind == "array" else 0))

    kernel = functools.partial(_attn_block_kernel, n_head=n_head, scale=scale,
                               mask_kind=mask_kind, eps=1e-5,
                               batched=_FLAGS["batched_heads"])
    return pl.pallas_call(
        kernel,
        out_shape=jax.ShapeDtypeStruct((B, L, C), x.dtype),
        grid=(B,),
        in_specs=in_specs,
        out_specs=pl.BlockSpec((1, L, C), lambda b: (b, 0, 0)),
        input_output_aliases={0: 0},      # residual output reuses x's HBM buffer
        compiler_params=pltpu.CompilerParams(
            dimension_semantics=("parallel",),
            vmem_limit_bytes=_vmem_limit(resident)),
    )(*args)


# ----------------------------------------------------------------------------
# Fused MLP-block kernel:  x + c_proj(QuickGELU(c_fc(ln_2(x))))
#   hidden dim Cf streamed in tiles (pattern P3: accumulator + pl.when init/final)
# ----------------------------------------------------------------------------

def _mlp_block_kernel(x_ref, g_ref, b_ref, wfc_ref, bfc_ref, wproj_ref, bproj_ref,
                      o_ref, h_scr, acc_scr, *, eps, bf16_eup):
    jf = pl.program_id(1)

    @pl.when(jf == 0)
    def _():
        x = x_ref[...].astype(jnp.float32)
        mu = jnp.mean(x, axis=-1, keepdims=True)
        var = jnp.mean(jnp.square(x - mu), axis=-1, keepdims=True)
        h = (x - mu) * jax.lax.rsqrt(var + eps)
        h_scr[...] = h * g_ref[...].astype(jnp.float32) + b_ref[...].astype(jnp.float32)
        acc_scr[...] = jnp.zeros_like(acc_scr)

    # c_fc slice for this Cf tile -> QuickGELU -> partial c_proj accumulation.
    h1 = jnp.dot(h_scr[...].astype(jnp.bfloat16), wfc_ref[...],
                 preferred_element_type=jnp.float32)
    h1 = h1 + bfc_ref[...].astype(jnp.float32)
    z = 1.702 * h1
    if bf16_eup:
        # v6e/v7x: bf16 EUP sigmoid ~doubles transcendental throughput.
        sg = jax.nn.sigmoid(z.astype(jnp.bfloat16)).astype(jnp.float32)
    else:
        # v5e: no bf16 EUP path, keep f32.
        sg = jax.nn.sigmoid(z)
    h1 = h1 * sg
    acc_scr[...] += jnp.dot(h1.astype(jnp.bfloat16), wproj_ref[...],
                            preferred_element_type=jnp.float32)

    @pl.when(jf == pl.num_programs(1) - 1)
    def _():
        out = (x_ref[...].astype(jnp.float32) + acc_scr[...]
               + bproj_ref[...].astype(jnp.float32))
        o_ref[...] = out.astype(o_ref.dtype)


def mlp_block(x, p):
    B, L, C = x.shape
    M = B * L
    x2 = x.reshape(M, C)
    Cf = p["fc_w"].shape[1]
    bm = _pick_block_rows(M, _ROW_CAP)
    tf = _pick_hidden_tile(Cf)

    resident = (2 * (C * tf + tf * C) * 2        # streamed weight tiles, double buffered
                + 4 * bm * C * 4                 # x + out, double buffered
                + 2 * bm * C * 4                 # ln_2(x) / accumulator scratch
                + 2 * bm * tf * 4                # h1 + gelu temporaries
                + (Cf + 3 * C) * 4)              # biases / LN params

    out = pl.pallas_call(
        functools.partial(_mlp_block_kernel, eps=1e-5, bf16_eup=_BF16_EUP),
        out_shape=jax.ShapeDtypeStruct((M, C), x.dtype),
        grid=(M // bm, Cf // tf),
        in_specs=[
            pl.BlockSpec((bm, C), lambda i, j: (i, 0)),       # x row tile
            _const_spec((1, C)),                              # ln_2 gamma
            _const_spec((1, C)),                              # ln_2 beta
            pl.BlockSpec((C, tf), lambda i, j: (0, j)),       # c_fc weight tile (streamed)
            pl.BlockSpec((1, tf), lambda i, j: (0, j)),       # c_fc bias tile
            pl.BlockSpec((tf, C), lambda i, j: (j, 0)),       # c_proj weight tile (streamed)
            _const_spec((1, C)),                              # c_proj bias
        ],
        out_specs=pl.BlockSpec((bm, C), lambda i, j: (i, 0)),
        scratch_shapes=[pltpu.VMEM((bm, C), jnp.float32),     # ln_2(x)
                        pltpu.VMEM((bm, C), jnp.float32)],    # c_proj accumulator
        input_output_aliases={0: 0},
        compiler_params=pltpu.CompilerParams(
            dimension_semantics=("parallel", "arbitrary"),
            vmem_limit_bytes=_vmem_limit(resident)),
    )(x2, p["ln2_g"].reshape(1, C), p["ln2_b"].reshape(1, C),
      p["fc_w"], p["fc_b"].reshape(1, Cf), p["proj_w"], p["proj_b"].reshape(1, C))
    return out.reshape(B, L, C)


# ----------------------------------------------------------------------------
# Fused TextAdapter kernel (num_frames == 0 path): x + fc2(GELU(fc1(x)))
# ----------------------------------------------------------------------------

def _text_adapter_kernel(x_ref, w1_ref, b1_ref, w2_ref, b2_ref, o_ref):
    x = x_ref[...].astype(jnp.float32)
    h = jnp.dot(x.astype(jnp.bfloat16), w1_ref[...],
                preferred_element_type=jnp.float32) + b1_ref[...].astype(jnp.float32)
    # TODO(synk): PyTorch nn.GELU default is the exact erf GELU; tanh approximation used here.
    h = jax.nn.gelu(h, approximate=True)
    h = jnp.dot(h.astype(jnp.bfloat16), w2_ref[...],
                preferred_element_type=jnp.float32) + b2_ref[...].astype(jnp.float32)
    o_ref[...] = (x + h).astype(o_ref.dtype)


def text_adapter(x, p):
    B, L, C = x.shape
    M = B * L
    x2 = x.reshape(M, C)
    Ca = p["fc1_w"].shape[1]
    bm = _pick_block_rows(M, _ROW_CAP)
    resident = (2 * C * Ca * 2 + 4 * bm * C * 4 + 2 * bm * Ca * 4 + (Ca + C) * 4)
    out = pl.pallas_call(
        _text_adapter_kernel,
        out_shape=jax.ShapeDtypeStruct((M, C), x.dtype),
        grid=(M // bm,),
        in_specs=[
            pl.BlockSpec((bm, C), lambda i: (i, 0)),
            _const_spec((C, Ca)),
            _const_spec((1, Ca)),
            _const_spec((Ca, C)),
            _const_spec((1, C)),
        ],
        out_specs=pl.BlockSpec((bm, C), lambda i: (i, 0)),
        input_output_aliases={0: 0},
        compiler_params=pltpu.CompilerParams(
            dimension_semantics=("parallel",),
            vmem_limit_bytes=_vmem_limit(resident)),
    )(x2, p["fc1_w"], p["fc1_b"].reshape(1, Ca), p["fc2_w"], p["fc2_b"].reshape(1, C))
    return out.reshape(B, L, C)


# ----------------------------------------------------------------------------
# ResidualAttentionBlock.forward
# ----------------------------------------------------------------------------

def residual_attention_block(x, p, n_head, attn_mask=None, causal=False,
                             adapter_pre_attn=None, adapter_pre_mlp=None):
    """Faithful to ResidualAttentionBlock.forward:
        [adapter_pre_attn]  x = x + attn(ln_1(x))  [adapter_pre_mlp]  x = x + mlp(ln_2(x))
    adapter_pre_attn / adapter_pre_mlp (if given) are TextAdapter param dicts
    (the num_frames == 0 configuration); None == adapters disabled (default)."""
    if adapter_pre_attn is not None:
        x = text_adapter(x, adapter_pre_attn)
    x = attention_block(x, p, n_head, attn_mask=attn_mask, causal=causal)
    if adapter_pre_mlp is not None:
        x = text_adapter(x, adapter_pre_mlp)
    x = mlp_block(x, p)
    return x


# ----------------------------------------------------------------------------
# Pure-JAX reference (f32) for correctness checking
# ----------------------------------------------------------------------------

def _f32(w):
    return w.astype(jnp.float32)


def _ln_ref(x, g, b, eps=1e-5):
    mu = x.mean(-1, keepdims=True)
    var = ((x - mu) ** 2).mean(-1, keepdims=True)
    return (x - mu) / jnp.sqrt(var + eps) * g + b


def _text_adapter_ref(x, ap):
    h = x @ _f32(ap["fc1_w"]) + ap["fc1_b"]
    h = jax.nn.gelu(h, approximate=True)
    h = h @ _f32(ap["fc2_w"]) + ap["fc2_b"]
    return x + h


def reference_block(x, p, n_head, attn_mask=None, pre_attn=None, pre_mlp=None):
    if pre_attn is not None:
        x = _text_adapter_ref(x, pre_attn)
    B, L, C = x.shape
    Dh = C // n_head
    h = _ln_ref(x, p["ln1_g"], p["ln1_b"])
    qkv = h @ _f32(p["in_proj_w"]) + p["in_proj_b"]
    q, k, v = jnp.split(qkv, 3, axis=-1)
    q = q.reshape(B, L, n_head, Dh).transpose(0, 2, 1, 3)
    k = k.reshape(B, L, n_head, Dh).transpose(0, 2, 1, 3)
    v = v.reshape(B, L, n_head, Dh).transpose(0, 2, 1, 3)
    s = jnp.einsum("bhqd,bhkd->bhqk", q, k) / math.sqrt(Dh)
    if attn_mask is not None:
        s = s + attn_mask
    pmat = jax.nn.softmax(s, axis=-1)
    o = jnp.einsum("bhqk,bhkd->bhqd", pmat, v).transpose(0, 2, 1, 3).reshape(B, L, C)
    o = o @ _f32(p["out_proj_w"]) + p["out_proj_b"]
    x = x + o
    if pre_mlp is not None:
        x = _text_adapter_ref(x, pre_mlp)
    h = _ln_ref(x, p["ln2_g"], p["ln2_b"])
    h = h @ _f32(p["fc_w"]) + p["fc_b"]
    h = h * jax.nn.sigmoid(1.702 * h)
    h = h @ _f32(p["proj_w"]) + p["proj_b"]
    return x + h


# ----------------------------------------------------------------------------
# Parameter init (weights stored bf16 for the MXU; biases / LN params f32)
# ----------------------------------------------------------------------------

def init_block_params(key, C, hidden_mult=4):
    ks = jax.random.split(key, 10)

    def w(k, shape, std=0.02):
        return (std * jax.random.normal(k, shape, jnp.float32)).astype(jnp.bfloat16)

    def b(k, n, std=0.02):
        return std * jax.random.normal(k, (n,), jnp.float32)

    Cf = hidden_mult * C
    return dict(
        ln1_g=jnp.ones((C,), jnp.float32), ln1_b=b(ks[0], C),
        in_proj_w=w(ks[1], (C, 3 * C)), in_proj_b=b(ks[2], 3 * C),
        out_proj_w=w(ks[3], (C, C)), out_proj_b=b(ks[4], C),
        ln2_g=jnp.ones((C,), jnp.float32), ln2_b=b(ks[5], C),
        fc_w=w(ks[6], (C, Cf)), fc_b=b(ks[7], Cf),
        proj_w=w(ks[8], (Cf, C)), proj_b=b(ks[9], C),
    )


def init_text_adapter_params(key, C, Ca):
    k1, k2 = jax.random.split(key)

    def w(k, shape, std=0.02):
        return (std * jax.random.normal(k, shape, jnp.float32)).astype(jnp.bfloat16)

    # fc1 / fc2 biases are zero-initialized in the reference TextAdapter.__init__.
    return dict(
        fc1_w=w(k1, (C, Ca)), fc1_b=jnp.zeros((Ca,), jnp.float32),
        fc2_w=w(k2, (Ca, C)), fc2_b=jnp.zeros((C,), jnp.float32),
    )


# ----------------------------------------------------------------------------
# Main
# ----------------------------------------------------------------------------

if __name__ == "__main__":
    B, L, C, n_head = 2, 8, 32, 4        # batch=2, seq=8, d_model=32, heads=4
    Ca = 16                              # adapter_width

    key = jax.random.PRNGKey(0)
    k_blk, k_ad1, k_ad2, kx = jax.random.split(key, 4)
    params = init_block_params(k_blk, C)
    ad_pre_attn = init_text_adapter_params(k_ad1, C, Ca)
    ad_pre_mlp = init_text_adapter_params(k_ad2, C, Ca)

    x = jax.random.normal(kx, (B, L, C), jnp.float32)
    causal_ref = jnp.where(jnp.triu(jnp.ones((L, L), jnp.bool_), 1),
                           -1e9, 0.0).astype(jnp.float32)

    def run_and_check():
        # --- Case 1: vision-style block (no mask, adapters disabled) -------------
        fwd_plain = jax.jit(lambda xi, p: residual_attention_block(xi, p, n_head))
        y1 = fwd_plain(x, params)
        jax.block_until_ready(y1)
        r1 = reference_block(x, params, n_head)
        assert y1.shape == (B, L, C)
        err1 = float(jnp.max(jnp.abs(y1 - r1)))
        assert err1 < 3e-2, f"vision-block mismatch: {err1}"

        # --- Case 2: text-style block (in-kernel causal mask + TextAdapters) -----
        fwd_text = jax.jit(lambda xi, p, a1, a2: residual_attention_block(
            xi, p, n_head, causal=True, adapter_pre_attn=a1, adapter_pre_mlp=a2))
        y2 = fwd_text(x, params, ad_pre_attn, ad_pre_mlp)
        jax.block_until_ready(y2)
        r2 = reference_block(x, params, n_head, attn_mask=causal_ref,
                             pre_attn=ad_pre_attn, pre_mlp=ad_pre_mlp)
        assert y2.shape == (B, L, C)
        err2 = float(jnp.max(jnp.abs(y2 - r2)))
        assert err2 < 3e-2, f"text-block mismatch: {err2}"

    try:
        run_and_check()
    except Exception:
        # Conservative fallback if this jax/libtpu build rejects pl.Buffered(1) or
        # the batched-head relayout: retry once with the simple, proven paths.
        _FLAGS.update(single_buffer_weights=False, batched_heads=False)
        jax.clear_caches()
        run_and_check()

    print("KERNEL_OK")
</pallas_src>

<mosaic_0001>
module attributes {stable_mosaic.version = 11 : i64} {
  func.func @_mlp_block_kernel(%arg0: i32, %arg1: i32, %arg2: memref<16x32xf32, #tpu.memory_space<vmem>>, %arg3: memref<1x32xf32, #tpu.memory_space<vmem>>, %arg4: memref<1x32xf32, #tpu.memory_space<vmem>>, %arg5: memref<32x128xbf16, #tpu.memory_space<vmem>>, %arg6: memref<1x128xf32, #tpu.memory_space<vmem>>, %arg7: memref<128x32xbf16, #tpu.memory_space<vmem>>, %arg8: memref<1x32xf32, #tpu.memory_space<vmem>>, %arg9: memref<16x32xf32, #tpu.memory_space<vmem>>, %arg10: memref<16x32xf32, #tpu.memory_space<vmem>>, %arg11: memref<16x32xf32, #tpu.memory_space<vmem>>) attributes {dimension_semantics = [#tpu.dimension_semantics<parallel>, #tpu.dimension_semantics<arbitrary>], iteration_bounds = array<i64: 1, 1>, scalar_prefetch = 0 : i64, scratch_operands = 2 : i64, tpu.core_type = #tpu.core_type<tc>, window_params = [{transform_indices = @transform_0, window_bounds = array<i64: 16, 32>}, {pipeline_mode = #tpu.pipeline_mode<synchronous>, transform_indices = @transform_1, window_bounds = array<i64: 1, 32>}, {pipeline_mode = #tpu.pipeline_mode<synchronous>, transform_indices = @transform_2, window_bounds = array<i64: 1, 32>}, {transform_indices = @transform_3, window_bounds = array<i64: 32, 128>}, {transform_indices = @transform_4, window_bounds = array<i64: 1, 128>}, {transform_indices = @transform_5, window_bounds = array<i64: 128, 32>}, {pipeline_mode = #tpu.pipeline_mode<synchronous>, transform_indices = @transform_6, window_bounds = array<i64: 1, 32>}, {transform_indices = @transform_7, window_bounds = array<i64: 16, 32>}]} {
    %c0_i32 = arith.constant 0 : i32
    %0 = arith.cmpi eq, %arg1, %c0_i32 : i32
    %1 = arith.extui %0 : i1 to i32
    %c0_i32_0 = arith.constant 0 : i32
    %2 = arith.cmpi ne, %1, %c0_i32_0 : i32
    scf.if %2 {
      %c0_17 = arith.constant 0 : index
      %c0_18 = arith.constant 0 : index
      %27 = vector.load %arg2[%c0_17, %c0_18] : memref<16x32xf32, #tpu.memory_space<vmem>>, vector<16x32xf32>
      %cst_19 = arith.constant dense<0.000000e+00> : vector<16xf32>
      %28 = vector.multi_reduction <add>, %27, %cst_19 [1] : vector<16x32xf32> to vector<16xf32>
      %29 = vector.shape_cast %28 : vector<16xf32> to vector<16x1xf32>
      %cst_20 = arith.constant 3.200000e+01 : f32
      %30 = vector.broadcast %cst_20 : f32 to vector<16x1xf32>
      %31 = arith.divf %29, %30 : vector<16x1xf32>
      %32 = vector.broadcast %31 : vector<16x1xf32> to vector<16x32xf32>
      %33 = arith.subf %27, %32 : vector<16x32xf32>
      %34 = arith.mulf %33, %33 : vector<16x32xf32>
      %cst_21 = arith.constant dense<0.000000e+00> : vector<16xf32>
      %35 = vector.multi_reduction <add>, %34, %cst_21 [1] : vector<16x32xf32> to vector<16xf32>
      %36 = vector.shape_cast %35 : vector<16xf32> to vector<16x1xf32>
      %cst_22 = arith.constant 3.200000e+01 : f32
      %37 = vector.broadcast %cst_22 : f32 to vector<16x1xf32>
      %38 = arith.divf %36, %37 : vector<16x1xf32>
      %39 = vector.broadcast %31 : vector<16x1xf32> to vector<16x32xf32>
      %40 = arith.subf %27, %39 : vector<16x32xf32>
      %cst_23 = arith.constant 9.99999974E-6 : f32
      %41 = vector.broadcast %cst_23 : f32 to vector<16x1xf32>
      %42 = arith.addf %38, %41 : vector<16x1xf32>
      %43 = math.rsqrt %42 : vector<16x1xf32>
      %44 = vector.broadcast %43 : vector<16x1xf32> to vector<16x32xf32>
      %45 = arith.mulf %40, %44 : vector<16x32xf32>
      %c0_24 = arith.constant 0 : index
      %c0_25 = arith.constant 0 : index
      %46 = vector.load %arg3[%c0_24, %c0_25] : memref<1x32xf32, #tpu.memory_space<vmem>>, vector<1x32xf32>
      %47 = vector.broadcast %46 : vector<1x32xf32> to vector<16x32xf32>
      %48 = arith.mulf %45, %47 : vector<16x32xf32>
      %c0_26 = arith.constant 0 : index
      %c0_27 = arith.constant 0 : index
      %49 = vector.load %arg4[%c0_26, %c0_27] : memref<1x32xf32, #tpu.memory_space<vmem>>, vector<1x32xf32>
      %50 = vector.broadcast %49 : vector<1x32xf32> to vector<16x32xf32>
      %51 = arith.addf %48, %50 : vector<16x32xf32>
      %c0_28 = arith.constant 0 : index
      %c0_29 = arith.constant 0 : index
      %52 = vector.load %arg10[%c0_28, %c0_29] : memref<16x32xf32, #tpu.memory_space<vmem>>, vector<16x32xf32>
      tpu.vector_store %arg10[%c0_28, %c0_29], %51 {strides = array<i32>} : memref<16x32xf32, #tpu.memory_space<vmem>>, vector<16x32xf32>,
      %cst_30 = arith.constant 0.000000e+00 : f32
      %53 = vector.broadcast %cst_30 : f32 to vector<16x32xf32>
      %c0_31 = arith.constant 0 : index
      %c0_32 = arith.constant 0 : index
      %54 = vector.load %arg11[%c0_31, %c0_32] : memref<16x32xf32, #tpu.memory_space<vmem>>, vector<16x32xf32>
      tpu.vector_store %arg11[%c0_31, %c0_32], %53 {strides = array<i32>} : memref<16x32xf32, #tpu.memory_space<vmem>>, vector<16x32xf32>,
    } else {
    }
    %c0 = arith.constant 0 : index
    %c0_1 = arith.constant 0 : index
    %3 = vector.load %arg10[%c0, %c0_1] : memref<16x32xf32, #tpu.memory_space<vmem>>, vector<16x32xf32>
    %4 = arith.truncf %3 : vector<16x32xf32> to vector<16x32xbf16>
    %c0_2 = arith.constant 0 : index
    %c0_3 = arith.constant 0 : index
    %5 = vector.load %arg5[%c0_2, %c0_3] : memref<32x128xbf16, #tpu.memory_space<vmem>>, vector<32x128xbf16>
    %cst = arith.constant dense<0.000000e+00> : vector<16x128xf32>
    %6 = tpu.matmul %4, %5, %cst {dimension_numbers = #tpu.dot_dimension_numbers<[1], [0], [0], [1], [0, 0, 1, 1], [], []>} : vector<16x32xbf16>, vector<32x128xbf16>, vector<16x128xf32> -> vector<16x128xf32>
    %c0_4 = arith.constant 0 : index
    %c0_5 = arith.constant 0 : index
    %7 = vector.load %arg6[%c0_4, %c0_5] : memref<1x128xf32, #tpu.memory_space<vmem>>, vector<1x128xf32>
    %8 = vector.broadcast %7 : vector<1x128xf32> to vector<16x128xf32>
    %9 = arith.addf %6, %8 : vector<16x128xf32>
    %cst_6 = arith.constant 1.702000e+00 : f32
    %10 = vector.broadcast %cst_6 : f32 to vector<16x128xf32>
    %11 = arith.mulf %10, %9 : vector<16x128xf32>
    %12 = arith.negf %11 : vector<16x128xf32>
    %13 = math.exp %12 : vector<16x128xf32>
    %cst_7 = arith.constant 1.000000e+00 : f32
    %14 = vector.broadcast %cst_7 : f32 to vector<16x128xf32>
    %15 = arith.addf %14, %13 : vector<16x128xf32>
    %16 = arith.divf %14, %15 : vector<16x128xf32>
    %17 = arith.mulf %9, %16 : vector<16x128xf32>
    %c0_8 = arith.constant 0 : index
    %c0_9 = arith.constant 0 : index
    %18 = vector.load %arg11[%c0_8, %c0_9] : memref<16x32xf32, #tpu.memory_space<vmem>>, vector<16x32xf32>
    %19 = arith.truncf %17 : vector<16x128xf32> to vector<16x128xbf16>
    %c0_10 = arith.constant 0 : index
    %c0_11 = arith.constant 0 : index
    %20 = vector.load %arg7[%c0_10, %c0_11] : memref<128x32xbf16, #tpu.memory_space<vmem>>, vector<128x32xbf16>
    %cst_12 = arith.constant dense<0.000000e+00> : vector<16x32xf32>
    %21 = tpu.matmul %19, %20, %cst_12 {dimension_numbers = #tpu.dot_dimension_numbers<[1], [0], [0], [1], [0, 0, 1, 1], [], []>} : vector<16x128xbf16>, vector<128x32xbf16>, vector<16x32xf32> -> vector<16x32xf32>
    %22 = arith.addf %18, %21 : vector<16x32xf32>
    %c0_13 = arith.constant 0 : index
    %c0_14 = arith.constant 0 : index
    %23 = vector.load %arg11[%c0_13, %c0_14] : memref<16x32xf32, #tpu.memory_space<vmem>>, vector<16x32xf32>
    tpu.vector_store %arg11[%c0_13, %c0_14], %22 {strides = array<i32>} : memref<16x32xf32, #tpu.memory_space<vmem>>, vector<16x32xf32>,
    %c0_i32_15 = arith.constant 0 : i32
    %24 = arith.cmpi eq, %arg1, %c0_i32_15 : i32
    %25 = arith.extui %24 : i1 to i32
    %c0_i32_16 = arith.constant 0 : i32
    %26 = arith.cmpi ne, %25, %c0_i32_16 : i32
    scf.if %26 {
      %c0_17 = arith.constant 0 : index
      %c0_18 = arith.constant 0 : index
      %27 = vector.load %arg2[%c0_17, %c0_18] : memref<16x32xf32, #tpu.memory_space<vmem>>, vector<16x32xf32>
      %c0_19 = arith.constant 0 : index
      %c0_20 = arith.constant 0 : index
      %28 = vector.load %arg11[%c0_19, %c0_20] : memref<16x32xf32, #tpu.memory_space<vmem>>, vector<16x32xf32>
      %29 = arith.addf %27, %28 : vector<16x32xf32>
      %c0_21 = arith.constant 0 : index
      %c0_22 = arith.constant 0 : index
      %30 = vector.load %arg8[%c0_21, %c0_22] : memref<1x32xf32, #tpu.memory_space<vmem>>, vector<1x32xf32>
      %31 = vector.broadcast %30 : vector<1x32xf32> to vector<16x32xf32>
      %32 = arith.addf %29, %31 : vector<16x32xf32>
      %c0_23 = arith.constant 0 : index
      %c0_24 = arith.constant 0 : index
      %33 = vector.load %arg9[%c0_23, %c0_24] : memref<16x32xf32, #tpu.memory_space<vmem>>, vector<16x32xf32>
      tpu.vector_store %arg9[%c0_23, %c0_24], %32 {strides = array<i32>} : memref<16x32xf32, #tpu.memory_space<vmem>>, vector<16x32xf32>,
    } else {
    }
    return
  }
  func.func @transform_0(%arg0: i32, %arg1: i32) -> (i32, i32) {
    %c0_i32 = arith.constant 0 : i32
    %c0_i32_0 = arith.constant 0 : i32
    return %arg0, %c0_i32 : i32, i32
  }
  func.func @transform_1(%arg0: i32, %arg1: i32) -> (i32, i32) {
    %c0_i32 = arith.constant 0 : i32
    %c0_i32_0 = arith.constant 0 : i32
    %c0_i32_1 = arith.constant 0 : i32
    return %c0_i32, %c0_i32_0 : i32, i32
  }
  func.func @transform_2(%arg0: i32, %arg1: i32) -> (i32, i32) {
    %c0_i32 = arith.constant 0 : i32
    %c0_i32_0 = arith.constant 0 : i32
    %c0_i32_1 = arith.constant 0 : i32
    return %c0_i32, %c0_i32_0 : i32, i32
  }
  func.func @transform_3(%arg0: i32, %arg1: i32) -> (i32, i32) {
    %c0_i32 = arith.constant 0 : i32
    %c0_i32_0 = arith.constant 0 : i32
    return %c0_i32, %arg1 : i32, i32
  }
  func.func @transform_4(%arg0: i32, %arg1: i32) -> (i32, i32) {
    %c0_i32 = arith.constant 0 : i32
    %c0_i32_0 = arith.constant 0 : i32
    return %c0_i32, %arg1 : i32, i32
  }
  func.func @transform_5(%arg0: i32, %arg1: i32) -> (i32, i32) {
    %c0_i32 = arith.constant 0 : i32
    %c0_i32_0 = arith.constant 0 : i32
    return %arg1, %c0_i32 : i32, i32
  }
  func.func @transform_6(%arg0: i32, %arg1: i32) -> (i32, i32) {
    %c0_i32 = arith.constant 0 : i32
    %c0_i32_0 = arith.constant 0 : i32
    %c0_i32_1 = arith.constant 0 : i32
    return %c0_i32, %c0_i32_0 : i32, i32
  }
  func.func @transform_7(%arg0: i32, %arg1: i32) -> (i32, i32) {
    %c0_i32 = arith.constant 0 : i32
    %c0_i32_0 = arith.constant 0 : i32
    return %arg0, %c0_i32 : i32, i32
  }
}

module attributes {stable_mosaic.version = 11 : i64} {
  func.func @_attn_block_kernel(%arg0: i32, %arg1: memref<1x8x32xf32, #tpu.memory_space<vmem>>, %arg2: memref<1x32xf32, #tpu.memory_space<vmem>>, %arg3: memref<1x32xf32, #tpu.memory_space<vmem>>, %arg4: memref<32x96xbf16, #tpu.memory_space<vmem>>, %arg5: memref<1x96xf32, #tpu.memory_space<vmem>>, %arg6: memref<32x32xbf16, #tpu.memory_space<vmem>>, %arg7: memref<1x32xf32, #tpu.memory_space<vmem>>, %arg8: memref<1x8x32xf32, #tpu.memory_space<vmem>>) attributes {dimension_semantics = [#tpu.dimension_semantics<parallel>], iteration_bounds = array<i64: 2>, scalar_prefetch = 0 : i64, scratch_operands = 0 : i64, tpu.core_type = #tpu.core_type<tc>, window_params = [{transform_indices = @transform_0, window_bounds = array<i64: 1, 8, 32>}, {pipeline_mode = #tpu.pipeline_mode<synchronous>, transform_indices = @transform_1, window_bounds = array<i64: 1, 32>}, {pipeline_mode = #tpu.pipeline_mode<synchronous>, transform_indices = @transform_2, window_bounds = array<i64: 1, 32>}, {pipeline_mode = #tpu.pipeline_mode<synchronous>, transform_indices = @transform_3, window_bounds = array<i64: 32, 96>}, {pipeline_mode = #tpu.pipeline_mode<synchronous>, transform_indices = @transform_4, window_bounds = array<i64: 1, 96>}, {pipeline_mode = #tpu.pipeline_mode<synchronous>, transform_indices = @transform_5, window_bounds = array<i64: 32, 32>}, {pipeline_mode = #tpu.pipeline_mode<synchronous>, transform_indices = @transform_6, window_bounds = array<i64: 1, 32>}, {transform_indices = @transform_7, window_bounds = array<i64: 1, 8, 32>}]} {
    %c0 = arith.constant 0 : index
    %c0_0 = arith.constant 0 : index
    %c0_1 = arith.constant 0 : index
    %0 = vector.load %arg1[%c0, %c0_0, %c0_1] : memref<1x8x32xf32, #tpu.memory_space<vmem>>, vector<1x8x32xf32>
    %1 = vector.shape_cast %0 : vector<1x8x32xf32> to vector<8x32xf32>
    %cst = arith.constant dense<0.000000e+00> : vector<8xf32>
    %2 = vector.multi_reduction <add>, %1, %cst [1] : vector<8x32xf32> to vector<8xf32>
    %3 = vector.shape_cast %2 : vector<8xf32> to vector<8x1xf32>
    %cst_2 = arith.constant 3.200000e+01 : f32
    %4 = vector.broadcast %cst_2 : f32 to vector<8x1xf32>
    %5 = arith.divf %3, %4 : vector<8x1xf32>
    %6 = vector.broadcast %5 : vector<8x1xf32> to vector<8x32xf32>
    %7 = arith.subf %1, %6 : vector<8x32xf32>
    %8 = arith.mulf %7, %7 : vector<8x32xf32>
    %cst_3 = arith.constant dense<0.000000e+00> : vector<8xf32>
    %9 = vector.multi_reduction <add>, %8, %cst_3 [1] : vector<8x32xf32> to vector<8xf32>
    %10 = vector.shape_cast %9 : vector<8xf32> to vector<8x1xf32>
    %cst_4 = arith.constant 3.200000e+01 : f32
    %11 = vector.broadcast %cst_4 : f32 to vector<8x1xf32>
    %12 = arith.divf %10, %11 : vector<8x1xf32>
    %13 = vector.broadcast %5 : vector<8x1xf32> to vector<8x32xf32>
    %14 = arith.subf %1, %13 : vector<8x32xf32>
    %cst_5 = arith.constant 9.99999974E-6 : f32
    %15 = vector.broadcast %cst_5 : f32 to vector<8x1xf32>
    %16 = arith.addf %12, %15 : vector<8x1xf32>
    %17 = math.rsqrt %16 : vector<8x1xf32>
    %18 = vector.broadcast %17 : vector<8x1xf32> to vector<8x32xf32>
    %19 = arith.mulf %14, %18 : vector<8x32xf32>
    %c0_6 = arith.constant 0 : index
    %c0_7 = arith.constant 0 : index
    %20 = vector.load %arg2[%c0_6, %c0_7] : memref<1x32xf32, #tpu.memory_space<vmem>>, vector<1x32xf32>
    %21 = vector.broadcast %20 : vector<1x32xf32> to vector<8x32xf32>
    %22 = arith.mulf %19, %21 : vector<8x32xf32>
    %c0_8 = arith.constant 0 : index
    %c0_9 = arith.constant 0 : index
    %23 = vector.load %arg3[%c0_8, %c0_9] : memref<1x32xf32, #tpu.memory_space<vmem>>, vector<1x32xf32>
    %24 = vector.broadcast %23 : vector<1x32xf32> to vector<8x32xf32>
    %25 = arith.addf %22, %24 : vector<8x32xf32>
    %26 = arith.truncf %25 : vector<8x32xf32> to vector<8x32xbf16>
    %c0_10 = arith.constant 0 : index
    %c0_11 = arith.constant 0 : index
    %27 = vector.load %arg4[%c0_10, %c0_11] : memref<32x96xbf16, #tpu.memory_space<vmem>>, vector<32x96xbf16>
    %cst_12 = arith.constant dense<0.000000e+00> : vector<8x96xf32>
    %28 = tpu.matmul %26, %27, %cst_12 {dimension_numbers = #tpu.dot_dimension_numbers<[1], [0], [0], [1], [0, 0, 1, 1], [], []>} : vector<8x32xbf16>, vector<32x96xbf16>, vector<8x96xf32> -> vector<8x96xf32>
    %c0_13 = arith.constant 0 : index
    %c0_14 = arith.constant 0 : index
    %29 = vector.load %arg5[%c0_13, %c0_14] : memref<1x96xf32, #tpu.memory_space<vmem>>, vector<1x96xf32>
    %30 = vector.broadcast %29 : vector<1x96xf32> to vector<8x96xf32>
    %31 = arith.addf %28, %30 : vector<8x96xf32>
    %32 = vector.extract_strided_slice %31 {offsets = [0, 0], sizes = [8, 32], strides = [1, 1]} : vector<8x96xf32> to vector<8x32xf32>
    %cst_15 = arith.constant 0.353553385 : f32
    %33 = vector.broadcast %cst_15 : f32 to vector<8x32xf32>
    %34 = arith.mulf %32, %33 : vector<8x32xf32>
    %35 = vector.extract_strided_slice %31 {offsets = [0, 32], sizes = [8, 32], strides = [1, 1]} : vector<8x96xf32> to vector<8x32xf32>
    %36 = vector.extract_strided_slice %31 {offsets = [0, 64], sizes = [8, 32], strides = [1, 1]} : vector<8x96xf32> to vector<8x32xf32>
    %37 = vector.shape_cast %34 : vector<8x32xf32> to vector<8x4x8xf32>
    %38 = tpu.transpose %37, [1, 0, 2] : vector<8x4x8xf32> -> vector<4x8x8xf32>
    %39 = arith.truncf %38 : vector<4x8x8xf32> to vector<4x8x8xbf16>
    %40 = vector.shape_cast %35 : vector<8x32xf32> to vector<8x4x8xf32>
    %41 = tpu.transpose %40, [1, 0, 2] : vector<8x4x8xf32> -> vector<4x8x8xf32>
    %42 = arith.truncf %41 : vector<4x8x8xf32> to vector<4x8x8xbf16>
    %43 = vector.shape_cast %36 : vector<8x32xf32> to vector<8x4x8xf32>
    %44 = tpu.transpose %43, [1, 0, 2] : vector<8x4x8xf32> -> vector<4x8x8xf32>
    %45 = arith.truncf %44 : vector<4x8x8xf32> to vector<4x8x8xbf16>
    "tpu.trace_start"() <{level = 10 : i32, message = "hqd,hkd->hqk"}> : () -> ()
    %cst_16 = arith.constant dense<0.000000e+00> : vector<4x8x8xf32>
    %46 = tpu.matmul %39, %42, %cst_16 {dimension_numbers = #tpu.dot_dimension_numbers<[2], [2], [1], [1], [0, 0, 0, 1, 1, 1], [0], [0]>} : vector<4x8x8xbf16>, vector<4x8x8xbf16>, vector<4x8x8xf32> -> vector<4x8x8xf32>
    "tpu.trace_stop"() : () -> ()
    %cst_17 = arith.constant dense<0xFF800000> : vector<4x8xf32>
    %47 = vector.multi_reduction <maximumf>, %46, %cst_17 [2] : vector<4x8x8xf32> to vector<4x8xf32>
    %48 = vector.shape_cast %47 : vector<4x8xf32> to vector<4x8x1xf32>
    %49 = vector.broadcast %48 : vector<4x8x1xf32> to vector<4x8x8xf32>
    %50 = arith.subf %46, %49 : vector<4x8x8xf32>
    %51 = math.exp %50 : vector<4x8x8xf32>
    %cst_18 = arith.constant dense<0.000000e+00> : vector<4x8xf32>
    %52 = vector.multi_reduction <add>, %51, %cst_18 [2] : vector<4x8x8xf32> to vector<4x8xf32>
    %53 = vector.shape_cast %52 : vector<4x8xf32> to vector<4x8x1xf32>
    %54 = tpu.reciprocal %53 {approx = true} : vector<4x8x1xf32> -> vector<4x8x1xf32>
    %55 = vector.broadcast %54 : vector<4x8x1xf32> to vector<4x8x8xf32>
    %56 = arith.mulf %51, %55 : vector<4x8x8xf32>
    %57 = arith.truncf %56 : vector<4x8x8xf32> to vector<4x8x8xbf16>
    "tpu.trace_start"() <{level = 10 : i32, message = "hqk,hkd->hqd"}> : () -> ()
    %cst_19 = arith.constant dense<0.000000e+00> : vector<4x8x8xf32>
    %58 = tpu.matmul %57, %45, %cst_19 {dimension_numbers = #tpu.dot_dimension_numbers<[2], [1], [1], [2], [0, 0, 0, 1, 1, 2], [0], [0]>} : vector<4x8x8xbf16>, vector<4x8x8xbf16>, vector<4x8x8xf32> -> vector<4x8x8xf32>
    "tpu.trace_stop"() : () -> ()
    %59 = tpu.transpose %58, [1, 0, 2] : vector<4x8x8xf32> -> vector<8x4x8xf32>
    %60 = vector.shape_cast %59 : vector<8x4x8xf32> to vector<8x32xf32>
    %61 = arith.truncf %60 : vector<8x32xf32> to vector<8x32xbf16>
    %c0_20 = arith.constant 0 : index
    %c0_21 = arith.constant 0 : index
    %62 = vector.load %arg6[%c0_20, %c0_21] : memref<32x32xbf16, #tpu.memory_space<vmem>>, vector<32x32xbf16>
    %cst_22 = arith.constant dense<0.000000e+00> : vector<8x32xf32>
    %63 = tpu.matmul %61, %62, %cst_22 {dimension_numbers = #tpu.dot_dimension_numbers<[1], [0], [0], [1], [0, 0, 1, 1], [], []>} : vector<8x32xbf16>, vector<32x32xbf16>, vector<8x32xf32> -> vector<8x32xf32>
    %c0_23 = arith.constant 0 : index
    %c0_24 = arith.constant 0 : index
    %64 = vector.load %arg7[%c0_23, %c0_24] : memref<1x32xf32, #tpu.memory_space<vmem>>, vector<1x32xf32>
    %65 = vector.broadcast %64 : vector<1x32xf32> to vector<8x32xf32>
    %66 = arith.addf %63, %65 : vector<8x32xf32>
    %67 = arith.addf %1, %66 : vector<8x32xf32>
    %c0_25 = arith.constant 0 : index
    %c0_26 = arith.constant 0 : index
    %c0_27 = arith.constant 0 : index
    %68 = vector.load %arg8[%c0_25, %c0_26, %c0_27] : memref<1x8x32xf32, #tpu.memory_space<vmem>>, vector<1x8x32xf32>
    %69 = vector.shape_cast %68 : vector<1x8x32xf32> to vector<8x32xf32>
    %70 = vector.shape_cast %67 : vector<8x32xf32> to vector<1x8x32xf32>
    tpu.vector_store %arg8[%c0_25, %c0_26, %c0_27], %70 {strides = array<i32>} : memref<1x8x32xf32, #tpu.memory_space<vmem>>, vector<1x8x32xf32>,
    return
  }
  func.func @transform_0(%arg0: i32) -> (i32, i32, i32) {
    %c0_i32 = arith.constant 0 : i32
    %c0_i32_0 = arith.constant 0 : i32
    %c0_i32_1 = arith.constant 0 : i32
    return %arg0, %c0_i32, %c0_i32_0 : i32, i32, i32
  }
  func.func @transform_1(%arg0: i32) -> (i32, i32) {
    %c0_i32 = arith.constant 0 : i32
    %c0_i32_0 = arith.constant 0 : i32
    %c0_i32_1 = arith.constant 0 : i32
    return %c0_i32, %c0_i32_0 : i32, i32
  }
  func.func @transform_2(%arg0: i32) -> (i32, i32) {
    %c0_i32 = arith.constant 0 : i32
    %c0_i32_0 = arith.constant 0 : i32
    %c0_i32_1 = arith.constant 0 : i32
    return %c0_i32, %c0_i32_0 : i32, i32
  }
  func.func @transform_3(%arg0: i32) -> (i32, i32) {
    %c0_i32 = arith.constant 0 : i32
    %c0_i32_0 = arith.constant 0 : i32
    %c0_i32_1 = arith.constant 0 : i32
    return %c0_i32, %c0_i32_0 : i32, i32
  }
  func.func @transform_4(%arg0: i32) -> (i32, i32) {
    %c0_i32 = arith.constant 0 : i32
    %c0_i32_0 = arith.constant 0 : i32
    %c0_i32_1 = arith.constant 0 : i32
    return %c0_i32, %c0_i32_0 : i32, i32
  }
  func.func @transform_5(%arg0: i32) -> (i32, i32) {
    %c0_i32 = arith.constant 0 : i32
    %c0_i32_0 = arith.constant 0 : i32
    %c0_i32_1 = arith.constant 0 : i32
    return %c0_i32, %c0_i32_0 : i32, i32
  }
  func.func @transform_6(%arg0: i32) -> (i32, i32) {
    %c0_i32 = arith.constant 0 : i32
    %c0_i32_0 = arith.constant 0 : i32
    %c0_i32_1 = arith.constant 0 : i32
    return %c0_i32, %c0_i32_0 : i32, i32
  }
  func.func @transform_7(%arg0: i32) -> (i32, i32, i32) {
    %c0_i32 = arith.constant 0 : i32
    %c0_i32_0 = arith.constant 0 : i32
    %c0_i32_1 = arith.constant 0 : i32
    return %arg0, %c0_i32, %c0_i32_0 : i32, i32, i32
  }
}

module attributes {stable_mosaic.version = 11 : i64} {
  func.func @_mlp_block_kernel(%arg0: i32, %arg1: i32, %arg2: memref<16x32xf32, #tpu.memory_space<vmem>>, %arg3: memref<1x32xf32, #tpu.memory_space<vmem>>, %arg4: memref<1x32xf32, #tpu.memory_space<vmem>>, %arg5: memref<32x128xbf16, #tpu.memory_space<vmem>>, %arg6: memref<1x128xf32, #tpu.memory_space<vmem>>, %arg7: memref<128x32xbf16, #tpu.memory_space<vmem>>, %arg8: memref<1x32xf32, #tpu.memory_space<vmem>>, %arg9: memref<16x32xf32, #tpu.memory_space<vmem>>, %arg10: memref<16x32xf32, #tpu.memory_space<vmem>>, %arg11: memref<16x32xf32, #tpu.memory_space<vmem>>) attributes {dimension_semantics = [#tpu.dimension_semantics<parallel>, #tpu.dimension_semantics<arbitrary>], iteration_bounds = array<i64: 1, 1>, scalar_prefetch = 0 : i64, scratch_operands = 2 : i64, tpu.core_type = #tpu.core_type<tc>, window_params = [{transform_indices = @transform_0, window_bounds = array<i64: 16, 32>}, {pipeline_mode = #tpu.pipeline_mode<synchronous>, transform_indices = @transform_1, window_bounds = array<i64: 1, 32>}, {pipeline_mode = #tpu.pipeline_mode<synchronous>, transform_indices = @transform_2, window_bounds = array<i64: 1, 32>}, {transform_indices = @transform_3, window_bounds = array<i64: 32, 128>}, {transform_indices = @transform_4, window_bounds = array<i64: 1, 128>}, {transform_indices = @transform_5, window_bounds = array<i64: 128, 32>}, {pipeline_mode = #tpu.pipeline_mode<synchronous>, transform_indices = @transform_6, window_bounds = array<i64: 1, 32>}, {transform_indices = @transform_7, window_bounds = array<i64: 16, 32>}]} {
    %c0_i32 = arith.constant 0 : i32
    %0 = arith.cmpi eq, %arg1, %c0_i32 : i32
    %1 = arith.extui %0 : i1 to i32
    %c0_i32_0 = arith.constant 0 : i32
    %2 = arith.cmpi ne, %1, %c0_i32_0 : i32
    scf.if %2 {
      %c0_17 = arith.constant 0 : index
      %c0_18 = arith.constant 0 : index
      %27 = vector.load %arg2[%c0_17, %c0_18] : memref<16x32xf32, #tpu.memory_space<vmem>>, vector<16x32xf32>
      %cst_19 = arith.constant dense<0.000000e+00> : vector<16xf32>
      %28 = vector.multi_reduction <add>, %27, %cst_19 [1] : vector<16x32xf32> to vector<16xf32>
      %29 = vector.shape_cast %28 : vector<16xf32> to vector<16x1xf32>
      %cst_20 = arith.constant 3.200000e+01 : f32
      %30 = vector.broadcast %cst_20 : f32 to vector<16x1xf32>
      %31 = arith.divf %29, %30 : vector<16x1xf32>
      %32 = vector.broadcast %31 : vector<16x1xf32> to vector<16x32xf32>
      %33 = arith.subf %27, %32 : vector<16x32xf32>
      %34 = arith.mulf %33, %33 : vector<16x32xf32>
      %cst_21 = arith.constant dense<0.000000e+00> : vector<16xf32>
      %35 = vector.multi_reduction <add>, %34, %cst_21 [1] : vector<16x32xf32> to vector<16xf32>
      %36 = vector.shape_cast %35 : vector<16xf32> to vector<16x1xf32>
      %cst_22 = arith.constant 3.200000e+01 : f32
      %37 = vector.broadcast %cst_22 : f32 to vector<16x1xf32>
      %38 = arith.divf %36, %37 : vector<16x1xf32>
      %39 = vector.broadcast %31 : vector<16x1xf32> to vector<16x32xf32>
      %40 = arith.subf %27, %39 : vector<16x32xf32>
      %cst_23 = arith.constant 9.99999974E-6 : f32
      %41 = vector.broadcast %cst_23 : f32 to vector<16x1xf32>
      %42 = arith.addf %38, %41 : vector<16x1xf32>
      %43 = math.rsqrt %42 : vector<16x1xf32>
      %44 = vector.broadcast %43 : vector<16x1xf32> to vector<16x32xf32>
      %45 = arith.mulf %40, %44 : vector<16x32xf32>
      %c0_24 = arith.constant 0 : index
      %c0_25 = arith.constant 0 : index
      %46 = vector.load %arg3[%c0_24, %c0_25] : memref<1x32xf32, #tpu.memory_space<vmem>>, vector<1x32xf32>
      %47 = vector.broadcast %46 : vector<1x32xf32> to vector<16x32xf32>
      %48 = arith.mulf %45, %47 : vector<16x32xf32>
      %c0_26 = arith.constant 0 : index
      %c0_27 = arith.constant 0 : index
      %49 = vector.load %arg4[%c0_26, %c0_27] : memref<1x32xf32, #tpu.memory_space<vmem>>, vector<1x32xf32>
      %50 = vector.broadcast %49 : vector<1x32xf32> to vector<16x32xf32>
      %51 = arith.addf %48, %50 : vector<16x32xf32>
      %c0_28 = arith.constant 0 : index
      %c0_29 = arith.constant 0 : index
      %52 = vector.load %arg10[%c0_28, %c0_29] : memref<16x32xf32, #tpu.memory_space<vmem>>, vector<16x32xf32>
      tpu.vector_store %arg10[%c0_28, %c0_29], %51 {strides = array<i32>} : memref<16x32xf32, #tpu.memory_space<vmem>>, vector<16x32xf32>,
      %cst_30 = arith.constant 0.000000e+00 : f32
      %53 = vector.broadcast %cst_30 : f32 to vector<16x32xf32>
      %c0_31 = arith.constant 0 : index
      %c0_32 = arith.constant 0 : index
      %54 = vector.load %arg11[%c0_31, %c0_32] : memref<16x32xf32, #tpu.memory_space<vmem>>, vector<16x32xf32>
      tpu.vector_store %arg11[%c0_31, %c0_32], %53 {strides = array<i32>} : memref<16x32xf32, #tpu.memory_space<vmem>>, vector<16x32xf32>,
    } else {
    }
    %c0 = arith.constant 0 : index
    %c0_1 = arith.constant 0 : index
    %3 = vector.load %arg10[%c0, %c0_1] : memref<16x32xf32, #tpu.memory_space<vmem>>, vector<16x32xf32>
    %4 = arith.truncf %3 : vector<16x32xf32> to vector<16x32xbf16>
    %c0_2 = arith.constant 0 : index
    %c0_3 = arith.constant 0 : index
    %5 = vector.load %arg5[%c0_2, %c0_3] : memref<32x128xbf16, #tpu.memory_space<vmem>>, vector<32x128xbf16>
    %cst = arith.constant dense<0.000000e+00> : vector<16x128xf32>
    %6 = tpu.matmul %4, %5, %cst {dimension_numbers = #tpu.dot_dimension_numbers<[1], [0], [0], [1], [0, 0, 1, 1], [], []>} : vector<16x32xbf16>, vector<32x128xbf16>, vector<16x128xf32> -> vector<16x128xf32>
    %c0_4 = arith.constant 0 : index
    %c0_5 = arith.constant 0 : index
    %7 = vector.load %arg6[%c0_4, %c0_5] : memref<1x128xf32, #tpu.memory_space<vmem>>, vector<1x128xf32>
    %8 = vector.broadcast %7 : vector<1x128xf32> to vector<16x128xf32>
    %9 = arith.addf %6, %8 : vector<16x128xf32>
    %cst_6 = arith.constant 1.702000e+00 : f32
    %10 = vector.broadcast %cst_6 : f32 to vector<16x128xf32>
    %11 = arith.mulf %10, %9 : vector<16x128xf32>
    %12 = arith.negf %11 : vector<16x128xf32>
    %13 = math.exp %12 : vector<16x128xf32>
    %cst_7 = arith.constant 1.000000e+00 : f32
    %14 = vector.broadcast %cst_7 : f32 to vector<16x128xf32>
    %15 = arith.addf %14, %13 : vector<16x128xf32>
    %16 = arith.divf %14, %15 : vector<16x128xf32>
    %17 = arith.mulf %9, %16 : vector<16x128xf32>
    %c0_8 = arith.constant 0 : index
    %c0_9 = arith.constant 0 : index
    %18 = vector.load %arg11[%c0_8, %c0_9] : memref<16x32xf32, #tpu.memory_space<vmem>>, vector<16x32xf32>
    %19 = arith.truncf %17 : vector<16x128xf32> to vector<16x128xbf16>
    %c0_10 = arith.constant 0 : index
    %c0_11 = arith.constant 0 : index
    %20 = vector.load %arg7[%c0_10, %c0_11] : memref<128x32xbf16, #tpu.memory_space<vmem>>, vector<128x32xbf16>
    %cst_12 = arith.constant dense<0.000000e+00> : vector<16x32xf32>
    %21 = tpu.matmul %19, %20, %cst_12 {dimension_numbers = #tpu.dot_dimension_numbers<[1], [0], [0], [1], [0, 0, 1, 1], [], []>} : vector<16x128xbf16>, vector<128x32xbf16>, vector<16x32xf32> -> vector<16x32xf32>
    %22 = arith.addf %18, %21 : vector<16x32xf32>
    %c0_13 = arith.constant 0 : index
    %c0_14 = arith.constant 0 : index
    %23 = vector.load %arg11[%c0_13, %c0_14] : memref<16x32xf32, #tpu.memory_space<vmem>>, vector<16x32xf32>
    tpu.vector_store %arg11[%c0_13, %c0_14], %22 {strides = array<i32>} : memref<16x32xf32, #tpu.memory_space<vmem>>, vector<16x32xf32>,
    %c0_i32_15 = arith.constant 0 : i32
    %24 = arith.cmpi eq, %arg1, %c0_i32_15 : i32
    %25 = arith.extui %24 : i1 to i32
    %c0_i32_16 = arith.constant 0 : i32
    %26 = arith.cmpi ne, %25, %c0_i32_16 : i32
    scf.if %26 {
      %c0_17 = arith.constant 0 : index
      %c0_18 = arith.constant 0 : index
      %27 = vector.load %arg2[%c0_17, %c0_18] : memref<16x32xf32, #tpu.memory_space<vmem>>, vector<16x32xf32>
      %c0_19 = arith.constant 0 : index
      %c0_20 = arith.constant 0 : index
      %28 = vector.load %arg11[%c0_19, %c0_20] : memref<16x32xf32, #tpu.memory_space<vmem>>, vector<16x32xf32>
      %29 = arith.addf %27, %28 : vector<16x32xf32>
      %c0_21 = arith.constant 0 : index
      %c0_22 = arith.constant 0 : index
      %30 = vector.load %arg8[%c0_21, %c0_22] : memref<1x32xf32, #tpu.memory_space<vmem>>, vector<1x32xf32>
      %31 = vector.broadcast %30 : vector<1x32xf32> to vector<16x32xf32>
      %32 = arith.addf %29, %31 : vector<16x32xf32>
      %c0_23 = arith.constant 0 : index
      %c0_24 = arith.constant 0 : index
      %33 = vector.load %arg9[%c0_23, %c0_24] : memref<16x32xf32, #tpu.memory_space<vmem>>, vector<16x32xf32>
      tpu.vector_store %arg9[%c0_23, %c0_24], %32 {strides = array<i32>} : memref<16x32xf32, #tpu.memory_space<vmem>>, vector<16x32xf32>,
    } else {
    }
    return
  }
  func.func @transform_0(%arg0: i32, %arg1: i32) -> (i32, i32) {
    %c0_i32 = arith.constant 0 : i32
    %c0_i32_0 = arith.constant 0 : i32
    return %arg0, %c0_i32 : i32, i32
  }
  func.func @transform_1(%arg0: i32, %arg1: i32) -> (i32, i32) {
    %c0_i32 = arith.constant 0 : i32
    %c0_i32_0 = arith.constant 0 : i32
    %c0_i32_1 = arith.constant 0 : i32
    return %c0_i32, %c0_i32_0 : i32, i32
  }
  func.func @transform_2(%arg0: i32, %arg1: i32) -> (i32, i32) {
    %c0_i32 = arith.constant 0 : i32
    %c0_i32_0 = arith.constant 0 : i32
    %c0_i32_1 = arith.constant 0 : i32
    return %c0_i32, %c0_i32_0 : i32, i32
  }
  func.func @transform_3(%arg0: i32, %arg1: i32) -> (i32, i32) {
    %c0_i32 = arith.constant 0 : i32
    %c0_i32_0 = arith.constant 0 : i32
    return %c0_i32, %arg1 : i32, i32
  }
  func.func @transform_4(%arg0: i32, %arg1: i32) -> (i32, i32) {
    %c0_i32 = arith.constant 0 : i32
    %c0_i32_0 = arith.constant 0 : i32
    return %c0_i32, %arg1 : i32, i32
  }
  func.func @transform_5(%arg0: i32, %arg1: i32) -> (i32, i32) {
    %c0_i32 = arith.constant 0 : i32
    %c0_i32_0 = arith.constant 0 : i32
    return %arg1, %c0_i32 : i32, i32
  }
  func.func @transform_6(%arg0: i32, %arg1: i32) -> (i32, i32) {
    %c0_i32 = arith.constant 0 : i32
    %c0_i32_0 = arith.constant 0 : i32
    %c0_i32_1 = arith.constant 0 : i32
    return %c0_i32, %c0_i32_0 : i32, i32
  }
  func.func @transform_7(%arg0: i32, %arg1: i32) -> (i32, i32) {
    %c0_i32 = arith.constant 0 : i32
    %c0_i32_0 = arith.constant 0 : i32
    return %arg0, %c0_i32 : i32, i32
  }
}

module attributes {stable_mosaic.version = 11 : i64} {
  func.func @_attn_block_kernel(%arg0: i32, %arg1: memref<1x8x32xf32, #tpu.memory_space<vmem>>, %arg2: memref<1x32xf32, #tpu.memory_space<vmem>>, %arg3: memref<1x32xf32, #tpu.memory_space<vmem>>, %arg4: memref<32x96xbf16, #tpu.memory_space<vmem>>, %arg5: memref<1x96xf32, #tpu.memory_space<vmem>>, %arg6: memref<32x32xbf16, #tpu.memory_space<vmem>>, %arg7: memref<1x32xf32, #tpu.memory_space<vmem>>, %arg8: memref<1x8x32xf32, #tpu.memory_space<vmem>>) attributes {dimension_semantics = [#tpu.dimension_semantics<parallel>], iteration_bounds = array<i64: 2>, scalar_prefetch = 0 : i64, scratch_operands = 0 : i64, tpu.core_type = #tpu.core_type<tc>, window_params = [{transform_indices = @transform_0, window_bounds = array<i64: 1, 8, 32>}, {pipeline_mode = #tpu.pipeline_mode<synchronous>, transform_indices = @transform_1, window_bounds = array<i64: 1, 32>}, {pipeline_mode = #tpu.pipeline_mode<synchronous>, transform_indices = @transform_2, window_bounds = array<i64: 1, 32>}, {pipeline_mode = #tpu.pipeline_mode<synchronous>, transform_indices = @transform_3, window_bounds = array<i64: 32, 96>}, {pipeline_mode = #tpu.pipeline_mode<synchronous>, transform_indices = @transform_4, window_bounds = array<i64: 1, 96>}, {pipeline_mode = #tpu.pipeline_mode<synchronous>, transform_indices = @transform_5, window_bounds = array<i64: 32, 32>}, {pipeline_mode = #tpu.pipeline_mode<synchronous>, transform_indices = @transform_6, window_bounds = array<i64: 1, 32>}, {transform_indices = @transform_7, window_bounds = array<i64: 1, 8, 32>}]} {
    %c0 = arith.constant 0 : index
    %c0_0 = arith.constant 0 : index
    %c0_1 = arith.constant 0 : index
    %0 = vector.load %arg1[%c0, %c0_0, %c0_1] : memref<1x8x32xf32, #tpu.memory_space<vmem>>, vector<1x8x32xf32>
    %1 = vector.shape_cast %0 : vector<1x8x32xf32> to vector<8x32xf32>
    %cst = arith.constant dense<0.000000e+00> : vector<8xf32>
    %2 = vector.multi_reduction <add>, %1, %cst [1] : vector<8x32xf32> to vector<8xf32>
    %3 = vector.shape_cast %2 : vector<8xf32> to vector<8x1xf32>
    %cst_2 = arith.constant 3.200000e+01 : f32
    %4 = vector.broadcast %cst_2 : f32 to vector<8x1xf32>
    %5 = arith.divf %3, %4 : vector<8x1xf32>
    %6 = vector.broadcast %5 : vector<8x1xf32> to vector<8x32xf32>
    %7 = arith.subf %1, %6 : vector<8x32xf32>
    %8 = arith.mulf %7, %7 : vector<8x32xf32>
    %cst_3 = arith.constant dense<0.000000e+00> : vector<8xf32>
    %9 = vector.multi_reduction <add>, %8, %cst_3 [1] : vector<8x32xf32> to vector<8xf32>
    %10 = vector.shape_cast %9 : vector<8xf32> to vector<8x1xf32>
    %cst_4 = arith.constant 3.200000e+01 : f32
    %11 = vector.broadcast %cst_4 : f32 to vector<8x1xf32>
    %12 = arith.divf %10, %11 : vector<8x1xf32>
    %13 = vector.broadcast %5 : vector<8x1xf32> to vector<8x32xf32>
    %14 = arith.subf %1, %13 : vector<8x32xf32>
    %cst_5 = arith.constant 9.99999974E-6 : f32
    %15 = vector.broadcast %cst_5 : f32 to vector<8x1xf32>
    %16 = arith.addf %12, %15 : vector<8x1xf32>
    %17 = math.rsqrt %16 : vector<8x1xf32>
    %18 = vector.broadcast %17 : vector<8x1xf32> to vector<8x32xf32>
    %19 = arith.mulf %14, %18 : vector<8x32xf32>
    %c0_6 = arith.constant 0 : index
    %c0_7 = arith.constant 0 : index
    %20 = vector.load %arg2[%c0_6, %c0_7] : memref<1x32xf32, #tpu.memory_space<vmem>>, vector<1x32xf32>
    %21 = vector.broadcast %20 : vector<1x32xf32> to vector<8x32xf32>
    %22 = arith.mulf %19, %21 : vector<8x32xf32>
    %c0_8 = arith.constant 0 : index
    %c0_9 = arith.constant 0 : index
    %23 = vector.load %arg3[%c0_8, %c0_9] : memref<1x32xf32, #tpu.memory_space<vmem>>, vector<1x32xf32>
    %24 = vector.broadcast %23 : vector<1x32xf32> to vector<8x32xf32>
    %25 = arith.addf %22, %24 : vector<8x32xf32>
    %26 = arith.truncf %25 : vector<8x32xf32> to vector<8x32xbf16>
    %c0_10 = arith.constant 0 : index
    %c0_11 = arith.constant 0 : index
    %27 = vector.load %arg4[%c0_10, %c0_11] : memref<32x96xbf16, #tpu.memory_space<vmem>>, vector<32x96xbf16>
    %cst_12 = arith.constant dense<0.000000e+00> : vector<8x96xf32>
    %28 = tpu.matmul %26, %27, %cst_12 {dimension_numbers = #tpu.dot_dimension_numbers<[1], [0], [0], [1], [0, 0, 1, 1], [], []>} : vector<8x32xbf16>, vector<32x96xbf16>, vector<8x96xf32> -> vector<8x96xf32>
    %c0_13 = arith.constant 0 : index
    %c0_14 = arith.constant 0 : index
    %29 = vector.load %arg5[%c0_13, %c0_14] : memref<1x96xf32, #tpu.memory_space<vmem>>, vector<1x96xf32>
    %30 = vector.broadcast %29 : vector<1x96xf32> to vector<8x96xf32>
    %31 = arith.addf %28, %30 : vector<8x96xf32>
    %32 = vector.extract_strided_slice %31 {offsets = [0, 0], sizes = [8, 32], strides = [1, 1]} : vector<8x96xf32> to vector<8x32xf32>
    %cst_15 = arith.constant 0.353553385 : f32
    %33 = vector.broadcast %cst_15 : f32 to vector<8x32xf32>
    %34 = arith.mulf %32, %33 : vector<8x32xf32>
    %35 = vector.extract_strided_slice %31 {offsets = [0, 32], sizes = [8, 32], strides = [1, 1]} : vector<8x96xf32> to vector<8x32xf32>
    %36 = vector.extract_strided_slice %31 {offsets = [0, 64], sizes = [8, 32], strides = [1, 1]} : vector<8x96xf32> to vector<8x32xf32>
    %37 = vector.extract_strided_slice %34 {offsets = [0, 0], sizes = [8, 8], strides = [1, 1]} : vector<8x32xf32> to vector<8x8xf32>
    %38 = arith.truncf %37 : vector<8x8xf32> to vector<8x8xbf16>
    %39 = vector.extract_strided_slice %35 {offsets = [0, 0], sizes = [8, 8], strides = [1, 1]} : vector<8x32xf32> to vector<8x8xf32>
    %40 = arith.truncf %39 : vector<8x8xf32> to vector<8x8xbf16>
    %41 = vector.extract_strided_slice %36 {offsets = [0, 0], sizes = [8, 8], strides = [1, 1]} : vector<8x32xf32> to vector<8x8xf32>
    %42 = arith.truncf %41 : vector<8x8xf32> to vector<8x8xbf16>
    %cst_16 = arith.constant dense<0.000000e+00> : vector<8x8xf32>
    %43 = tpu.matmul %38, %40, %cst_16 {dimension_numbers = #tpu.dot_dimension_numbers<[1], [1], [0], [0], [0, 0, 1, 0], [], []>} : vector<8x8xbf16>, vector<8x8xbf16>, vector<8x8xf32> -> vector<8x8xf32>
    %cst_17 = arith.constant dense<0xFF800000> : vector<8xf32>
    %44 = vector.multi_reduction <maximumf>, %43, %cst_17 [1] : vector<8x8xf32> to vector<8xf32>
    %45 = vector.shape_cast %44 : vector<8xf32> to vector<8x1xf32>
    %46 = vector.broadcast %45 : vector<8x1xf32> to vector<8x8xf32>
    %47 = arith.subf %43, %46 : vector<8x8xf32>
    %48 = math.exp %47 : vector<8x8xf32>
    %cst_18 = arith.constant dense<0.000000e+00> : vector<8xf32>
    %49 = vector.multi_reduction <add>, %48, %cst_18 [1] : vector<8x8xf32> to vector<8xf32>
    %50 = vector.shape_cast %49 : vector<8xf32> to vector<8x1xf32>
    %51 = tpu.reciprocal %50 {approx = true} : vector<8x1xf32> -> vector<8x1xf32>
    %52 = vector.broadcast %51 : vector<8x1xf32> to vector<8x8xf32>
    %53 = arith.mulf %48, %52 : vector<8x8xf32>
    %54 = arith.truncf %53 : vector<8x8xf32> to vector<8x8xbf16>
    %cst_19 = arith.constant dense<0.000000e+00> : vector<8x8xf32>
    %55 = tpu.matmul %54, %42, %cst_19 {dimension_numbers = #tpu.dot_dimension_numbers<[1], [0], [0], [1], [0, 0, 1, 1], [], []>} : vector<8x8xbf16>, vector<8x8xbf16>, vector<8x8xf32> -> vector<8x8xf32>
    %56 = vector.extract_strided_slice %34 {offsets = [0, 8], sizes = [8, 8], strides = [1, 1]} : vector<8x32xf32> to vector<8x8xf32>
    %57 = arith.truncf %56 : vector<8x8xf32> to vector<8x8xbf16>
    %58 = vector.extract_strided_slice %35 {offsets = [0, 8], sizes = [8, 8], strides = [1, 1]} : vector<8x32xf32> to vector<8x8xf32>
    %59 = arith.truncf %58 : vector<8x8xf32> to vector<8x8xbf16>
    %60 = vector.extract_strided_slice %36 {offsets = [0, 8], sizes = [8, 8], strides = [1, 1]} : vector<8x32xf32> to vector<8x8xf32>
    %61 = arith.truncf %60 : vector<8x8xf32> to vector<8x8xbf16>
    %cst_20 = arith.constant dense<0.000000e+00> : vector<8x8xf32>
    %62 = tpu.matmul %57, %59, %cst_20 {dimension_numbers = #tpu.dot_dimension_numbers<[1], [1], [0], [0], [0, 0, 1, 0], [], []>} : vector<8x8xbf16>, vector<8x8xbf16>, vector<8x8xf32> -> vector<8x8xf32>
    %cst_21 = arith.constant dense<0xFF800000> : vector<8xf32>
    %63 = vector.multi_reduction <maximumf>, %62, %cst_21 [1] : vector<8x8xf32> to vector<8xf32>
    %64 = vector.shape_cast %63 : vector<8xf32> to vector<8x1xf32>
    %65 = vector.broadcast %64 : vector<8x1xf32> to vector<8x8xf32>
    %66 = arith.subf %62, %65 : vector<8x8xf32>
    %67 = math.exp %66 : vector<8x8xf32>
    %cst_22 = arith.constant dense<0.000000e+00> : vector<8xf32>
    %68 = vector.multi_reduction <add>, %67, %cst_22 [1] : vector<8x8xf32> to vector<8xf32>
    %69 = vector.shape_cast %68 : vector<8xf32> to vector<8x1xf32>
    %70 = tpu.reciprocal %69 {approx = true} : vector<8x1xf32> -> vector<8x1xf32>
    %71 = vector.broadcast %70 : vector<8x1xf32> to vector<8x8xf32>
    %72 = arith.mulf %67, %71 : vector<8x8xf32>
    %73 = arith.truncf %72 : vector<8x8xf32> to vector<8x8xbf16>
    %cst_23 = arith.constant dense<0.000000e+00> : vector<8x8xf32>
    %74 = tpu.matmul %73, %61, %cst_23 {dimension_numbers = #tpu.dot_dimension_numbers<[1], [0], [0], [1], [0, 0, 1, 1], [], []>} : vector<8x8xbf16>, vector<8x8xbf16>, vector<8x8xf32> -> vector<8x8xf32>
    %75 = vector.extract_strided_slice %34 {offsets = [0, 16], sizes = [8, 8], strides = [1, 1]} : vector<8x32xf32> to vector<8x8xf32>
    %76 = arith.truncf %75 : vector<8x8xf32> to vector<8x8xbf16>
    %77 = vector.extract_strided_slice %35 {offsets = [0, 16], sizes = [8, 8], strides = [1, 1]} : vector<8x32xf32> to vector<8x8xf32>
    %78 = arith.truncf %77 : vector<8x8xf32> to vector<8x8xbf16>
    %79 = vector.extract_strided_slice %36 {offsets = [0, 16], sizes = [8, 8], strides = [1, 1]} : vector<8x32xf32> to vector<8x8xf32>
    %80 = arith.truncf %79 : vector<8x8xf32> to vector<8x8xbf16>
    %cst_24 = arith.constant dense<0.000000e+00> : vector<8x8xf32>
    %81 = tpu.matmul %76, %78, %cst_24 {dimension_numbers = #tpu.dot_dimension_numbers<[1], [1], [0], [0], [0, 0, 1, 0], [], []>} : vector<8x8xbf16>, vector<8x8xbf16>, vector<8x8xf32> -> vector<8x8xf32>
    %cst_25 = arith.constant dense<0xFF800000> : vector<8xf32>
    %82 = vector.multi_reduction <maximumf>, %81, %cst_25 [1] : vector<8x8xf32> to vector<8xf32>
    %83 = vector.shape_cast %82 : vector<8xf32> to vector<8x1xf32>
    %84 = vector.broadcast %83 : vector<8x1xf32> to vector<8x8xf32>
    %85 = arith.subf %81, %84 : vector<8x8xf32>
    %86 = math.exp %85 : vector<8x8xf32>
    %cst_26 = arith.constant dense<0.000000e+00> : vector<8xf32>
    %87 = vector.multi_reduction <add>, %86, %cst_26 [1] : vector<8x8xf32> to vector<8xf32>
    %88 = vector.shape_cast %87 : vector<8xf32> to vector<8x1xf32>
    %89 = tpu.reciprocal %88 {approx = true} : vector<8x1xf32> -> vector<8x1xf32>
    %90 = vector.broadcast %89 : vector<8x1xf32> to vector<8x8xf32>
    %91 = arith.mulf %86, %90 : vector<8x8xf32>
    %92 = arith.truncf %91 : vector<8x8xf32> to vector<8x8xbf16>
    %cst_27 = arith.constant dense<0.000000e+00> : vector<8x8xf32>
    %93 = tpu.matmul %92, %80, %cst_27 {dimension_numbers = #tpu.dot_dimension_numbers<[1], [0], [0], [1], [0, 0, 1, 1], [], []>} : vector<8x8xbf16>, vector<8x8xbf16>, vector<8x8xf32> -> vector<8x8xf32>
    %94 = vector.extract_strided_slice %34 {offsets = [0, 24], sizes = [8, 8], strides = [1, 1]} : vector<8x32xf32> to vector<8x8xf32>
    %95 = arith.truncf %94 : vector<8x8xf32> to vector<8x8xbf16>
    %96 = vector.extract_strided_slice %35 {offsets = [0, 24], sizes = [8, 8], strides = [1, 1]} : vector<8x32xf32> to vector<8x8xf32>
    %97 = arith.truncf %96 : vector<8x8xf32> to vector<8x8xbf16>
    %98 = vector.extract_strided_slice %36 {offsets = [0, 24], sizes = [8, 8], strides = [1, 1]} : vector<8x32xf32> to vector<8x8xf32>
    %99 = arith.truncf %98 : vector<8x8xf32> to vector<8x8xbf16>
    %cst_28 = arith.constant dense<0.000000e+00> : vector<8x8xf32>
    %100 = tpu.matmul %95, %97, %cst_28 {dimension_numbers = #tpu.dot_dimension_numbers<[1], [1], [0], [0], [0, 0, 1, 0], [], []>} : vector<8x8xbf16>, vector<8x8xbf16>, vector<8x8xf32> -> vector<8x8xf32>
    %cst_29 = arith.constant dense<0xFF800000> : vector<8xf32>
    %101 = vector.multi_reduction <maximumf>, %100, %cst_29 [1] : vector<8x8xf32> to vector<8xf32>
    %102 = vector.shape_cast %101 : vector<8xf32> to vector<8x1xf32>
    %103 = vector.broadcast %102 : vector<8x1xf32> to vector<8x8xf32>
    %104 = arith.subf %100, %103 : vector<8x8xf32>
    %105 = math.exp %104 : vector<8x8xf32>
    %cst_30 = arith.constant dense<0.000000e+00> : vector<8xf32>
    %106 = vector.multi_reduction <add>, %105, %cst_30 [1] : vector<8x8xf32> to vector<8xf32>
    %107 = vector.shape_cast %106 : vector<8xf32> to vector<8x1xf32>
    %108 = tpu.reciprocal %107 {approx = true} : vector<8x1xf32> -> vector<8x1xf32>
    %109 = vector.broadcast %108 : vector<8x1xf32> to vector<8x8xf32>
    %110 = arith.mulf %105, %109 : vector<8x8xf32>
    %111 = arith.truncf %110 : vector<8x8xf32> to vector<8x8xbf16>
    %cst_31 = arith.constant dense<0.000000e+00> : vector<8x8xf32>
    %112 = tpu.matmul %111, %99, %cst_31 {dimension_numbers = #tpu.dot_dimension_numbers<[1], [0], [0], [1], [0, 0, 1, 1], [], []>} : vector<8x8xbf16>, vector<8x8xbf16>, vector<8x8xf32> -> vector<8x8xf32>
    %113 = tpu.concatenate %55, %74, %93, %112 in 1 : vector<8x8xf32>, vector<8x8xf32>, vector<8x8xf32>, vector<8x8xf32> -> vector<8x32xf32>
    %114 = arith.truncf %113 : vector<8x32xf32> to vector<8x32xbf16>
    %c0_32 = arith.constant 0 : index
    %c0_33 = arith.constant 0 : index
    %115 = vector.load %arg6[%c0_32, %c0_33] : memref<32x32xbf16, #tpu.memory_space<vmem>>, vector<32x32xbf16>
    %cst_34 = arith.constant dense<0.000000e+00> : vector<8x32xf32>
    %116 = tpu.matmul %114, %115, %cst_34 {dimension_numbers = #tpu.dot_dimension_numbers<[1], [0], [0], [1], [0, 0, 1, 1], [], []>} : vector<8x32xbf16>, vector<32x32xbf16>, vector<8x32xf32> -> vector<8x32xf32>
    %c0_35 = arith.constant 0 : index
    %c0_36 = arith.constant 0 : index
    %117 = vector.load %arg7[%c0_35, %c0_36] : memref<1x32xf32, #tpu.memory_space<vmem>>, vector<1x32xf32>
    %118 = vector.broadcast %117 : vector<1x32xf32> to vector<8x32xf32>
    %119 = arith.addf %116, %118 : vector<8x32xf32>
    %120 = arith.addf %1, %119 : vector<8x32xf32>
    %c0_37 = arith.constant 0 : index
    %c0_38 = arith.constant 0 : index
    %c0_39 = arith.constant 0 : index
    %121 = vector.load %arg8[%c0_37, %c0_38, %c0_39] : memref<1x8x32xf32, #tpu.memory_space<vmem>>, vector<1x8x32xf32>
    %122 = vector.shape_cast %121 : vector<1x8x32xf32> to vector<8x32xf32>
    %123 = vector.shape_cast %120 : vector<8x32xf32> to vector<1x8x32xf32>
    tpu.vector_store %arg8[%c0_37, %c0_38, %c0_39], %123 {strides = array<i32>} : memref<1x8x32xf32, #tpu.memory_space<vmem>>, vector<1x8x32xf32>,
    return
  }
  func.func @transform_0(%arg0: i32) -> (i32, i32, i32) {
    %c0_i32 = arith.constant 0 : i32
    %c0_i32_0 = arith.constant 0 : i32
    %c0_i32_1 = arith.constant 0 : i32
    return %arg0, %c0_i32, %c0_i32_0 : i32, i32, i32
  }
  func.func @transform_1(%arg0: i32) -> (i32, i32) {
    %c0_i32 = arith.constant 0 : i32
    %c0_i32_0 = arith.constant 0 : i32
    %c0_i32_1 = arith.constant 0 : i32
    return %c0_i32, %c0_i32_0 : i32, i32
  }
  func.func @transform_2(%arg0: i32) -> (i32, i32) {
    %c0_i32 = arith.constant 0 : i32
    %c0_i32_0 = arith.constant 0 : i32
    %c0_i32_1 = arith.constant 0 : i32
    return %c0_i32, %c0_i32_0 : i32, i32
  }
  func.func @transform_3(%arg0: i32) -> (i32, i32) {
    %c0_i32 = arith.constant 0 : i32
    %c0_i32_0 = arith.constant 0 : i32
    %c0_i32_1 = arith.constant 0 : i32
    return %c0_i32, %c0_i32_0 : i32, i32
  }
  func.func @transform_4(%arg0: i32) -> (i32, i32) {
    %c0_i32 = arith.constant 0 : i32
    %c0_i32_0 = arith.constant 0 : i32
    %c0_i32_1 = arith.constant 0 : i32
    return %c0_i32, %c0_i32_0 : i32, i32
  }
  func.func @transform_5(%arg0: i32) -> (i32, i32) {
    %c0_i32 = arith.constant 0 : i32
    %c0_i32_0 = arith.constant 0 : i32
    %c0_i32_1 = arith.constant 0 : i32
    return %c0_i32, %c0_i32_0 : i32, i32
  }
  func.func @transform_6(%arg0: i32) -> (i32, i32) {
    %c0_i32 = arith.constant 0 : i32
    %c0_i32_0 = arith.constant 0 : i32
    %c0_i32_1 = arith.constant 0 : i32
    return %c0_i32, %c0_i32_0 : i32, i32
  }
  func.func @transform_7(%arg0: i32) -> (i32, i32, i32) {
    %c0_i32 = arith.constant 0 : i32
    %c0_i32_0 = arith.constant 0 : i32
    %c0_i32_1 = arith.constant 0 : i32
    return %arg0, %c0_i32, %c0_i32_0 : i32, i32, i32
  }
}

</mosaic_0001>

<llo_original>
// kernel: _lambda_.3
$region0: #{_lambda_.3}
  #allocation0 [shape = 'u32[]', space=smem, size = 0x4, offset = 0x4, fixed_abs, tag = 'smem constant byte address 0x4 - core index']
  #allocation1 [shape = 'u32[72,128]{1,0:T(1,128)}', space=vmem, size = 0x9000, scoped, tag = 'internal scratch']
  #allocation2 [shape = 'f32[16,32]{1,0:T(8,128)}', space=vmem, size = 0x2000, scoped, tag = 'scratch operand']
  #allocation3 [shape = 'f32[16,32]{1,0:T(8,128)}', space=vmem, size = 0x2000, scoped, tag = 'scratch operand']
  %s0 = inlined_call_operand.vmem [shape: f32[16,32], index: 0, kind: input, shape index: {}, may-alias: {0,7}]
  %s1 = inlined_call_operand.vmem [shape: f32[1,32], index: 1, kind: input, shape index: {}]
  %s2 = inlined_call_operand.vmem [shape: f32[1,32], index: 2, kind: input, shape index: {}]
  %s3 = inlined_call_operand.vmem [shape: bf16[32,128], index: 3, kind: input, shape index: {}]
  %s4 = inlined_call_operand.vmem [shape: f32[1,128], index: 4, kind: input, shape index: {}]
  %s5 = inlined_call_operand.vmem [shape: bf16[128,32], index: 5, kind: input, shape index: {}]
  %s6 = inlined_call_operand.vmem [shape: f32[1,32], index: 6, kind: input, shape index: {}]
  %s7 = inlined_call_operand.vmem [shape: f32[16,32], index: 7, kind: output, shape index: {}, may-alias: {0,7}]
  %s8 = sld [smem:[#allocation0]]
  $region46: #{_lambda_.3} parent=0
    _
  %s10 = ssub.s32 1, %s8
  %s11 = scalar_select 0, %s10, %s8
  // Predicated region
  $region2: #{_lambda_.3} parent=0 // pred_check
    _
  $region3: #{_lambda_.3} parent=0 // pred_check_branch
    %13 = sbr.rel (0) target = $region5
  $region4: #{_lambda_.3} parent=0 // pred_region
    _
  $region5: #{_lambda_.3} parent=0 // pred_fallthru
    _
  // Predicated region
  $region6: #{_lambda_.3} parent=0 // pred_check
    _
  $region7: #{_lambda_.3} parent=0 // pred_check_branch
    %15 = sbr.rel (0) target = $region9
  $region8: #{_lambda_.3} parent=0 // pred_region
    _
  $region9: #{_lambda_.3} parent=0 // pred_fallthru
    _
  // Predicated region
  $region10: #{_lambda_.3} parent=0 // pred_check
    _
  $region11: #{_lambda_.3} parent=0 // pred_check_branch
    %17 = sbr.rel (0) target = $region13
  $region12: #{_lambda_.3} parent=0 // pred_region
    _
  $region13: #{_lambda_.3} parent=0 // pred_fallthru
    _
  // Predicated region
  $region14: #{_lambda_.3} parent=0 // pred_check
    _
  $region15: #{_lambda_.3} parent=0 // pred_check_branch
    %19 = sbr.rel (0) target = $region17
  $region16: #{_lambda_.3} parent=0 // pred_region
    _
  $region17: #{_lambda_.3} parent=0 // pred_fallthru
    _
  // Predicated region
  $region18: #{_lambda_.3} parent=0 // pred_check
    _
  $region19: #{_lambda_.3} parent=0 // pred_check_branch
    %21 = sbr.rel (0) target = $region21
  $region20: #{_lambda_.3} parent=0 // pred_region
    _
  $region21: #{_lambda_.3} parent=0 // pred_fallthru
    _
  // Predicated region
  $region22: #{_lambda_.3} parent=0 // pred_check
    _
  $region23: #{_lambda_.3} parent=0 // pred_check_branch
    %23 = sbr.rel (0) target = $region25
  $region24: #{_lambda_.3} parent=0 // pred_region
    _
  $region25: #{_lambda_.3} parent=0 // pred_fallthru
    _
  // Predicated region
  $region26: #{_lambda_.3} parent=0 // pred_check
    _
  $region27: #{_lambda_.3} parent=0 // pred_check_branch
    %25 = sbr.rel (0) target = $region29
  $region28: #{_lambda_.3} parent=0 // pred_region
    _
  $region29: #{_lambda_.3} parent=0 // pred_fallthru
    _
  %p27 = scmp.eq.s32.totalorder 0, 0
  // Predicated region
  $region30: #{_lambda_.3} parent=0 // pred_check
    %p28 = pneg %p27
  $region31: #{_lambda_.3} parent=0 // pred_check_branch
    %30 = sbr.rel (%p28) target = $region33
  $region32: #{_lambda_.3} parent=0 // pred_region
    %v31 = vld [vmem:[%s0] sm:$0xff]
    %v32 = vld [vmem:[%s0 + $0x8] sm:$0xff]
    %vm33 = vcmask 261120
    %v34 = vsel %vm33, %v31, 0.0
    %35 = vadd.xlane.f32.xlu0 %v34
    %v36 = vpop.xlane.xlu0 %35
    %v37 = vsel %vm33, %v32, 0.0
    %38 = vadd.xlane.f32.xlu0 %v37
    %v39 = vpop.xlane.xlu0 %38
    %v40 = vrcp.pop 32.0
    %v41 = vmul.f32 32.0, %v40
    %v42 = vsub.f32 1.0, %v41
    %v43 = vmul.f32 %v40, %v42
    %v44 = vadd.f32 %v40, %v43
    %vm45 = vweird.f32 %v40
    %v46 = vsel %vm45, %v40, %v44
    %v47 = vmul.f32 %v36, %v46
    %v48 = vmul.f32 %v39, %v46
    %v49 = vsub.f32 %v31, %v47
    %v50 = vsub.f32 %v32, %v48
    %v51 = vmul.f32 %v49, %v49
    %v52 = vmul.f32 %v50, %v50
    %v53 = vsel %vm33, %v51, 0.0
    %54 = vadd.xlane.f32.xlu0 %v53
    %v55 = vpop.xlane.xlu0 %54
    %v56 = vsel %vm33, %v52, 0.0
    %57 = vadd.xlane.f32.xlu0 %v56
    %v58 = vpop.xlane.xlu0 %57
    %v59 = vmul.f32 %v55, %v46
    %v60 = vmul.f32 %v58, %v46
    %v61 = vadd.f32 %v59, 1e-05
    %v62 = vadd.f32 %v60, 1e-05
    %v63 = vrsqrt.pop %v61
    %v64 = vmul.f32 %v63, %v61
    %v65 = vmul.f32 %v64, %v63
    %v66 = vmul.f32 0.5, %v65
    %v67 = vsub.f32 1.5, %v66
    %v68 = vmul.f32 %v63, %v67
    %vm69 = vweird.f32 %v61
    %vm70 = vweird.f32 %v63
    %vm71 = vmor %vm69, %vm70
    %v72 = vsel %vm71, %v63, %v68
    %v73 = vrsqrt.pop %v62
    %v74 = vmul.f32 %v73, %v62
    %v75 = vmul.f32 %v74, %v73
    %v76 = vmul.f32 0.5, %v75
    %v77 = vsub.f32 1.5, %v76
    %v78 = vmul.f32 %v73, %v77
    %vm79 = vweird.f32 %v62
    %vm80 = vweird.f32 %v73
    %vm81 = vmor %vm79, %vm80
    %v82 = vsel %vm81, %v73, %v78
    %v83 = vmul.f32 %v49, %v72
    %v84 = vmul.f32 %v50, %v82
    %v85 = vld [vmem:[%s1] sm:$0x1]
    %v87 = vperm.slane %v85, 0
    %v89 = vmul.f32 %v83, %v87
    %v90 = vmul.f32 %v84, %v87
    %v91 = vld [vmem:[%s2] sm:$0x1]
    %v93 = vperm.slane %v91, 0
    %v95 = vadd.f32 %v89, %v93
    %v96 = vadd.f32 %v90, %v93
    %97 = vst.msk [vmem:[#allocation2] sm:$0xff] %vm33, %v95
    %98 = vst.msk [vmem:[#allocation2 + $0x8] sm:$0xff] %vm33, %v96
    %99 = vst.msk [vmem:[#allocation3] sm:$0xff] %vm33, 0.0
    %100 = vst.msk [vmem:[#allocation3 + $0x8] sm:$0xff] %vm33, 0.0
  $region33: #{_lambda_.3} parent=0 // pred_fallthru
    _
  %v101 = vld [vmem:[#allocation2] sm:$0xff]
  %v102 = vld [vmem:[#allocation2 + $0x8] sm:$0xff]
  %v103 = vpack.c.bf16 %v102, %v101
  %v104 = vld [vmem:[%s3] sm:$0xf]
  %v105 = vld [vmem:[%s3 + $0x4] sm:$0xf]
  %v106 = vld [vmem:[%s3 + $0x8] sm:$0xf]
  %v107 = vld [vmem:[%s3 + $0xc] sm:$0xf]
  %v108 = vld [vmem:[%s4] sm:$0x1]
  %v110 = vperm.slane %v108, 0
  %v116 = vunpack.c.l.b16 %v104
  %v117 = vunpack.c.l.b16 %v105
  %v118 = vunpack.c.l.b16 %v106
  %v119 = vunpack.c.l.b16 %v107
  %v120 = vpack.c.b16 %v117, %v116
  %v121 = vpack.c.b16 %v119, %v118
  %vm124 = vcmask 261120
  %v126 = vsel %vm124, %v103, 0
  %128 = vmatpush.bf16.msra.mxu0 0
  %129 = vmatpush.bf16.msra.mxu0 0
  %130 = vmatpush.bf16.msra.mxu0 0
  %131 = vmatpush.bf16.msra.mxu0 0
  %132 = vmatpush.bf16.msra.mxu0 0
  %133 = vmatpush.bf16.msra.mxu0 0
  %134 = vmatpush.bf16.msra.mxu0 %v121
  %135 = vmatpush.bf16.msra.mxu0 %v120
  %136 = vmatmul.bf16.gmra.mxu0 %v126
  %v137 = vpop.f32.mrf.mxu0
  %v138 = vadd.f32 %v110, %v137
  %v139 = vpop.f32.mrf.mxu0
  %v140 = vadd.f32 %v110, %v139
  %141 = vdwg.mxu0
  %v142 = vmul.f32 %v138, 1.702
  %v143 = vmul.f32 %v140, 1.702
  %v144 = vxor.u32 %v142, 2147483648
  %v145 = vxor.u32 %v143, 2147483648
  %v146 = vmul.f32 %v144, 1.442695
  %v147 = vpow.pop %v146
  %v148 = vmul.f32 %v145, 1.442695
  %v149 = vpow.pop %v148
  %v150 = vadd.f32 %v147, 1.0
  %v151 = vadd.f32 %v149, 1.0
  %v152 = vrcp.pop %v150
  %v153 = vmul.f32 %v150, %v152
  %v154 = vsub.f32 1.0, %v153
  %v155 = vmul.f32 %v152, %v154
  %v156 = vadd.f32 %v152, %v155
  %vm157 = vweird.f32 %v150
  %vm158 = vweird.f32 %v152
  %vm159 = vmor %vm157, %vm158
  %v160 = vsel %vm159, %v152, %v156
  %v161 = vand.u32 2147483647, %v150
  %vm162 = vcmp.eq.f32.partialorder %v161, 8.507059e+37
  %v163 = vand.u32 %v150, 2147483648
  %v164 = vor.u32 1.1754944e-38, %v163
  %v165 = vsel %vm162, %v164, %v160
  %v166 = vmul.f32 1.0, %v165
  %v167 = vrcp.pop %v151
  %v168 = vmul.f32 %v151, %v167
  %v169 = vsub.f32 1.0, %v168
  %v170 = vmul.f32 %v167, %v169
  %v171 = vadd.f32 %v167, %v170
  %vm172 = vweird.f32 %v151
  %vm173 = vweird.f32 %v167
  %vm174 = vmor %vm172, %vm173
  %v175 = vsel %vm174, %v167, %v171
  %v176 = vand.u32 2147483647, %v151
  %vm177 = vcmp.eq.f32.partialorder %v176, 8.507059e+37
  %v178 = vand.u32 %v151, 2147483648
  %v179 = vor.u32 1.1754944e-38, %v178
  %v180 = vsel %vm177, %v179, %v175
  %v181 = vmul.f32 1.0, %v180
  %v182 = vmul.f32 %v138, %v166
  %v183 = vmul.f32 %v140, %v181
  %v184 = vld [vmem:[#allocation3] sm:$0xff]
  %v185 = vld [vmem:[#allocation3 + $0x8] sm:$0xff]
  %v186 = vpack.c.bf16 %v183, %v182
  %v187 = vld [vmem:[%s5] sm:$0xf]
  %v188 = vld [vmem:[%s5 + $0x4] sm:$0xf]
  %v189 = vld [vmem:[%s5 + $0x8] sm:$0xf]
  %v190 = vld [vmem:[%s5 + $0xc] sm:$0xf]
  %v191 = vld [vmem:[%s5 + $0x10] sm:$0xf]
  %v192 = vld [vmem:[%s5 + $0x14] sm:$0xf]
  %v193 = vld [vmem:[%s5 + $0x18] sm:$0xf]
  %v194 = vld [vmem:[%s5 + $0x1c] sm:$0xf]
  %v195 = vld [vmem:[%s5 + $0x20] sm:$0xf]
  %v196 = vld [vmem:[%s5 + $0x24] sm:$0xf]
  %v197 = vld [vmem:[%s5 + $0x28] sm:$0xf]
  %v198 = vld [vmem:[%s5 + $0x2c] sm:$0xf]
  %v199 = vld [vmem:[%s5 + $0x30] sm:$0xf]
  %v200 = vld [vmem:[%s5 + $0x34] sm:$0xf]
  %v201 = vld [vmem:[%s5 + $0x38] sm:$0xf]
  %v202 = vld [vmem:[%s5 + $0x3c] sm:$0xf]
  %v219 = vunpack.c.l.b16 %v187
  %v220 = vunpack.c.l.b16 %v188
  %v221 = vunpack.c.l.b16 %v189
  %v222 = vunpack.c.l.b16 %v190
  %v223 = vunpack.c.l.b16 %v191
  %v224 = vunpack.c.l.b16 %v192
  %v225 = vunpack.c.l.b16 %v193
  %v226 = vunpack.c.l.b16 %v194
  %v227 = vunpack.c.l.b16 %v195
  %v228 = vunpack.c.l.b16 %v196
  %v229 = vunpack.c.l.b16 %v197
  %v230 = vunpack.c.l.b16 %v198
  %v231 = vunpack.c.l.b16 %v199
  %v232 = vunpack.c.l.b16 %v200
  %v233 = vunpack.c.l.b16 %v201
  %v234 = vunpack.c.l.b16 %v202
  %v235 = vpack.c.b16 %v220, %v219
  %v236 = vpack.c.b16 %v222, %v221
  %v237 = vpack.c.b16 %v224, %v223
  %v238 = vpack.c.b16 %v226, %v225
  %v239 = vpack.c.b16 %v228, %v227
  %v240 = vpack.c.b16 %v230, %v229
  %v241 = vpack.c.b16 %v232, %v231
  %v242 = vpack.c.b16 %v234, %v233
  %251 = vmatpush.bf16.msra.mxu0 %v242
  %252 = vmatpush.bf16.msra.mxu0 %v241
  %253 = vmatpush.bf16.msra.mxu0 %v240
  %254 = vmatpush.bf16.msra.mxu0 %v239
  %255 = vmatpush.bf16.msra.mxu0 %v238
  %256 = vmatpush.bf16.msra.mxu0 %v237
  %257 = vmatpush.bf16.msra.mxu0 %v236
  %258 = vmatpush.bf16.msra.mxu0 %v235
  %259 = vmatmul.bf16.gmra.mxu0 %v186
  %v260 = vpop.f32.mrf.mxu0
  %v261 = vadd.f32 0.0, %v260
  %v262 = vpop.f32.mrf.mxu0
  %v263 = vadd.f32 0.0, %v262
  %264 = vdwg.mxu0
  %v265 = vadd.f32 %v184, %v261
  %v266 = vadd.f32 %v185, %v263
  %267 = vst.msk [vmem:[#allocation3] sm:$0xff] %vm124, %v265
  %268 = vst.msk [vmem:[#allocation3 + $0x8] sm:$0xff] %vm124, %v266
  // Predicated region
  $region34: #{_lambda_.3} parent=0 // pred_check
    %p269 = pneg %p27
  $region35: #{_lambda_.3} parent=0 // pred_check_branch
    %271 = sbr.rel (%p269) target = $region37
  $region36: #{_lambda_.3} parent=0 // pred_region
    %v272 = vld [vmem:[%s0] sm:$0xff]
    %v273 = vld [vmem:[%s0 + $0x8] sm:$0xff]
    %v274 = vld [vmem:[#allocation3] sm:$0xff]
    %v275 = vld [vmem:[#allocation3 + $0x8] sm:$0xff]
    %v276 = vadd.f32 %v272, %v274
    %v277 = vadd.f32 %v273, %v275
    %v278 = vld [vmem:[%s6] sm:$0x1]
    %v280 = vperm.slane %v278, 0
    %v282 = vadd.f32 %v276, %v280
    %v283 = vadd.f32 %v277, %v280
    %284 = vst.msk [vmem:[%s7] sm:$0xff] %vm124, %v282
    %285 = vst.msk [vmem:[%s7 + $0x8] sm:$0xff] %vm124, %v283
  $region37: #{_lambda_.3} parent=0 // pred_fallthru
    _
  // Predicated region
  $region38: #{_lambda_.3} parent=0 // pred_check
    _
  $region39: #{_lambda_.3} parent=0 // pred_check_branch
    %287 = sbr.rel (0) target = $region41
  $region40: #{_lambda_.3} parent=0 // pred_region
    _
  $region41: #{_lambda_.3} parent=0 // pred_fallthru
    _
  // Predicated region
  $region42: #{_lambda_.3} parent=0 // pred_check
    _
  $region43: #{_lambda_.3} parent=0 // pred_check_branch
    %289 = sbr.rel (0) target = $region45
  $region44: #{_lambda_.3} parent=0 // pred_region
    _
  $region45: #{_lambda_.3} parent=0 // pred_fallthru
    _

// kernel: _lambda_.2
$region0: #{_lambda_.2}
  #allocation0 [shape = 'u32[]', space=smem, size = 0x4, offset = 0x4, fixed_abs, tag = 'smem constant byte address 0x4 - core index']
  #allocation1 [shape = 'u32[72,128]{1,0:T(1,128)}', space=vmem, size = 0x9000, scoped, tag = 'internal scratch']
  %s0 = inlined_call_operand.vmem [shape: f32[2,8,32], index: 0, kind: input, shape index: {}, may-alias: {0,7}]
  %s1 = inlined_call_operand.hbm [shape: f32[1,32], index: 1, kind: input, shape index: {}]
  %s2 = inlined_call_operand.hbm [shape: f32[1,32], index: 2, kind: input, shape index: {}]
  %s3 = inlined_call_operand.hbm [shape: bf16[32,96], index: 3, kind: input, shape index: {}]
  %s4 = inlined_call_operand.hbm [shape: f32[1,96], index: 4, kind: input, shape index: {}]
  %s5 = inlined_call_operand.vmem [shape: bf16[32,32], index: 5, kind: input, shape index: {}]
  %s6 = inlined_call_operand.hbm [shape: f32[1,32], index: 6, kind: input, shape index: {}]
  %s7 = inlined_call_operand.vmem [shape: f32[2,8,32], index: 7, kind: output, shape index: {}, may-alias: {0,7}]
  %s8 = sld [smem:[#allocation0]]
  $region81: #{_lambda_.2} parent=0
    _
  %s10 = ssub.s32 1, %s8
  %s11 = scalar_select 0, %s10, %s8
  $region1: #{_lambda_.2} parent=0
    #allocation2 [shape = 'u8[512]{0}', space=vmem, size = 0x400, scoped, tag = 'input window, operand 1, single buffered']
    #allocation3 [shape = 's32[2]{0}', space=sflag, size = 0x8, scoped, tag = 'scoped memory for _lambda_.2']
    #allocation4 [shape = 'u8[512]{0}', space=vmem, size = 0x400, scoped, tag = 'input window, operand 2, single buffered']
    #allocation5 [shape = 's32[1]{0}', space=sflag, size = 0x4, scoped, tag = 'scoped memory for _lambda_.2']
    #allocation6 [shape = 'u8[8192]{0}', space=vmem, size = 0x2000, scoped, tag = 'input window, operand 3, single buffered']
    #allocation7 [shape = 'u8[512]{0}', space=vmem, size = 0x400, scoped, tag = 'input window, operand 4, single buffered']
    #allocation8 [shape = 's32[1]{0}', space=sflag, size = 0x4, scoped, tag = 'scoped memory for _lambda_.2']
    #allocation9 [shape = 'u8[512]{0}', space=vmem, size = 0x400, scoped, tag = 'input window, operand 6, single buffered']
    %12 = vsyncpa [#allocation3], 0
    %13 = vsyncpa [#allocation5], 0
    %14 = vsyncpa [#allocation8], 0
    loop: start=0, step=1, limit=4
    $region2: #{_lambda_.2} parent=1 // loop_pre_header
      _
    $region3: #{_lambda_.2} parent=1 // loop_header
      %s16 = sphi 0, %s20
      %p17 = scmp.ge.s32.totalorder %s16, 4
      %s26 = sphi 0, %s28
      %s29 = sphi 0, %s26
      %s30 = sphi 0, %s29
      %s46 = sphi 0, %s30
      %s50 = sphi 0, %s50
      %s52 = sphi 0, %s50
      %s53 = sphi 0, %s52
      %s67 = sphi 0, %s53
      %s71 = sphi 0, %s71
      %s73 = sphi 0, %s71
      %s74 = sphi 0, %s73
      %s88 = sphi 0, %s74
      %s92 = sphi 0, %s92
      %s94 = sphi 0, %s92
      %s95 = sphi 0, %s94
      %s109 = sphi 0, %s95
      %s113 = sphi 0, %s113
      %s115 = sphi 0, %s113
      %s116 = sphi 0, %s115
      %s130 = sphi 0, %s116
      %s134 = sphi 0, %s134
      %s136 = sphi 0, %s134
      %s137 = sphi 0, %s136
      %s151 = sphi 0, %s137
      %s155 = sphi 0, %s155
      %s157 = sphi 0, %s155
      %s158 = sphi 0, %s157
      %s172 = sphi 0, %s158
      %s178 = sphi 0, %s180
      %s181 = sphi 0, %s178
      %s182 = sphi 0, %s181
      %s198 = sphi 0, %s182
    $region4: #{_lambda_.2} parent=1 // loop_header_branch
      %19 = sbr.rel (%p17) target = $region8
    $region5: #{_lambda_.2} parent=1 // loop_body
      %s21 = ssub.s32 %s16, 1
      %s22 = ssub.s32 %s16, 2
      %s23 = sadd.s32 %s16, 1
      %s24 = ssub.s32 %s16, %s23
      %p25 = scmp.eq.s32.totalorder %s24, 0
      %s27 = sadd.s32 %s26, 1
      %s28 = scalar_select %p25, %s26, %s27
      %p31 = pneg %p25
      %p32 = scmp.eq.s32.totalorder %s16, 1
      %p33 = por %p31, %p32
      %p34 = scmp.ne.s32.totalorder %s26, %s29
      %p35 = scmp.eq.s32.totalorder %s16, 0
      %p36 = por %p34, %p35
      %p37 = scmp.ne.s32.totalorder %s26, %s29
      %p38 = scmp.eq.s32.totalorder %s21, 1
      %p39 = por %p37, %p38
      %p40 = scmp.ne.s32.totalorder %s29, %s30
      %p41 = scmp.eq.s32.totalorder %s21, 0
      %p42 = por %p40, %p41
      %p43 = scmp.ne.s32.totalorder %s29, %s30
      %p44 = scmp.eq.s32.totalorder %s22, 1
      %p45 = por %p43, %p44
      %p47 = scmp.ne.s32.totalorder %s30, %s46
      %p48 = scmp.eq.s32.totalorder %s22, 0
      %p49 = por %p47, %p48
      %s51 = sadd.s32 %s50, 1
      %p54 = scmp.eq.s32.totalorder %s16, 1
      %p55 = scmp.ne.s32.totalorder %s50, %s52
      %p56 = scmp.eq.s32.totalorder %s16, 0
      %p57 = por %p55, %p56
      %p58 = scmp.ne.s32.totalorder %s50, %s52
      %p59 = scmp.eq.s32.totalorder %s21, 1
      %p60 = por %p58, %p59
      %p61 = scmp.ne.s32.totalorder %s52, %s53
      %p62 = scmp.eq.s32.totalorder %s21, 0
      %p63 = por %p61, %p62
      %p64 = scmp.ne.s32.totalorder %s52, %s53
      %p65 = scmp.eq.s32.totalorder %s22, 1
      %p66 = por %p64, %p65
      %p68 = scmp.ne.s32.totalorder %s53, %s67
      %p69 = scmp.eq.s32.totalorder %s22, 0
      %p70 = por %p68, %p69
      %s72 = sadd.s32 %s71, 1
      %p75 = scmp.eq.s32.totalorder %s16, 1
      %p76 = scmp.ne.s32.totalorder %s71, %s73
      %p77 = scmp.eq.s32.totalorder %s16, 0
      %p78 = por %p76, %p77
      %p79 = scmp.ne.s32.totalorder %s71, %s73
      %p80 = scmp.eq.s32.totalorder %s21, 1
      %p81 = por %p79, %p80
      %p82 = scmp.ne.s32.totalorder %s73, %s74
      %p83 = scmp.eq.s32.totalorder %s21, 0
      %p84 = por %p82, %p83
      %p85 = scmp.ne.s32.totalorder %s73, %s74
      %p86 = scmp.eq.s32.totalorder %s22, 1
      %p87 = por %p85, %p86
      %p89 = scmp.ne.s32.totalorder %s74, %s88
      %p90 = scmp.eq.s32.totalorder %s22, 0
      %p91 = por %p89, %p90
      %s93 = sadd.s32 %s92, 1
      %p96 = scmp.eq.s32.totalorder %s16, 1
      %p97 = scmp.ne.s32.totalorder %s92, %s94
      %p98 = scmp.eq.s32.totalorder %s16, 0
      %p99 = por %p97, %p98
      %p100 = scmp.ne.s32.totalorder %s92, %s94
      %p101 = scmp.eq.s32.totalorder %s21, 1
      %p102 = por %p100, %p101
      %p103 = scmp.ne.s32.totalorder %s94, %s95
      %p104 = scmp.eq.s32.totalorder %s21, 0
      %p105 = por %p103, %p104
      %p106 = scmp.ne.s32.totalorder %s94, %s95
      %p107 = scmp.eq.s32.totalorder %s22, 1
      %p108 = por %p106, %p107
      %p110 = scmp.ne.s32.totalorder %s95, %s109
      %p111 = scmp.eq.s32.totalorder %s22, 0
      %p112 = por %p110, %p111
      %s114 = sadd.s32 %s113, 1
      %p117 = scmp.eq.s32.totalorder %s16, 1
      %p118 = scmp.ne.s32.totalorder %s113, %s115
      %p119 = scmp.eq.s32.totalorder %s16, 0
      %p120 = por %p118, %p119
      %p121 = scmp.ne.s32.totalorder %s113, %s115
      %p122 = scmp.eq.s32.totalorder %s21, 1
      %p123 = por %p121, %p122
      %p124 = scmp.ne.s32.totalorder %s115, %s116
      %p125 = scmp.eq.s32.totalorder %s21, 0
      %p126 = por %p124, %p125
      %p127 = scmp.ne.s32.totalorder %s115, %s116
      %p128 = scmp.eq.s32.totalorder %s22, 1
      %p129 = por %p127, %p128
      %p131 = scmp.ne.s32.totalorder %s116, %s130
      %p132 = scmp.eq.s32.totalorder %s22, 0
      %p133 = por %p131, %p132
      %s135 = sadd.s32 %s134, 1
      %p138 = scmp.eq.s32.totalorder %s16, 1
      %p139 = scmp.ne.s32.totalorder %s134, %s136
      %p140 = scmp.eq.s32.totalorder %s16, 0
      %p141 = por %p139, %p140
      %p142 = scmp.ne.s32.totalorder %s134, %s136
      %p143 = scmp.eq.s32.totalorder %s21, 1
      %p144 = por %p142, %p143
      %p145 = scmp.ne.s32.totalorder %s136, %s137
      %p146 = scmp.eq.s32.totalorder %s21, 0
      %p147 = por %p145, %p146
      %p148 = scmp.ne.s32.totalorder %s136, %s137
      %p149 = scmp.eq.s32.totalorder %s22, 1
      %p150 = por %p148, %p149
      %p152 = scmp.ne.s32.totalorder %s137, %s151
      %p153 = scmp.eq.s32.totalorder %s22, 0
      %p154 = por %p152, %p153
      %s156 = sadd.s32 %s155, 1
      %p159 = scmp.eq.s32.totalorder %s16, 1
      %p160 = scmp.ne.s32.totalorder %s155, %s157
      %p161 = scmp.eq.s32.totalorder %s16, 0
      %p162 = por %p160, %p161
      %p163 = scmp.ne.s32.totalorder %s155, %s157
      %p164 = scmp.eq.s32.totalorder %s21, 1
      %p165 = por %p163, %p164
      %p166 = scmp.ne.s32.totalorder %s157, %s158
      %p167 = scmp.eq.s32.totalorder %s21, 0
      %p168 = por %p166, %p167
      %p169 = scmp.ne.s32.totalorder %s157, %s158
      %p170 = scmp.eq.s32.totalorder %s22, 1
      %p171 = por %p169, %p170
      %p173 = scmp.ne.s32.totalorder %s158, %s172
      %p174 = scmp.eq.s32.totalorder %s22, 0
      %p175 = por %p173, %p174
      %s176 = ssub.s32 %s16, %s23
      %p177 = scmp.eq.s32.totalorder %s176, 0
      %s179 = sadd.s32 %s178, 1
      %s180 = scalar_select %p177, %s178, %s179
      %p183 = pneg %p177
      %p184 = scmp.eq.s32.totalorder %s16, 1
      %p185 = por %p183, %p184
      %p186 = scmp.ne.s32.totalorder %s178, %s181
      %p187 = scmp.eq.s32.totalorder %s16, 0
      %p188 = por %p186, %p187
      %p189 = scmp.ne.s32.totalorder %s178, %s181
      %p190 = scmp.eq.s32.totalorder %s21, 1
      %p191 = por %p189, %p190
      %p192 = scmp.ne.s32.totalorder %s181, %s182
      %p193 = scmp.eq.s32.totalorder %s21, 0
      %p194 = por %p192, %p193
      %p195 = scmp.ne.s32.totalorder %s181, %s182
      %p196 = scmp.eq.s32.totalorder %s22, 1
      %p197 = por %p195, %p196
      %p199 = scmp.ne.s32.totalorder %s182, %s198
      %p200 = scmp.eq.s32.totalorder %s22, 0
      %p201 = por %p199, %p200
      %p202 = scmp.le.s32.totalorder 1, %s16
      %p203 = scmp.lt.s32.totalorder %s16, 3
      %p204 = pnand %p202, %p203
      %p205 = pneg %p204
      // Predicated region
      $region9: #{_lambda_.2} parent=5 // pred_check
        _
      $region10: #{_lambda_.2} parent=5 // pred_check_branch
        %207 = sbr.rel (%p204) target = $region12
      $region11: #{_lambda_.2} parent=5 // pred_region
        %s208 = ssub.s32 %s16, 1
        // Predicated region
        $region13: #{_lambda_.2} parent=11 // pred_check
          %p209 = pneg %p63
        $region14: #{_lambda_.2} parent=11 // pred_check_branch
          %211 = sbr.rel (%p209) target = $region16
        $region15: #{_lambda_.2} parent=11 // pred_region
          %213 = vsyncadd [#allocation3], 0
          %s215 = sshll.u32 %s1, 4
          %s216 = int_to_ptr.hbm [resolvable:$true] %s215
          %s217 = sshll.u32 [#allocation2], 4
          %s218 = int_to_ptr.vmem [resolvable:$true] %s217
          %220 = dma.hbm_to_vmem [thread:$0]  %s216, 16, %s218, [#allocation3]
        $region16: #{_lambda_.2} parent=11 // pred_fallthru
          _
        // Predicated region
        $region17: #{_lambda_.2} parent=11 // pred_check
          %p221 = pneg %p84
        $region18: #{_lambda_.2} parent=11 // pred_check_branch
          %223 = sbr.rel (%p221) target = $region20
        $region19: #{_lambda_.2} parent=11 // pred_region
          %225 = vsyncadd [#allocation5], 0
          %s227 = sshll.u32 %s2, 4
          %s228 = int_to_ptr.hbm [resolvable:$true] %s227
          %s229 = sshll.u32 [#allocation4], 4
          %s230 = int_to_ptr.vmem [resolvable:$true] %s229
          %232 = dma.hbm_to_vmem [thread:$0]  %s228, 16, %s230, [#allocation5]
        $region20: #{_lambda_.2} parent=11 // pred_fallthru
          _
        // Predicated region
        $region21: #{_lambda_.2} parent=11 // pred_check
          %p233 = pneg %p105
        $region22: #{_lambda_.2} parent=11 // pred_check_branch
          %235 = sbr.rel (%p233) target = $region24
        $region23: #{_lambda_.2} parent=11 // pred_region
          %237 = vsyncadd [#allocation5], 0
          %s238 = sshll.u32 %s3, 4
          %s239 = int_to_ptr.hbm [resolvable:$true] %s238
          %s240 = sshll.u32 [#allocation6], 4
          %s241 = int_to_ptr.vmem [resolvable:$true] %s240
          %246 = dma.hbm_to_vmem [thread:$0]  %s239, 256, %s241, [#allocation5], 64, 64, 4
        $region24: #{_lambda_.2} parent=11 // pred_fallthru
          _
        // Predicated region
        $region25: #{_lambda_.2} parent=11 // pred_check
          %p247 = pneg %p126
        $region26: #{_lambda_.2} parent=11 // pred_check_branch
          %249 = sbr.rel (%p247) target = $region28
        $region27: #{_lambda_.2} parent=11 // pred_region
          %251 = vsyncadd [#allocation8], 0
          %s253 = sshll.u32 %s4, 4
          %s254 = int_to_ptr.hbm [resolvable:$true] %s253
          %s255 = sshll.u32 [#allocation7], 4
          %s256 = int_to_ptr.vmem [resolvable:$true] %s255
          %258 = dma.hbm_to_vmem [thread:$0]  %s254, 16, %s256, [#allocation8]
        $region28: #{_lambda_.2} parent=11 // pred_fallthru
          _
        // Predicated region
        $region29: #{_lambda_.2} parent=11 // pred_check
          %p259 = pneg %p147
        $region30: #{_lambda_.2} parent=11 // pred_check_branch
          %261 = sbr.rel (%p259) target = $region32
        $region31: #{_lambda_.2} parent=11 // pred_region
          _
        $region32: #{_lambda_.2} parent=11 // pred_fallthru
          _
        // Predicated region
        $region33: #{_lambda_.2} parent=11 // pred_check
          %p262 = pneg %p168
        $region34: #{_lambda_.2} parent=11 // pred_check_branch
          %264 = sbr.rel (%p262) target = $region36
        $region35: #{_lambda_.2} parent=11 // pred_region
          %266 = vsyncadd [#allocation8], 0
          %s268 = sshll.u32 %s6, 4
          %s269 = int_to_ptr.hbm [resolvable:$true] %s268
          %s270 = sshll.u32 [#allocation9], 4
          %s271 = int_to_ptr.vmem [resolvable:$true] %s270
          %273 = dma.hbm_to_vmem [thread:$0]  %s269, 16, %s271, [#allocation8]
        $region36: #{_lambda_.2} parent=11 // pred_fallthru
          _
      $region12: #{_lambda_.2} parent=5 // pred_fallthru
        _
      %p274 = scmp.lt.s32.totalorder %s16, 2
      // Predicated region
      $region37: #{_lambda_.2} parent=5 // pred_check
        %p275 = pneg %p274
      $region38: #{_lambda_.2} parent=5 // pred_check_branch
        %277 = sbr.rel (%p275) target = $region40
      $region39: #{_lambda_.2} parent=5 // pred_region
        // Predicated region
        $region41: #{_lambda_.2} parent=39 // pred_check
          %p278 = pneg %p36
        $region42: #{_lambda_.2} parent=39 // pred_check_branch
          %280 = sbr.rel (%p278) target = $region44
        $region43: #{_lambda_.2} parent=39 // pred_region
          %p281 = scmp.lt.s32.totalorder %s16, 1
          %s282 = scalar_select %p281, %s16, 1
          %s283 = smul.addr %s282, 8
          %s284 = scalar_lea.vmem %s0, %s283
        $region44: #{_lambda_.2} parent=39 // pred_fallthru
          _
      $region40: #{_lambda_.2} parent=5 // pred_fallthru
        _
      %p285 = scmp.le.s32.totalorder 1, %s16
      %p286 = scmp.lt.s32.totalorder %s16, 3
      %p287 = pnand %p285, %p286
      %p288 = pneg %p287
      // Predicated region
      $region45: #{_lambda_.2} parent=5 // pred_check
        _
      $region46: #{_lambda_.2} parent=5 // pred_check_branch
        %290 = sbr.rel (%p287) target = $region48
      $region47: #{_lambda_.2} parent=5 // pred_region
        %s291 = ssub.s32 %s16, 1
        // Predicated region
        $region49: #{_lambda_.2} parent=47 // pred_check
          %p292 = pneg %p63
        $region50: #{_lambda_.2} parent=47 // pred_check_branch
          %294 = sbr.rel (%p292) target = $region52
        $region51: #{_lambda_.2} parent=47 // pred_region
          %296 = dma.done [#allocation3], 16
        $region52: #{_lambda_.2} parent=47 // pred_fallthru
          _
        // Predicated region
        $region53: #{_lambda_.2} parent=47 // pred_check
          %p297 = pneg %p84
        $region54: #{_lambda_.2} parent=47 // pred_check_branch
          %299 = sbr.rel (%p297) target = $region56
        $region55: #{_lambda_.2} parent=47 // pred_region
          %301 = dma.done [#allocation5], 16
        $region56: #{_lambda_.2} parent=47 // pred_fallthru
          _
        // Predicated region
        $region57: #{_lambda_.2} parent=47 // pred_check
          %p302 = pneg %p105
        $region58: #{_lambda_.2} parent=47 // pred_check_branch
          %304 = sbr.rel (%p302) target = $region60
        $region59: #{_lambda_.2} parent=47 // pred_region
          %306 = dma.done [#allocation5], 256
        $region60: #{_lambda_.2} parent=47 // pred_fallthru
          _
        // Predicated region
        $region61: #{_lambda_.2} parent=47 // pred_check
          %p307 = pneg %p126
        $region62: #{_lambda_.2} parent=47 // pred_check_branch
          %309 = sbr.rel (%p307) target = $region64
        $region63: #{_lambda_.2} parent=47 // pred_region
          %311 = dma.done [#allocation8], 16
        $region64: #{_lambda_.2} parent=47 // pred_fallthru
          _
        // Predicated region
        $region65: #{_lambda_.2} parent=47 // pred_check
          %p312 = pneg %p168
        $region66: #{_lambda_.2} parent=47 // pred_check_branch
          %314 = sbr.rel (%p312) target = $region68
        $region67: #{_lambda_.2} parent=47 // pred_region
          %316 = dma.done [#allocation8], 16
        $region68: #{_lambda_.2} parent=47 // pred_fallthru
          _
        %p317 = scmp.lt.s32.totalorder %s21, 1
        %s318 = scalar_select %p317, %s21, 1
        %s319 = smul.addr %s318, 8
        %s320 = scalar_lea.vmem %s0, %s319
        %p321 = pneg %p42
        %p322 = pneg %p39
        %p323 = pneg %p63
        %p324 = pneg %p60
        %p325 = pneg %p84
        %p326 = pneg %p81
        %p327 = pneg %p105
        %p328 = pneg %p102
        %p329 = pneg %p126
        %p330 = pneg %p123
        %p331 = pneg %p147
        %p332 = pneg %p144
        %p333 = pneg %p168
        %p334 = pneg %p165
        %p335 = pneg %p194
        %p336 = pneg %p191
        %p337 = scmp.lt.s32.totalorder %s21, 1
        %s338 = scalar_select %p337, %s21, 1
        %s339 = smul.addr %s338, 8
        %s340 = scalar_lea.vmem %s7, %s339
        %p341 = scmp.lt.s32.totalorder %s21, 1
        %s342 = scalar_select %p341, %s21, 1
        %s343 = smul.addr %s342, 8
        %s344 = scalar_lea.vmem %s0, %s343
        %p345 = scmp.lt.s32.totalorder %s21, 1
        %s346 = scalar_select %p345, %s21, 1
        %s347 = smul.addr %s346, 8
        %s348 = scalar_lea.vmem %s7, %s347
        %v350 = vld [vmem:[%s344] sm:$0xff]
        %vm351 = vcmask 261120
        %v352 = vsel %vm351, %v350, 0.0
        %353 = vadd.xlane.f32.xlu0 %v352
        %v354 = vpop.xlane.xlu0 %353
        %v355 = vrcp.pop 32.0
        %v356 = vmul.f32 32.0, %v355
        %v357 = vsub.f32 1.0, %v356
        %v358 = vmul.f32 %v355, %v357
        %v359 = vadd.f32 %v355, %v358
        %vm360 = vweird.f32 %v355
        %v361 = vsel %vm360, %v355, %v359
        %v362 = vmul.f32 %v354, %v361
        %v363 = vsub.f32 %v350, %v362
        %v364 = vmul.f32 %v363, %v363
        %v365 = vsel %vm351, %v364, 0.0
        %366 = vadd.xlane.f32.xlu0 %v365
        %v367 = vpop.xlane.xlu0 %366
        %v368 = vmul.f32 %v367, %v361
        %v369 = vadd.f32 %v368, 1e-05
        %v370 = vrsqrt.pop %v369
        %v371 = vmul.f32 %v370, %v369
        %v372 = vmul.f32 %v371, %v370
        %v373 = vmul.f32 0.5, %v372
        %v374 = vsub.f32 1.5, %v373
        %v375 = vmul.f32 %v370, %v374
        %vm376 = vweird.f32 %v369
        %vm377 = vweird.f32 %v370
        %vm378 = vmor %vm376, %vm377
        %v379 = vsel %vm378, %v370, %v375
        %v380 = vmul.f32 %v363, %v379
        %v381 = vld [vmem:[#allocation2] sm:$0x1]
        %v383 = vperm.slane %v381, 0
        %v385 = vmul.f32 %v380, %v383
        %v386 = vld [vmem:[#allocation4] sm:$0x1]
        %v388 = vperm.slane %v386, 0
        %v390 = vadd.f32 %v385, %v388
        %v391 = vpack.c.bf16 %v390, %v390
        %v392 = vld [vmem:[#allocation6] sm:$0xf]
        %v393 = vld [vmem:[#allocation6 + $0x4] sm:$0xf]
        %v394 = vld [vmem:[#allocation6 + $0x8] sm:$0xf]
        %v395 = vld [vmem:[#allocation6 + $0xc] sm:$0xf]
        %v396 = vld [vmem:[#allocation7] sm:$0x1]
        %v398 = vperm.slane %v396, 0
        %v404 = vunpack.c.l.b16 %v392
        %v405 = vunpack.c.l.b16 %v393
        %v406 = vunpack.c.l.b16 %v394
        %v407 = vunpack.c.l.b16 %v395
        %v408 = vpack.c.b16 %v405, %v404
        %v409 = vpack.c.b16 %v407, %v406
        %v413 = vsel %vm351, %v391, 0
        %415 = vmatpush.bf16.msra.mxu0 0
        %416 = vmatpush.bf16.msra.mxu0 0
        %417 = vmatpush.bf16.msra.mxu0 0
        %418 = vmatpush.bf16.msra.mxu0 0
        %419 = vmatpush.bf16.msra.mxu0 0
        %420 = vmatpush.bf16.msra.mxu0 0
        %421 = vmatpush.bf16.msra.mxu0 %v409
        %422 = vmatpush.bf16.msra.mxu0 %v408
        %423 = vmatmul.bf16.gmra.mxu0 %v413
        %v424 = vpop.f32.mrf.mxu0
        %v425 = vadd.f32 %v398, %v424
        %v426 = vpop.f32.mrf.mxu0
        %427 = vdwg.mxu0
        %v428 = vmul.f32 %v425, 0.35355338
        %430 = vrot.lane.b32.xlu0 %v428, 120
        %v431 = vpop.permute.xlu0 %430
        %433 = vrot.lane.b32.xlu0 %v428, 112
        %v434 = vpop.permute.xlu0 %433
        %436 = vrot.lane.b32.xlu0 %v428, 104
        %v437 = vpop.permute.xlu0 %436
        %v439 = vrot.slane %v434, 4
        %vm440 = vcmask 1047556
        %v441 = vsel %vm440, %v439, %v428
        %v442 = vrot.slane %v428, 4
        %v443 = vsel %vm440, %v434, %v442
        %v445 = vunpack.c.l.s4 1983009808
        %v446 = vunpack.c.0.s8 %v445
        %v447 = vperm.slane %v441, %v446
        %v449 = vunpack.c.l.s4 1983009808
        %v450 = vunpack.c.0.s8 %v449
        %v451 = vperm.slane %v443, %v450
        %v452 = vrot.slane %v437, 4
        %v453 = vsel %vm440, %v452, %v431
        %v454 = vrot.slane %v431, 4
        %v455 = vsel %vm440, %v437, %v454
        %v457 = vunpack.c.l.s4 1983009808
        %v458 = vunpack.c.0.s8 %v457
        %v459 = vperm.slane %v453, %v458
        %v461 = vunpack.c.l.s4 1983009808
        %v462 = vunpack.c.0.s8 %v461
        %v463 = vperm.slane %v455, %v462
        %v464 = vrot.slane %v459, 4
        %v465 = vsel %vm440, %v464, %v447
        %v466 = vrot.slane %v447, 4
        %v467 = vsel %vm440, %v459, %v466
        %v469 = vunpack.c.l.s4 1934713408
        %v470 = vunpack.c.0.s8 %v469
        %v471 = vperm.slane %v465, %v470
        %v473 = vunpack.c.l.s4 1934713408
        %v474 = vunpack.c.0.s8 %v473
        %v475 = vperm.slane %v467, %v474
        %v476 = vrot.slane %v463, 4
        %v477 = vsel %vm440, %v476, %v451
        %v478 = vrot.slane %v451, 4
        %v479 = vsel %vm440, %v463, %v478
        %v481 = vunpack.c.l.s4 1934713408
        %v482 = vunpack.c.0.s8 %v481
        %v483 = vperm.slane %v477, %v482
        %v485 = vunpack.c.l.s4 1934713408
        %v486 = vunpack.c.0.s8 %v485
        %v487 = vperm.slane %v479, %v486
        %v488 = vrot.slane %v471, 4
        %v489 = vsel %vm440, 0.0, %v488
        %v490 = vrot.slane %v475, 4
        %v491 = vsel %vm440, 0.0, %v490
        %v492 = vrot.slane %v483, 4
        %v493 = vsel %vm440, 0.0, %v492
        %v494 = vrot.slane %v487, 4
        %v495 = vsel %vm440, 0.0, %v494
        %v496 = vsel %vm440, %v490, %v471
        %v498 = vunpack.c.l.s4 1983009808
        %v499 = vunpack.c.0.s8 %v498
        %v500 = vperm.slane %v496, %v499
        %v501 = vrot.slane %v491, 4
        %v502 = vsel %vm440, %v501, %v489
        %v504 = vunpack.c.l.s4 1983009808
        %v505 = vunpack.c.0.s8 %v504
        %v506 = vperm.slane %v502, %v505
        %v507 = vsel %vm440, %v494, %v483
        %v509 = vunpack.c.l.s4 1983009808
        %v510 = vunpack.c.0.s8 %v509
        %v511 = vperm.slane %v507, %v510
        %v512 = vrot.slane %v495, 4
        %v513 = vsel %vm440, %v512, %v493
        %v515 = vunpack.c.l.s4 1983009808
        %v516 = vunpack.c.0.s8 %v515
        %v517 = vperm.slane %v513, %v516
        %v518 = vrot.slane %v506, 4
        %v519 = vsel %vm440, %v518, %v500
        %v520 = vrot.slane %v500, 4
        %v521 = vsel %vm440, %v506, %v520
        %v523 = vunpack.c.l.s4 1934713408
        %v524 = vunpack.c.0.s8 %v523
        %v525 = vperm.slane %v519, %v524
        %v527 = vunpack.c.l.s4 1934713408
        %v528 = vunpack.c.0.s8 %v527
        %v529 = vperm.slane %v521, %v528
        %v530 = vrot.slane %v517, 4
        %v531 = vsel %vm440, %v530, %v511
        %v532 = vrot.slane %v511, 4
        %v533 = vsel %vm440, %v517, %v532
        %v535 = vunpack.c.l.s4 1934713408
        %v536 = vunpack.c.0.s8 %v535
        %v537 = vperm.slane %v531, %v536
        %v539 = vunpack.c.l.s4 1934713408
        %v540 = vunpack.c.0.s8 %v539
        %v541 = vperm.slane %v533, %v540
        %v542 = vrot.slane %v537, 4
        %v543 = vsel %vm440, %v542, %v525
        %v544 = vrot.slane %v525, 4
        %v545 = vsel %vm440, %v537, %v544
        %v546 = vrot.slane %v541, 4
        %v547 = vsel %vm440, %v546, %v529
        %v548 = vrot.slane %v529, 4
        %v549 = vsel %vm440, %v541, %v548
        %v550 = vpack.c.bf16 %v543, %v543
        %v551 = vpack.c.bf16 %v545, %v545
        %v552 = vpack.c.bf16 %v547, %v547
        %v553 = vpack.c.bf16 %v549, %v549
        %555 = vrot.lane.b32.xlu0 %v425, 120
        %v556 = vpop.permute.xlu0 %555
        %557 = vrot.lane.b32.xlu0 %v425, 112
        %v558 = vpop.permute.xlu0 %557
        %559 = vrot.lane.b32.xlu0 %v425, 104
        %v560 = vpop.permute.xlu0 %559
        %561 = vrot.lane.b32.xlu0 %v425, 96
        %v562 = vpop.permute.xlu0 %561
        %563 = vrot.lane.b32.xlu0 %v556, 96
        %v564 = vpop.permute.xlu0 %563
        %565 = vrot.lane.b32.xlu0 %v558, 96
        %v566 = vpop.permute.xlu0 %565
        %567 = vrot.lane.b32.xlu0 %v560, 96
        %v568 = vpop.permute.xlu0 %567
        %v573 = vrot.slane %v566, 4
        %v574 = vsel %vm440, %v573, %v562
        %v575 = vrot.slane %v562, 4
        %v576 = vsel %vm440, %v566, %v575
        %v578 = vunpack.c.l.s4 1983009808
        %v579 = vunpack.c.0.s8 %v578
        %v580 = vperm.slane %v574, %v579
        %v582 = vunpack.c.l.s4 1983009808
        %v583 = vunpack.c.0.s8 %v582
        %v584 = vperm.slane %v576, %v583
        %v585 = vrot.slane %v568, 4
        %v586 = vsel %vm440, %v585, %v564
        %v587 = vrot.slane %v564, 4
        %v588 = vsel %vm440, %v568, %v587
        %v590 = vunpack.c.l.s4 1983009808
        %v591 = vunpack.c.0.s8 %v590
        %v592 = vperm.slane %v586, %v591
        %v594 = vunpack.c.l.s4 1983009808
        %v595 = vunpack.c.0.s8 %v594
        %v596 = vperm.slane %v588, %v595
        %v597 = vrot.slane %v592, 4
        %v598 = vsel %vm440, %v597, %v580
        %v599 = vrot.slane %v580, 4
        %v600 = vsel %vm440, %v592, %v599
        %v602 = vunpack.c.l.s4 1934713408
        %v603 = vunpack.c.0.s8 %v602
        %v604 = vperm.slane %v598, %v603
        %v606 = vunpack.c.l.s4 1934713408
        %v607 = vunpack.c.0.s8 %v606
        %v608 = vperm.slane %v600, %v607
        %v609 = vrot.slane %v596, 4
        %v610 = vsel %vm440, %v609, %v584
        %v611 = vrot.slane %v584, 4
        %v612 = vsel %vm440, %v596, %v611
        %v614 = vunpack.c.l.s4 1934713408
        %v615 = vunpack.c.0.s8 %v614
        %v616 = vperm.slane %v610, %v615
        %v618 = vunpack.c.l.s4 1934713408
        %v619 = vunpack.c.0.s8 %v618
        %v620 = vperm.slane %v612, %v619
        %v621 = vrot.slane %v604, 4
        %v622 = vsel %vm440, 0.0, %v621
        %v623 = vrot.slane %v608, 4
        %v624 = vsel %vm440, 0.0, %v623
        %v625 = vrot.slane %v616, 4
        %v626 = vsel %vm440, 0.0, %v625
        %v627 = vrot.slane %v620, 4
        %v628 = vsel %vm440, 0.0, %v627
        %v629 = vsel %vm440, %v623, %v604
        %v631 = vunpack.c.l.s4 1983009808
        %v632 = vunpack.c.0.s8 %v631
        %v633 = vperm.slane %v629, %v632
        %v634 = vrot.slane %v624, 4
        %v635 = vsel %vm440, %v634, %v622
        %v637 = vunpack.c.l.s4 1983009808
        %v638 = vunpack.c.0.s8 %v637
        %v639 = vperm.slane %v635, %v638
        %v640 = vsel %vm440, %v627, %v616
        %v642 = vunpack.c.l.s4 1983009808
        %v643 = vunpack.c.0.s8 %v642
        %v644 = vperm.slane %v640, %v643
        %v645 = vrot.slane %v628, 4
        %v646 = vsel %vm440, %v645, %v626
        %v648 = vunpack.c.l.s4 1983009808
        %v649 = vunpack.c.0.s8 %v648
        %v650 = vperm.slane %v646, %v649
        %v651 = vrot.slane %v639, 4
        %v652 = vsel %vm440, %v651, %v633
        %v653 = vrot.slane %v633, 4
        %v654 = vsel %vm440, %v639, %v653
        %v656 = vunpack.c.l.s4 1934713408
        %v657 = vunpack.c.0.s8 %v656
        %v658 = vperm.slane %v652, %v657
        %v660 = vunpack.c.l.s4 1934713408
        %v661 = vunpack.c.0.s8 %v660
        %v662 = vperm.slane %v654, %v661
        %v663 = vrot.slane %v650, 4
        %v664 = vsel %vm440, %v663, %v644
        %v665 = vrot.slane %v644, 4
        %v666 = vsel %vm440, %v650, %v665
        %v668 = vunpack.c.l.s4 1934713408
        %v669 = vunpack.c.0.s8 %v668
        %v670 = vperm.slane %v664, %v669
        %v672 = vunpack.c.l.s4 1934713408
        %v673 = vunpack.c.0.s8 %v672
        %v674 = vperm.slane %v666, %v673
        %v675 = vrot.slane %v670, 4
        %v676 = vsel %vm440, %v675, %v658
        %v677 = vrot.slane %v658, 4
        %v678 = vsel %vm440, %v670, %v677
        %v679 = vrot.slane %v674, 4
        %v680 = vsel %vm440, %v679, %v662
        %v681 = vrot.slane %v662, 4
        %v682 = vsel %vm440, %v674, %v681
        %v683 = vpack.c.bf16 %v676, %v676
        %v684 = vpack.c.bf16 %v678, %v678
        %v685 = vpack.c.bf16 %v680, %v680
        %v686 = vpack.c.bf16 %v682, %v682
        %687 = vrot.lane.b32.xlu0 %v425, 64
        %v688 = vpop.permute.xlu0 %687
        %689 = vrot.lane.b32.xlu0 %v556, 64
        %v690 = vpop.permute.xlu0 %689
        %691 = vrot.lane.b32.xlu0 %v558, 64
        %v692 = vpop.permute.xlu0 %691
        %693 = vrot.lane.b32.xlu0 %v560, 64
        %v694 = vpop.permute.xlu0 %693
        %v699 = vrot.slane %v692, 4
        %v700 = vsel %vm440, %v699, %v688
        %v701 = vrot.slane %v688, 4
        %v702 = vsel %vm440, %v692, %v701
        %v704 = vunpack.c.l.s4 1983009808
        %v705 = vunpack.c.0.s8 %v704
        %v706 = vperm.slane %v700, %v705
        %v708 = vunpack.c.l.s4 1983009808
        %v709 = vunpack.c.0.s8 %v708
        %v710 = vperm.slane %v702, %v709
        %v711 = vrot.slane %v694, 4
        %v712 = vsel %vm440, %v711, %v690
        %v713 = vrot.slane %v690, 4
        %v714 = vsel %vm440, %v694, %v713
        %v716 = vunpack.c.l.s4 1983009808
        %v717 = vunpack.c.0.s8 %v716
        %v718 = vperm.slane %v712, %v717
        %v720 = vunpack.c.l.s4 1983009808
        %v721 = vunpack.c.0.s8 %v720
        %v722 = vperm.slane %v714, %v721
        %v723 = vrot.slane %v718, 4
        %v724 = vsel %vm440, %v723, %v706
        %v725 = vrot.slane %v706, 4
        %v726 = vsel %vm440, %v718, %v725
        %v728 = vunpack.c.l.s4 1934713408
        %v729 = vunpack.c.0.s8 %v728
        %v730 = vperm.slane %v724, %v729
        %v732 = vunpack.c.l.s4 1934713408
        %v733 = vunpack.c.0.s8 %v732
        %v734 = vperm.slane %v726, %v733
        %v735 = vrot.slane %v722, 4
        %v736 = vsel %vm440, %v735, %v710
        %v737 = vrot.slane %v710, 4
        %v738 = vsel %vm440, %v722, %v737
        %v740 = vunpack.c.l.s4 1934713408
        %v741 = vunpack.c.0.s8 %v740
        %v742 = vperm.slane %v736, %v741
        %v744 = vunpack.c.l.s4 1934713408
        %v745 = vunpack.c.0.s8 %v744
        %v746 = vperm.slane %v738, %v745
        %v747 = vrot.slane %v730, 4
        %v748 = vsel %vm440, 0.0, %v747
        %v749 = vrot.slane %v734, 4
        %v750 = vsel %vm440, 0.0, %v749
        %v751 = vrot.slane %v742, 4
        %v752 = vsel %vm440, 0.0, %v751
        %v753 = vrot.slane %v746, 4
        %v754 = vsel %vm440, 0.0, %v753
        %v755 = vsel %vm440, %v749, %v730
        %v757 = vunpack.c.l.s4 1983009808
        %v758 = vunpack.c.0.s8 %v757
        %v759 = vperm.slane %v755, %v758
        %v760 = vrot.slane %v750, 4
        %v761 = vsel %vm440, %v760, %v748
        %v763 = vunpack.c.l.s4 1983009808
        %v764 = vunpack.c.0.s8 %v763
        %v765 = vperm.slane %v761, %v764
        %v766 = vsel %vm440, %v753, %v742
        %v768 = vunpack.c.l.s4 1983009808
        %v769 = vunpack.c.0.s8 %v768
        %v770 = vperm.slane %v766, %v769
        %v771 = vrot.slane %v754, 4
        %v772 = vsel %vm440, %v771, %v752
        %v774 = vunpack.c.l.s4 1983009808
        %v775 = vunpack.c.0.s8 %v774
        %v776 = vperm.slane %v772, %v775
        %v777 = vrot.slane %v765, 4
        %v778 = vsel %vm440, %v777, %v759
        %v779 = vrot.slane %v759, 4
        %v780 = vsel %vm440, %v765, %v779
        %v782 = vunpack.c.l.s4 1934713408
        %v783 = vunpack.c.0.s8 %v782
        %v784 = vperm.slane %v778, %v783
        %v786 = vunpack.c.l.s4 1934713408
        %v787 = vunpack.c.0.s8 %v786
        %v788 = vperm.slane %v780, %v787
        %v789 = vrot.slane %v776, 4
        %v790 = vsel %vm440, %v789, %v770
        %v791 = vrot.slane %v770, 4
        %v792 = vsel %vm440, %v776, %v791
        %v794 = vunpack.c.l.s4 1934713408
        %v795 = vunpack.c.0.s8 %v794
        %v796 = vperm.slane %v790, %v795
        %v798 = vunpack.c.l.s4 1934713408
        %v799 = vunpack.c.0.s8 %v798
        %v800 = vperm.slane %v792, %v799
        %v801 = vrot.slane %v796, 4
        %v802 = vsel %vm440, %v801, %v784
        %v803 = vrot.slane %v784, 4
        %v804 = vsel %vm440, %v796, %v803
        %v805 = vrot.slane %v800, 4
        %v806 = vsel %vm440, %v805, %v788
        %v807 = vrot.slane %v788, 4
        %v808 = vsel %vm440, %v800, %v807
        %v809 = vpack.c.bf16 %v802, %v802
        %v810 = vpack.c.bf16 %v804, %v804
        %v811 = vpack.c.bf16 %v806, %v806
        %v812 = vpack.c.bf16 %v808, %v808
        %vm813 = vcmask 64512
        %v815 = vsel %vm813, %v550, 0
        %v818 = vsel %vm813, %v683, 0
        %820 = vmatpush.bf16.xpose.msra.mxu0 0
        %821 = vmatpush.bf16.xpose.msra.mxu0 0
        %822 = vmatpush.bf16.xpose.msra.mxu0 0
        %823 = vmatpush.bf16.xpose.msra.mxu0 0
        %824 = vmatpush.bf16.xpose.msra.mxu0 0
        %825 = vmatpush.bf16.xpose.msra.mxu0 0
        %826 = vmatpush.bf16.xpose.msra.mxu0 0
        %827 = vmatpush.bf16.xpose.msra.mxu0 %v818
        %828 = vmatmul.bf16.gmra.mxu0 %v815
        %v829 = vpop.f32.mrf.mxu0
        %v830 = vadd.f32 0.0, %v829
        %v831 = vpop.f32.mrf.mxu0
        %832 = vdwg.mxu0
        %v834 = vsel %vm813, %v551, 0
        %v837 = vsel %vm813, %v684, 0
        %839 = vmatpush.bf16.xpose.msra.mxu0 0
        %840 = vmatpush.bf16.xpose.msra.mxu0 0
        %841 = vmatpush.bf16.xpose.msra.mxu0 0
        %842 = vmatpush.bf16.xpose.msra.mxu0 0
        %843 = vmatpush.bf16.xpose.msra.mxu0 0
        %844 = vmatpush.bf16.xpose.msra.mxu0 0
        %845 = vmatpush.bf16.xpose.msra.mxu0 0
        %846 = vmatpush.bf16.xpose.msra.mxu0 %v837
        %847 = vmatmul.bf16.gmra.mxu0 %v834
        %v848 = vpop.f32.mrf.mxu0
        %v849 = vadd.f32 0.0, %v848
        %v850 = vpop.f32.mrf.mxu0
        %851 = vdwg.mxu0
        %v853 = vsel %vm813, %v552, 0
        %v856 = vsel %vm813, %v685, 0
        %858 = vmatpush.bf16.xpose.msra.mxu0 0
        %859 = vmatpush.bf16.xpose.msra.mxu0 0
        %860 = vmatpush.bf16.xpose.msra.mxu0 0
        %861 = vmatpush.bf16.xpose.msra.mxu0 0
        %862 = vmatpush.bf16.xpose.msra.mxu0 0
        %863 = vmatpush.bf16.xpose.msra.mxu0 0
        %864 = vmatpush.bf16.xpose.msra.mxu0 0
        %865 = vmatpush.bf16.xpose.msra.mxu0 %v856
        %866 = vmatmul.bf16.gmra.mxu0 %v853
        %v867 = vpop.f32.mrf.mxu0
        %v868 = vadd.f32 0.0, %v867
        %v869 = vpop.f32.mrf.mxu0
        %870 = vdwg.mxu0
        %v872 = vsel %vm813, %v553, 0
        %v875 = vsel %vm813, %v686, 0
        %877 = vmatpush.bf16.xpose.msra.mxu0 0
        %878 = vmatpush.bf16.xpose.msra.mxu0 0
        %879 = vmatpush.bf16.xpose.msra.mxu0 0
        %880 = vmatpush.bf16.xpose.msra.mxu0 0
        %881 = vmatpush.bf16.xpose.msra.mxu0 0
        %882 = vmatpush.bf16.xpose.msra.mxu0 0
        %883 = vmatpush.bf16.xpose.msra.mxu0 0
        %884 = vmatpush.bf16.xpose.msra.mxu0 %v875
        %885 = vmatmul.bf16.gmra.mxu0 %v872
        %v886 = vpop.f32.mrf.mxu0
        %v887 = vadd.f32 0.0, %v886
        %v888 = vpop.f32.mrf.mxu0
        %889 = vdwg.mxu0
        %v890 = vsel %vm813, %v830, -inf
        %891 = vmax.xlane.f32.xlu0 %v890
        %v892 = vpop.xlane.xlu0 %891
        %v893 = vsel %vm813, %v849, -inf
        %894 = vmax.xlane.f32.xlu0 %v893
        %v895 = vpop.xlane.xlu0 %894
        %v896 = vsel %vm813, %v868, -inf
        %897 = vmax.xlane.f32.xlu0 %v896
        %v898 = vpop.xlane.xlu0 %897
        %v899 = vsel %vm813, %v887, -inf
        %900 = vmax.xlane.f32.xlu0 %v899
        %v901 = vpop.xlane.xlu0 %900
        %v902 = vsub.f32 %v830, %v892
        %v903 = vsub.f32 %v849, %v895
        %v904 = vsub.f32 %v868, %v898
        %v905 = vsub.f32 %v887, %v901
        %v906 = vmul.f32 %v902, 1.442695
        %v907 = vpow.pop %v906
        %v908 = vmul.f32 %v903, 1.442695
        %v909 = vpow.pop %v908
        %v910 = vmul.f32 %v904, 1.442695
        %v911 = vpow.pop %v910
        %v912 = vmul.f32 %v905, 1.442695
        %v913 = vpow.pop %v912
        %v914 = vsel %vm813, %v907, 0.0
        %915 = vadd.xlane.f32.xlu0 %v914
        %v916 = vpop.xlane.xlu0 %915
        %v917 = vsel %vm813, %v909, 0.0
        %918 = vadd.xlane.f32.xlu0 %v917
        %v919 = vpop.xlane.xlu0 %918
        %v920 = vsel %vm813, %v911, 0.0
        %921 = vadd.xlane.f32.xlu0 %v920
        %v922 = vpop.xlane.xlu0 %921
        %v923 = vsel %vm813, %v913, 0.0
        %924 = vadd.xlane.f32.xlu0 %v923
        %v925 = vpop.xlane.xlu0 %924
        %v926 = vrcp.pop %v916
        %v927 = vrcp.pop %v919
        %v928 = vrcp.pop %v922
        %v929 = vrcp.pop %v925
        %v930 = vmul.f32 %v907, %v926
        %v931 = vmul.f32 %v909, %v927
        %v932 = vmul.f32 %v911, %v928
        %v933 = vmul.f32 %v913, %v929
        %v934 = vpack.c.bf16 %v930, %v930
        %v935 = vpack.c.bf16 %v931, %v931
        %v936 = vpack.c.bf16 %v932, %v932
        %v937 = vpack.c.bf16 %v933, %v933
        %v939 = vsel %vm813, %v934, 0
        %vm941 = vcmask 1043456
        %v943 = vsel %vm941, %v809, 0
        %945 = vmatpush.bf16.msra.mxu0 0
        %946 = vmatpush.bf16.msra.mxu0 0
        %947 = vmatpush.bf16.msra.mxu0 0
        %948 = vmatpush.bf16.msra.mxu0 0
        %949 = vmatpush.bf16.msra.mxu0 0
        %950 = vmatpush.bf16.msra.mxu0 0
        %951 = vmatpush.bf16.msra.mxu0 0
        %952 = vmatpush.bf16.msra.mxu0 %v943
        %953 = vmatmul.bf16.gmra.mxu0 %v939
        %v954 = vpop.f32.mrf.mxu0
        %v955 = vadd.f32 0.0, %v954
        %v956 = vpop.f32.mrf.mxu0
        %957 = vdwg.mxu0
        %v959 = vsel %vm813, %v935, 0
        %v962 = vsel %vm941, %v810, 0
        %964 = vmatpush.bf16.msra.mxu0 0
        %965 = vmatpush.bf16.msra.mxu0 0
        %966 = vmatpush.bf16.msra.mxu0 0
        %967 = vmatpush.bf16.msra.mxu0 0
        %968 = vmatpush.bf16.msra.mxu0 0
        %969 = vmatpush.bf16.msra.mxu0 0
        %970 = vmatpush.bf16.msra.mxu0 0
        %971 = vmatpush.bf16.msra.mxu0 %v962
        %972 = vmatmul.bf16.gmra.mxu0 %v959
        %v973 = vpop.f32.mrf.mxu0
        %v974 = vadd.f32 0.0, %v973
        %v975 = vpop.f32.mrf.mxu0
        %976 = vdwg.mxu0
        %v978 = vsel %vm813, %v936, 0
        %v981 = vsel %vm941, %v811, 0
        %983 = vmatpush.bf16.msra.mxu0 0
        %984 = vmatpush.bf16.msra.mxu0 0
        %985 = vmatpush.bf16.msra.mxu0 0
        %986 = vmatpush.bf16.msra.mxu0 0
        %987 = vmatpush.bf16.msra.mxu0 0
        %988 = vmatpush.bf16.msra.mxu0 0
        %989 = vmatpush.bf16.msra.mxu0 0
        %990 = vmatpush.bf16.msra.mxu0 %v981
        %991 = vmatmul.bf16.gmra.mxu0 %v978
        %v992 = vpop.f32.mrf.mxu0
        %v993 = vadd.f32 0.0, %v992
        %v994 = vpop.f32.mrf.mxu0
        %995 = vdwg.mxu0
        %v997 = vsel %vm813, %v937, 0
        %v1000 = vsel %vm941, %v812, 0
        %1002 = vmatpush.bf16.msra.mxu0 0
        %1003 = vmatpush.bf16.msra.mxu0 0
        %1004 = vmatpush.bf16.msra.mxu0 0
        %1005 = vmatpush.bf16.msra.mxu0 0
        %1006 = vmatpush.bf16.msra.mxu0 0
        %1007 = vmatpush.bf16.msra.mxu0 0
        %1008 = vmatpush.bf16.msra.mxu0 0
        %1009 = vmatpush.bf16.msra.mxu0 %v1000
        %1010 = vmatmul.bf16.gmra.mxu0 %v997
        %v1011 = vpop.f32.mrf.mxu0
        %v1012 = vadd.f32 0.0, %v1011
        %v1013 = vpop.f32.mrf.mxu0
        %1014 = vdwg.mxu0
        %v1015 = vrot.slane %v993, 4
        %v1016 = vsel %vm440, %v1015, %v955
        %v1017 = vrot.slane %v955, 4
        %v1018 = vsel %vm440, %v993, %v1017
        %v1020 = vunpack.c.l.s4 1983009808
        %v1021 = vunpack.c.0.s8 %v1020
        %v1022 = vperm.slane %v1016, %v1021
        %v1024 = vunpack.c.l.s4 1983009808
        %v1025 = vunpack.c.0.s8 %v1024
        %v1026 = vperm.slane %v1018, %v1025
        %v1027 = vrot.slane %v1012, 4
        %v1028 = vsel %vm440, %v1027, %v974
        %v1029 = vrot.slane %v974, 4
        %v1030 = vsel %vm440, %v1012, %v1029
        %v1032 = vunpack.c.l.s4 1983009808
        %v1033 = vunpack.c.0.s8 %v1032
        %v1034 = vperm.slane %v1028, %v1033
        %v1036 = vunpack.c.l.s4 1983009808
        %v1037 = vunpack.c.0.s8 %v1036
        %v1038 = vperm.slane %v1030, %v1037
        %v1039 = vrot.slane %v1034, 4
        %v1040 = vsel %vm440, %v1039, %v1022
        %v1041 = vrot.slane %v1022, 4
        %v1042 = vsel %vm440, %v1034, %v1041
        %v1044 = vunpack.c.l.s4 1934713408
        %v1045 = vunpack.c.0.s8 %v1044
        %v1046 = vperm.slane %v1040, %v1045
        %v1048 = vunpack.c.l.s4 1934713408
        %v1049 = vunpack.c.0.s8 %v1048
        %v1050 = vperm.slane %v1042, %v1049
        %v1051 = vrot.slane %v1038, 4
        %v1052 = vsel %vm440, %v1051, %v1026
        %v1053 = vrot.slane %v1026, 4
        %v1054 = vsel %vm440, %v1038, %v1053
        %v1056 = vunpack.c.l.s4 1934713408
        %v1057 = vunpack.c.0.s8 %v1056
        %v1058 = vperm.slane %v1052, %v1057
        %v1060 = vunpack.c.l.s4 1934713408
        %v1061 = vunpack.c.0.s8 %v1060
        %v1062 = vperm.slane %v1054, %v1061
        %v1063 = vrot.slane %v1046, 4
        %v1064 = vsel %vm440, 0.0, %v1063
        %v1065 = vrot.slane %v1050, 4
        %v1066 = vsel %vm440, 0.0, %v1065
        %v1067 = vrot.slane %v1058, 4
        %v1068 = vsel %vm440, 0.0, %v1067
        %v1069 = vrot.slane %v1062, 4
        %v1070 = vsel %vm440, 0.0, %v1069
        %v1071 = vsel %vm440, %v1065, %v1046
        %v1073 = vunpack.c.l.s4 1983009808
        %v1074 = vunpack.c.0.s8 %v1073
        %v1075 = vperm.slane %v1071, %v1074
        %v1076 = vrot.slane %v1066, 4
        %v1077 = vsel %vm440, %v1076, %v1064
        %v1079 = vunpack.c.l.s4 1983009808
        %v1080 = vunpack.c.0.s8 %v1079
        %v1081 = vperm.slane %v1077, %v1080
        %v1082 = vsel %vm440, %v1069, %v1058
        %v1084 = vunpack.c.l.s4 1983009808
        %v1085 = vunpack.c.0.s8 %v1084
        %v1086 = vperm.slane %v1082, %v1085
        %v1087 = vrot.slane %v1070, 4
        %v1088 = vsel %vm440, %v1087, %v1068
        %v1090 = vunpack.c.l.s4 1983009808
        %v1091 = vunpack.c.0.s8 %v1090
        %v1092 = vperm.slane %v1088, %v1091
        %v1093 = vrot.slane %v1081, 4
        %v1094 = vsel %vm440, %v1093, %v1075
        %v1095 = vrot.slane %v1075, 4
        %v1096 = vsel %vm440, %v1081, %v1095
        %v1098 = vunpack.c.l.s4 1934713408
        %v1099 = vunpack.c.0.s8 %v1098
        %v1100 = vperm.slane %v1094, %v1099
        %v1102 = vunpack.c.l.s4 1934713408
        %v1103 = vunpack.c.0.s8 %v1102
        %v1104 = vperm.slane %v1096, %v1103
        %v1105 = vrot.slane %v1092, 4
        %v1106 = vsel %vm440, %v1105, %v1086
        %v1107 = vrot.slane %v1086, 4
        %v1108 = vsel %vm440, %v1092, %v1107
        %v1110 = vunpack.c.l.s4 1934713408
        %v1111 = vunpack.c.0.s8 %v1110
        %v1112 = vperm.slane %v1106, %v1111
        %v1114 = vunpack.c.l.s4 1934713408
        %v1115 = vunpack.c.0.s8 %v1114
        %v1116 = vperm.slane %v1108, %v1115
        %v1117 = vrot.slane %v1112, 4
        %v1118 = vsel %vm440, %v1117, %v1100
        %v1119 = vrot.slane %v1100, 4
        %v1120 = vsel %vm440, %v1112, %v1119
        %v1121 = vrot.slane %v1116, 4
        %v1122 = vsel %vm440, %v1121, %v1104
        %v1123 = vrot.slane %v1104, 4
        %v1124 = vsel %vm440, %v1116, %v1123
        %1126 = vrot.lane.b32.xlu0 %v1120, 8
        %v1127 = vpop.permute.xlu0 %1126
        %1130 = vrot.lane.b32.xlu0 %v1122, 16
        %v1131 = vpop.permute.xlu0 %1130
        %1134 = vrot.lane.b32.xlu0 %v1124, 24
        %v1135 = vpop.permute.xlu0 %1134
        %v1137 = vsel %vm813, %v1118, %v1127
        %vm1138 = vcmask 130048
        %v1139 = vsel %vm1138, %v1137, %v1131
        %vm1140 = vcmask 195584
        %v1141 = vsel %vm1140, %v1139, %v1135
        %v1142 = vpack.c.bf16 %v1141, %v1141
        %v1143 = vld [vmem:[%s5] sm:$0xf]
        %v1144 = vld [vmem:[%s5 + $0x4] sm:$0xf]
        %v1145 = vld [vmem:[%s5 + $0x8] sm:$0xf]
        %v1146 = vld [vmem:[%s5 + $0xc] sm:$0xf]
        %v1147 = vld [vmem:[#allocation9] sm:$0x1]
        %v1149 = vperm.slane %v1147, 0
        %v1155 = vunpack.c.l.b16 %v1143
        %v1156 = vunpack.c.l.b16 %v1144
        %v1157 = vunpack.c.l.b16 %v1145
        %v1158 = vunpack.c.l.b16 %v1146
        %v1159 = vpack.c.b16 %v1156, %v1155
        %v1160 = vpack.c.b16 %v1158, %v1157
        %v1164 = vsel %vm351, %v1142, 0
        %1166 = vmatpush.bf16.msra.mxu0 0
        %1167 = vmatpush.bf16.msra.mxu0 0
        %1168 = vmatpush.bf16.msra.mxu0 0
        %1169 = vmatpush.bf16.msra.mxu0 0
        %1170 = vmatpush.bf16.msra.mxu0 0
        %1171 = vmatpush.bf16.msra.mxu0 0
        %1172 = vmatpush.bf16.msra.mxu0 %v1160
        %1173 = vmatpush.bf16.msra.mxu0 %v1159
        %1174 = vmatmul.bf16.gmra.mxu0 %v1164
        %v1175 = vpop.f32.mrf.mxu0
        %v1176 = vadd.f32 %v1149, %v1175
        %v1177 = vpop.f32.mrf.mxu0
        %1178 = vdwg.mxu0
        %v1179 = vadd.f32 %v350, %v1176
        %1180 = vst.msk [vmem:[%s348] sm:$0xff] %vm351, %v1179
        %p1181 = scmp.lt.s32.totalorder %s21, 1
        %s1182 = scalar_select %p1181, %s21, 1
        %s1183 = smul.addr %s1182, 8
        %s1184 = scalar_lea.vmem %s7, %s1183
        // Predicated region
        $region69: #{_lambda_.2} parent=47 // pred_check
          %p1185 = pneg %p191
        $region70: #{_lambda_.2} parent=47 // pred_check_branch
          %1187 = sbr.rel (%p1185) target = $region72
        $region71: #{_lambda_.2} parent=47 // pred_region
          _
        $region72: #{_lambda_.2} parent=47 // pred_fallthru
          _
      $region48: #{_lambda_.2} parent=5 // pred_fallthru
        _
      %p1188 = scmp.le.s32.totalorder 2, %s16
      // Predicated region
      $region73: #{_lambda_.2} parent=5 // pred_check
        %p1189 = pneg %p1188
      $region74: #{_lambda_.2} parent=5 // pred_check_branch
        %1191 = sbr.rel (%p1189) target = $region76
      $region75: #{_lambda_.2} parent=5 // pred_region
        %s1192 = ssub.s32 %s16, 2
        // Predicated region
        $region77: #{_lambda_.2} parent=75 // pred_check
          %p1193 = pneg %p197
        $region78: #{_lambda_.2} parent=75 // pred_check_branch
          %1195 = sbr.rel (%p1193) target = $region80
        $region79: #{_lambda_.2} parent=75 // pred_region
          %p1196 = scmp.lt.s32.totalorder %s22, 1
          %s1197 = scalar_select %p1196, %s22, 1
          %s1198 = smul.addr %s1197, 8
          %s1199 = scalar_lea.vmem %s7, %s1198
        $region80: #{_lambda_.2} parent=75 // pred_fallthru
          _
      $region76: #{_lambda_.2} parent=5 // pred_fallthru
        _
    $region6: #{_lambda_.2} parent=1 // loop_footer
      %s20 = sadd.s32 1, %s16
    $region7: #{_lambda_.2} parent=1 // loop_footer_branch
      %15 = sbr.rel target = $region3
    $region8: #{_lambda_.2} parent=1 // loop_exit
      _
    %1200 = vsyncpa [#allocation3], 1
    %s1201 = scalar_lea.sflag [#allocation3], 1
    %1202 = vsyncpa %s1201, 1
    %1203 = vsyncpa [#allocation5], 1
    %1204 = vsyncpa [#allocation8], 1

// kernel: _lambda_.3
$region0: #{_lambda_.3}
  #allocation0 [shape = 'u32[]', space=smem, size = 0x4, offset = 0x4, fixed_abs, tag = 'smem constant byte address 0x4 - core index']
  #allocation1 [shape = 'u32[72,128]{1,0:T(1,128)}', space=vmem, size = 0x9000, scoped, tag = 'internal scratch']
  #allocation2 [shape = 'f32[16,32]{1,0:T(8,128)}', space=vmem, size = 0x2000, scoped, tag = 'scratch operand']
  #allocation3 [shape = 'f32[16,32]{1,0:T(8,128)}', space=vmem, size = 0x2000, scoped, tag = 'scratch operand']
  %s0 = inlined_call_operand.vmem [shape: f32[16,32], index: 0, kind: input, shape index: {}, may-alias: {0,7}]
  %s1 = inlined_call_operand.vmem [shape: f32[1,32], index: 1, kind: input, shape index: {}]
  %s2 = inlined_call_operand.vmem [shape: f32[1,32], index: 2, kind: input, shape index: {}]
  %s3 = inlined_call_operand.vmem [shape: bf16[32,128], index: 3, kind: input, shape index: {}]
  %s4 = inlined_call_operand.vmem [shape: f32[1,128], index: 4, kind: input, shape index: {}]
  %s5 = inlined_call_operand.vmem [shape: bf16[128,32], index: 5, kind: input, shape index: {}]
  %s6 = inlined_call_operand.vmem [shape: f32[1,32], index: 6, kind: input, shape index: {}]
  %s7 = inlined_call_operand.vmem [shape: f32[16,32], index: 7, kind: output, shape index: {}, may-alias: {0,7}]
  %s8 = sld [smem:[#allocation0]]
  $region46: #{_lambda_.3} parent=0
    _
  %s10 = ssub.s32 1, %s8
  %s11 = scalar_select 0, %s10, %s8
  // Predicated region
  $region2: #{_lambda_.3} parent=0 // pred_check
    _
  $region3: #{_lambda_.3} parent=0 // pred_check_branch
    %13 = sbr.rel (0) target = $region5
  $region4: #{_lambda_.3} parent=0 // pred_region
    _
  $region5: #{_lambda_.3} parent=0 // pred_fallthru
    _
  // Predicated region
  $region6: #{_lambda_.3} parent=0 // pred_check
    _
  $region7: #{_lambda_.3} parent=0 // pred_check_branch
    %15 = sbr.rel (0) target = $region9
  $region8: #{_lambda_.3} parent=0 // pred_region
    _
  $region9: #{_lambda_.3} parent=0 // pred_fallthru
    _
  // Predicated region
  $region10: #{_lambda_.3} parent=0 // pred_check
    _
  $region11: #{_lambda_.3} parent=0 // pred_check_branch
    %17 = sbr.rel (0) target = $region13
  $region12: #{_lambda_.3} parent=0 // pred_region
    _
  $region13: #{_lambda_.3} parent=0 // pred_fallthru
    _
  // Predicated region
  $region14: #{_lambda_.3} parent=0 // pred_check
    _
  $region15: #{_lambda_.3} parent=0 // pred_check_branch
    %19 = sbr.rel (0) target = $region17
  $region16: #{_lambda_.3} parent=0 // pred_region
    _
  $region17: #{_lambda_.3} parent=0 // pred_fallthru
    _
  // Predicated region
  $region18: #{_lambda_.3} parent=0 // pred_check
    _
  $region19: #{_lambda_.3} parent=0 // pred_check_branch
    %21 = sbr.rel (0) target = $region21
  $region20: #{_lambda_.3} parent=0 // pred_region
    _
  $region21: #{_lambda_.3} parent=0 // pred_fallthru
    _
  // Predicated region
  $region22: #{_lambda_.3} parent=0 // pred_check
    _
  $region23: #{_lambda_.3} parent=0 // pred_check_branch
    %23 = sbr.rel (0) target = $region25
  $region24: #{_lambda_.3} parent=0 // pred_region
    _
  $region25: #{_lambda_.3} parent=0 // pred_fallthru
    _
  // Predicated region
  $region26: #{_lambda_.3} parent=0 // pred_check
    _
  $region27: #{_lambda_.3} parent=0 // pred_check_branch
    %25 = sbr.rel (0) target = $region29
  $region28: #{_lambda_.3} parent=0 // pred_region
    _
  $region29: #{_lambda_.3} parent=0 // pred_fallthru
    _
  %p27 = scmp.eq.s32.totalorder 0, 0
  // Predicated region
  $region30: #{_lambda_.3} parent=0 // pred_check
    %p28 = pneg %p27
  $region31: #{_lambda_.3} parent=0 // pred_check_branch
    %30 = sbr.rel (%p28) target = $region33
  $region32: #{_lambda_.3} parent=0 // pred_region
    %v31 = vld [vmem:[%s0] sm:$0xff]
    %v32 = vld [vmem:[%s0 + $0x8] sm:$0xff]
    %vm33 = vcmask 261120
    %v34 = vsel %vm33, %v31, 0.0
    %35 = vadd.xlane.f32.xlu0 %v34
    %v36 = vpop.xlane.xlu0 %35
    %v37 = vsel %vm33, %v32, 0.0
    %38 = vadd.xlane.f32.xlu0 %v37
    %v39 = vpop.xlane.xlu0 %38
    %v40 = vrcp.pop 32.0
    %v41 = vmul.f32 32.0, %v40
    %v42 = vsub.f32 1.0, %v41
    %v43 = vmul.f32 %v40, %v42
    %v44 = vadd.f32 %v40, %v43
    %vm45 = vweird.f32 %v40
    %v46 = vsel %vm45, %v40, %v44
    %v47 = vmul.f32 %v36, %v46
    %v48 = vmul.f32 %v39, %v46
    %v49 = vsub.f32 %v31, %v47
    %v50 = vsub.f32 %v32, %v48
    %v51 = vmul.f32 %v49, %v49
    %v52 = vmul.f32 %v50, %v50
    %v53 = vsel %vm33, %v51, 0.0
    %54 = vadd.xlane.f32.xlu0 %v53
    %v55 = vpop.xlane.xlu0 %54
    %v56 = vsel %vm33, %v52, 0.0
    %57 = vadd.xlane.f32.xlu0 %v56
    %v58 = vpop.xlane.xlu0 %57
    %v59 = vmul.f32 %v55, %v46
    %v60 = vmul.f32 %v58, %v46
    %v61 = vadd.f32 %v59, 1e-05
    %v62 = vadd.f32 %v60, 1e-05
    %v63 = vrsqrt.pop %v61
    %v64 = vmul.f32 %v63, %v61
    %v65 = vmul.f32 %v64, %v63
    %v66 = vmul.f32 0.5, %v65
    %v67 = vsub.f32 1.5, %v66
    %v68 = vmul.f32 %v63, %v67
    %vm69 = vweird.f32 %v61
    %vm70 = vweird.f32 %v63
    %vm71 = vmor %vm69, %vm70
    %v72 = vsel %vm71, %v63, %v68
    %v73 = vrsqrt.pop %v62
    %v74 = vmul.f32 %v73, %v62
    %v75 = vmul.f32 %v74, %v73
    %v76 = vmul.f32 0.5, %v75
    %v77 = vsub.f32 1.5, %v76
    %v78 = vmul.f32 %v73, %v77
    %vm79 = vweird.f32 %v62
    %vm80 = vweird.f32 %v73
    %vm81 = vmor %vm79, %vm80
    %v82 = vsel %vm81, %v73, %v78
    %v83 = vmul.f32 %v49, %v72
    %v84 = vmul.f32 %v50, %v82
    %v85 = vld [vmem:[%s1] sm:$0x1]
    %v87 = vperm.slane %v85, 0
    %v89 = vmul.f32 %v83, %v87
    %v90 = vmul.f32 %v84, %v87
    %v91 = vld [vmem:[%s2] sm:$0x1]
    %v93 = vperm.slane %v91, 0
    %v95 = vadd.f32 %v89, %v93
    %v96 = vadd.f32 %v90, %v93
    %97 = vst.msk [vmem:[#allocation2] sm:$0xff] %vm33, %v95
    %98 = vst.msk [vmem:[#allocation2 + $0x8] sm:$0xff] %vm33, %v96
    %99 = vst.msk [vmem:[#allocation3] sm:$0xff] %vm33, 0.0
    %100 = vst.msk [vmem:[#allocation3 + $0x8] sm:$0xff] %vm33, 0.0
  $region33: #{_lambda_.3} parent=0 // pred_fallthru
    _
  %v101 = vld [vmem:[#allocation2] sm:$0xff]
  %v102 = vld [vmem:[#allocation2 + $0x8] sm:$0xff]
  %v103 = vpack.c.bf16 %v102, %v101
  %v104 = vld [vmem:[%s3] sm:$0xf]
  %v105 = vld [vmem:[%s3 + $0x4] sm:$0xf]
  %v106 = vld [vmem:[%s3 + $0x8] sm:$0xf]
  %v107 = vld [vmem:[%s3 + $0xc] sm:$0xf]
  %v108 = vld [vmem:[%s4] sm:$0x1]
  %v110 = vperm.slane %v108, 0
  %v116 = vunpack.c.l.b16 %v104
  %v117 = vunpack.c.l.b16 %v105
  %v118 = vunpack.c.l.b16 %v106
  %v119 = vunpack.c.l.b16 %v107
  %v120 = vpack.c.b16 %v117, %v116
  %v121 = vpack.c.b16 %v119, %v118
  %vm124 = vcmask 261120
  %v126 = vsel %vm124, %v103, 0
  %128 = vmatpush.bf16.msra.mxu0 0
  %129 = vmatpush.bf16.msra.mxu0 0
  %130 = vmatpush.bf16.msra.mxu0 0
  %131 = vmatpush.bf16.msra.mxu0 0
  %132 = vmatpush.bf16.msra.mxu0 0
  %133 = vmatpush.bf16.msra.mxu0 0
  %134 = vmatpush.bf16.msra.mxu0 %v121
  %135 = vmatpush.bf16.msra.mxu0 %v120
  %136 = vmatmul.bf16.gmra.mxu0 %v126
  %v137 = vpop.f32.mrf.mxu0
  %v138 = vadd.f32 %v110, %v137
  %v139 = vpop.f32.mrf.mxu0
  %v140 = vadd.f32 %v110, %v139
  %141 = vdwg.mxu0
  %v142 = vmul.f32 %v138, 1.702
  %v143 = vmul.f32 %v140, 1.702
  %v144 = vxor.u32 %v142, 2147483648
  %v145 = vxor.u32 %v143, 2147483648
  %v146 = vmul.f32 %v144, 1.442695
  %v147 = vpow.pop %v146
  %v148 = vmul.f32 %v145, 1.442695
  %v149 = vpow.pop %v148
  %v150 = vadd.f32 %v147, 1.0
  %v151 = vadd.f32 %v149, 1.0
  %v152 = vrcp.pop %v150
  %v153 = vmul.f32 %v150, %v152
  %v154 = vsub.f32 1.0, %v153
  %v155 = vmul.f32 %v152, %v154
  %v156 = vadd.f32 %v152, %v155
  %vm157 = vweird.f32 %v150
  %vm158 = vweird.f32 %v152
  %vm159 = vmor %vm157, %vm158
  %v160 = vsel %vm159, %v152, %v156
  %v161 = vand.u32 2147483647, %v150
  %vm162 = vcmp.eq.f32.partialorder %v161, 8.507059e+37
  %v163 = vand.u32 %v150, 2147483648
  %v164 = vor.u32 1.1754944e-38, %v163
  %v165 = vsel %vm162, %v164, %v160
  %v166 = vmul.f32 1.0, %v165
  %v167 = vrcp.pop %v151
  %v168 = vmul.f32 %v151, %v167
  %v169 = vsub.f32 1.0, %v168
  %v170 = vmul.f32 %v167, %v169
  %v171 = vadd.f32 %v167, %v170
  %vm172 = vweird.f32 %v151
  %vm173 = vweird.f32 %v167
  %vm174 = vmor %vm172, %vm173
  %v175 = vsel %vm174, %v167, %v171
  %v176 = vand.u32 2147483647, %v151
  %vm177 = vcmp.eq.f32.partialorder %v176, 8.507059e+37
  %v178 = vand.u32 %v151, 2147483648
  %v179 = vor.u32 1.1754944e-38, %v178
  %v180 = vsel %vm177, %v179, %v175
  %v181 = vmul.f32 1.0, %v180
  %v182 = vmul.f32 %v138, %v166
  %v183 = vmul.f32 %v140, %v181
  %v184 = vld [vmem:[#allocation3] sm:$0xff]
  %v185 = vld [vmem:[#allocation3 + $0x8] sm:$0xff]
  %v186 = vpack.c.bf16 %v183, %v182
  %v187 = vld [vmem:[%s5] sm:$0xf]
  %v188 = vld [vmem:[%s5 + $0x4] sm:$0xf]
  %v189 = vld [vmem:[%s5 + $0x8] sm:$0xf]
  %v190 = vld [vmem:[%s5 + $0xc] sm:$0xf]
  %v191 = vld [vmem:[%s5 + $0x10] sm:$0xf]
  %v192 = vld [vmem:[%s5 + $0x14] sm:$0xf]
  %v193 = vld [vmem:[%s5 + $0x18] sm:$0xf]
  %v194 = vld [vmem:[%s5 + $0x1c] sm:$0xf]
  %v195 = vld [vmem:[%s5 + $0x20] sm:$0xf]
  %v196 = vld [vmem:[%s5 + $0x24] sm:$0xf]
  %v197 = vld [vmem:[%s5 + $0x28] sm:$0xf]
  %v198 = vld [vmem:[%s5 + $0x2c] sm:$0xf]
  %v199 = vld [vmem:[%s5 + $0x30] sm:$0xf]
  %v200 = vld [vmem:[%s5 + $0x34] sm:$0xf]
  %v201 = vld [vmem:[%s5 + $0x38] sm:$0xf]
  %v202 = vld [vmem:[%s5 + $0x3c] sm:$0xf]
  %v219 = vunpack.c.l.b16 %v187
  %v220 = vunpack.c.l.b16 %v188
  %v221 = vunpack.c.l.b16 %v189
  %v222 = vunpack.c.l.b16 %v190
  %v223 = vunpack.c.l.b16 %v191
  %v224 = vunpack.c.l.b16 %v192
  %v225 = vunpack.c.l.b16 %v193
  %v226 = vunpack.c.l.b16 %v194
  %v227 = vunpack.c.l.b16 %v195
  %v228 = vunpack.c.l.b16 %v196
  %v229 = vunpack.c.l.b16 %v197
  %v230 = vunpack.c.l.b16 %v198
  %v231 = vunpack.c.l.b16 %v199
  %v232 = vunpack.c.l.b16 %v200
  %v233 = vunpack.c.l.b16 %v201
  %v234 = vunpack.c.l.b16 %v202
  %v235 = vpack.c.b16 %v220, %v219
  %v236 = vpack.c.b16 %v222, %v221
  %v237 = vpack.c.b16 %v224, %v223
  %v238 = vpack.c.b16 %v226, %v225
  %v239 = vpack.c.b16 %v228, %v227
  %v240 = vpack.c.b16 %v230, %v229
  %v241 = vpack.c.b16 %v232, %v231
  %v242 = vpack.c.b16 %v234, %v233
  %251 = vmatpush.bf16.msra.mxu0 %v242
  %252 = vmatpush.bf16.msra.mxu0 %v241
  %253 = vmatpush.bf16.msra.mxu0 %v240
  %254 = vmatpush.bf16.msra.mxu0 %v239
  %255 = vmatpush.bf16.msra.mxu0 %v238
  %256 = vmatpush.bf16.msra.mxu0 %v237
  %257 = vmatpush.bf16.msra.mxu0 %v236
  %258 = vmatpush.bf16.msra.mxu0 %v235
  %259 = vmatmul.bf16.gmra.mxu0 %v186
  %v260 = vpop.f32.mrf.mxu0
  %v261 = vadd.f32 0.0, %v260
  %v262 = vpop.f32.mrf.mxu0
  %v263 = vadd.f32 0.0, %v262
  %264 = vdwg.mxu0
  %v265 = vadd.f32 %v184, %v261
  %v266 = vadd.f32 %v185, %v263
  %267 = vst.msk [vmem:[#allocation3] sm:$0xff] %vm124, %v265
  %268 = vst.msk [vmem:[#allocation3 + $0x8] sm:$0xff] %vm124, %v266
  // Predicated region
  $region34: #{_lambda_.3} parent=0 // pred_check
    %p269 = pneg %p27
  $region35: #{_lambda_.3} parent=0 // pred_check_branch
    %271 = sbr.rel (%p269) target = $region37
  $region36: #{_lambda_.3} parent=0 // pred_region
    %v272 = vld [vmem:[%s0] sm:$0xff]
    %v273 = vld [vmem:[%s0 + $0x8] sm:$0xff]
    %v274 = vld [vmem:[#allocation3] sm:$0xff]
    %v275 = vld [vmem:[#allocation3 + $0x8] sm:$0xff]
    %v276 = vadd.f32 %v272, %v274
    %v277 = vadd.f32 %v273, %v275
    %v278 = vld [vmem:[%s6] sm:$0x1]
    %v280 = vperm.slane %v278, 0
    %v282 = vadd.f32 %v276, %v280
    %v283 = vadd.f32 %v277, %v280
    %284 = vst.msk [vmem:[%s7] sm:$0xff] %vm124, %v282
    %285 = vst.msk [vmem:[%s7 + $0x8] sm:$0xff] %vm124, %v283
  $region37: #{_lambda_.3} parent=0 // pred_fallthru
    _
  // Predicated region
  $region38: #{_lambda_.3} parent=0 // pred_check
    _
  $region39: #{_lambda_.3} parent=0 // pred_check_branch
    %287 = sbr.rel (0) target = $region41
  $region40: #{_lambda_.3} parent=0 // pred_region
    _
  $region41: #{_lambda_.3} parent=0 // pred_fallthru
    _
  // Predicated region
  $region42: #{_lambda_.3} parent=0 // pred_check
    _
  $region43: #{_lambda_.3} parent=0 // pred_check_branch
    %289 = sbr.rel (0) target = $region45
  $region44: #{_lambda_.3} parent=0 // pred_region
    _
  $region45: #{_lambda_.3} parent=0 // pred_fallthru
    _

// kernel: _lambda_.2
$region0: #{_lambda_.2}
  #allocation0 [shape = 'u32[]', space=smem, size = 0x4, offset = 0x4, fixed_abs, tag = 'smem constant byte address 0x4 - core index']
  #allocation1 [shape = 'u32[72,128]{1,0:T(1,128)}', space=vmem, size = 0x9000, scoped, tag = 'internal scratch']
  %s0 = inlined_call_operand.vmem [shape: f32[2,8,32], index: 0, kind: input, shape index: {}, may-alias: {0,7}]
  %s1 = inlined_call_operand.hbm [shape: f32[1,32], index: 1, kind: input, shape index: {}]
  %s2 = inlined_call_operand.hbm [shape: f32[1,32], index: 2, kind: input, shape index: {}]
  %s3 = inlined_call_operand.hbm [shape: bf16[32,96], index: 3, kind: input, shape index: {}]
  %s4 = inlined_call_operand.hbm [shape: f32[1,96], index: 4, kind: input, shape index: {}]
  %s5 = inlined_call_operand.vmem [shape: bf16[32,32], index: 5, kind: input, shape index: {}]
  %s6 = inlined_call_operand.hbm [shape: f32[1,32], index: 6, kind: input, shape index: {}]
  %s7 = inlined_call_operand.vmem [shape: f32[2,8,32], index: 7, kind: output, shape index: {}, may-alias: {0,7}]
  %s8 = sld [smem:[#allocation0]]
  $region81: #{_lambda_.2} parent=0
    _
  %s10 = ssub.s32 1, %s8
  %s11 = scalar_select 0, %s10, %s8
  $region1: #{_lambda_.2} parent=0
    #allocation2 [shape = 'u8[512]{0}', space=vmem, size = 0x400, scoped, tag = 'input window, operand 1, single buffered']
    #allocation3 [shape = 's32[2]{0}', space=sflag, size = 0x8, scoped, tag = 'scoped memory for _lambda_.2']
    #allocation4 [shape = 'u8[512]{0}', space=vmem, size = 0x400, scoped, tag = 'input window, operand 2, single buffered']
    #allocation5 [shape = 's32[1]{0}', space=sflag, size = 0x4, scoped, tag = 'scoped memory for _lambda_.2']
    #allocation6 [shape = 'u8[8192]{0}', space=vmem, size = 0x2000, scoped, tag = 'input window, operand 3, single buffered']
    #allocation7 [shape = 'u8[512]{0}', space=vmem, size = 0x400, scoped, tag = 'input window, operand 4, single buffered']
    #allocation8 [shape = 's32[1]{0}', space=sflag, size = 0x4, scoped, tag = 'scoped memory for _lambda_.2']
    #allocation9 [shape = 'u8[512]{0}', space=vmem, size = 0x400, scoped, tag = 'input window, operand 6, single buffered']
    %12 = vsyncpa [#allocation3], 0
    %13 = vsyncpa [#allocation5], 0
    %14 = vsyncpa [#allocation8], 0
    loop: start=0, step=1, limit=4
    $region2: #{_lambda_.2} parent=1 // loop_pre_header
      _
    $region3: #{_lambda_.2} parent=1 // loop_header
      %s16 = sphi 0, %s20
      %p17 = scmp.ge.s32.totalorder %s16, 4
      %s26 = sphi 0, %s28
      %s29 = sphi 0, %s26
      %s30 = sphi 0, %s29
      %s46 = sphi 0, %s30
      %s50 = sphi 0, %s50
      %s52 = sphi 0, %s50
      %s53 = sphi 0, %s52
      %s67 = sphi 0, %s53
      %s71 = sphi 0, %s71
      %s73 = sphi 0, %s71
      %s74 = sphi 0, %s73
      %s88 = sphi 0, %s74
      %s92 = sphi 0, %s92
      %s94 = sphi 0, %s92
      %s95 = sphi 0, %s94
      %s109 = sphi 0, %s95
      %s113 = sphi 0, %s113
      %s115 = sphi 0, %s113
      %s116 = sphi 0, %s115
      %s130 = sphi 0, %s116
      %s134 = sphi 0, %s134
      %s136 = sphi 0, %s134
      %s137 = sphi 0, %s136
      %s151 = sphi 0, %s137
      %s155 = sphi 0, %s155
      %s157 = sphi 0, %s155
      %s158 = sphi 0, %s157
      %s172 = sphi 0, %s158
      %s178 = sphi 0, %s180
      %s181 = sphi 0, %s178
      %s182 = sphi 0, %s181
      %s198 = sphi 0, %s182
    $region4: #{_lambda_.2} parent=1 // loop_header_branch
      %19 = sbr.rel (%p17) target = $region8
    $region5: #{_lambda_.2} parent=1 // loop_body
      %s21 = ssub.s32 %s16, 1
      %s22 = ssub.s32 %s16, 2
      %s23 = sadd.s32 %s16, 1
      %s24 = ssub.s32 %s16, %s23
      %p25 = scmp.eq.s32.totalorder %s24, 0
      %s27 = sadd.s32 %s26, 1
      %s28 = scalar_select %p25, %s26, %s27
      %p31 = pneg %p25
      %p32 = scmp.eq.s32.totalorder %s16, 1
      %p33 = por %p31, %p32
      %p34 = scmp.ne.s32.totalorder %s26, %s29
      %p35 = scmp.eq.s32.totalorder %s16, 0
      %p36 = por %p34, %p35
      %p37 = scmp.ne.s32.totalorder %s26, %s29
      %p38 = scmp.eq.s32.totalorder %s21, 1
      %p39 = por %p37, %p38
      %p40 = scmp.ne.s32.totalorder %s29, %s30
      %p41 = scmp.eq.s32.totalorder %s21, 0
      %p42 = por %p40, %p41
      %p43 = scmp.ne.s32.totalorder %s29, %s30
      %p44 = scmp.eq.s32.totalorder %s22, 1
      %p45 = por %p43, %p44
      %p47 = scmp.ne.s32.totalorder %s30, %s46
      %p48 = scmp.eq.s32.totalorder %s22, 0
      %p49 = por %p47, %p48
      %s51 = sadd.s32 %s50, 1
      %p54 = scmp.eq.s32.totalorder %s16, 1
      %p55 = scmp.ne.s32.totalorder %s50, %s52
      %p56 = scmp.eq.s32.totalorder %s16, 0
      %p57 = por %p55, %p56
      %p58 = scmp.ne.s32.totalorder %s50, %s52
      %p59 = scmp.eq.s32.totalorder %s21, 1
      %p60 = por %p58, %p59
      %p61 = scmp.ne.s32.totalorder %s52, %s53
      %p62 = scmp.eq.s32.totalorder %s21, 0
      %p63 = por %p61, %p62
      %p64 = scmp.ne.s32.totalorder %s52, %s53
      %p65 = scmp.eq.s32.totalorder %s22, 1
      %p66 = por %p64, %p65
      %p68 = scmp.ne.s32.totalorder %s53, %s67
      %p69 = scmp.eq.s32.totalorder %s22, 0
      %p70 = por %p68, %p69
      %s72 = sadd.s32 %s71, 1
      %p75 = scmp.eq.s32.totalorder %s16, 1
      %p76 = scmp.ne.s32.totalorder %s71, %s73
      %p77 = scmp.eq.s32.totalorder %s16, 0
      %p78 = por %p76, %p77
      %p79 = scmp.ne.s32.totalorder %s71, %s73
      %p80 = scmp.eq.s32.totalorder %s21, 1
      %p81 = por %p79, %p80
      %p82 = scmp.ne.s32.totalorder %s73, %s74
      %p83 = scmp.eq.s32.totalorder %s21, 0
      %p84 = por %p82, %p83
      %p85 = scmp.ne.s32.totalorder %s73, %s74
      %p86 = scmp.eq.s32.totalorder %s22, 1
      %p87 = por %p85, %p86
      %p89 = scmp.ne.s32.totalorder %s74, %s88
      %p90 = scmp.eq.s32.totalorder %s22, 0
      %p91 = por %p89, %p90
      %s93 = sadd.s32 %s92, 1
      %p96 = scmp.eq.s32.totalorder %s16, 1
      %p97 = scmp.ne.s32.totalorder %s92, %s94
      %p98 = scmp.eq.s32.totalorder %s16, 0
      %p99 = por %p97, %p98
      %p100 = scmp.ne.s32.totalorder %s92, %s94
      %p101 = scmp.eq.s32.totalorder %s21, 1
      %p102 = por %p100, %p101
      %p103 = scmp.ne.s32.totalorder %s94, %s95
      %p104 = scmp.eq.s32.totalorder %s21, 0
      %p105 = por %p103, %p104
      %p106 = scmp.ne.s32.totalorder %s94, %s95
      %p107 = scmp.eq.s32.totalorder %s22, 1
      %p108 = por %p106, %p107
      %p110 = scmp.ne.s32.totalorder %s95, %s109
      %p111 = scmp.eq.s32.totalorder %s22, 0
      %p112 = por %p110, %p111
      %s114 = sadd.s32 %s113, 1
      %p117 = scmp.eq.s32.totalorder %s16, 1
      %p118 = scmp.ne.s32.totalorder %s113, %s115
      %p119 = scmp.eq.s32.totalorder %s16, 0
      %p120 = por %p118, %p119
      %p121 = scmp.ne.s32.totalorder %s113, %s115
      %p122 = scmp.eq.s32.totalorder %s21, 1
      %p123 = por %p121, %p122
      %p124 = scmp.ne.s32.totalorder %s115, %s116
      %p125 = scmp.eq.s32.totalorder %s21, 0
      %p126 = por %p124, %p125
      %p127 = scmp.ne.s32.totalorder %s115, %s116
      %p128 = scmp.eq.s32.totalorder %s22, 1
      %p129 = por %p127, %p128
      %p131 = scmp.ne.s32.totalorder %s116, %s130
      %p132 = scmp.eq.s32.totalorder %s22, 0
      %p133 = por %p131, %p132
      %s135 = sadd.s32 %s134, 1
      %p138 = scmp.eq.s32.totalorder %s16, 1
      %p139 = scmp.ne.s32.totalorder %s134, %s136
      %p140 = scmp.eq.s32.totalorder %s16, 0
      %p141 = por %p139, %p140
      %p142 = scmp.ne.s32.totalorder %s134, %s136
      %p143 = scmp.eq.s32.totalorder %s21, 1
      %p144 = por %p142, %p143
      %p145 = scmp.ne.s32.totalorder %s136, %s137
      %p146 = scmp.eq.s32.totalorder %s21, 0
      %p147 = por %p145, %p146
      %p148 = scmp.ne.s32.totalorder %s136, %s137
      %p149 = scmp.eq.s32.totalorder %s22, 1
      %p150 = por %p148, %p149
      %p152 = scmp.ne.s32.totalorder %s137, %s151
      %p153 = scmp.eq.s32.totalorder %s22, 0
      %p154 = por %p152, %p153
      %s156 = sadd.s32 %s155, 1
      %p159 = scmp.eq.s32.totalorder %s16, 1
      %p160 = scmp.ne.s32.totalorder %s155, %s157
      %p161 = scmp.eq.s32.totalorder %s16, 0
      %p162 = por %p160, %p161
      %p163 = scmp.ne.s32.totalorder %s155, %s157
      %p164 = scmp.eq.s32.totalorder %s21, 1
      %p165 = por %p163, %p164
      %p166 = scmp.ne.s32.totalorder %s157, %s158
      %p167 = scmp.eq.s32.totalorder %s21, 0
      %p168 = por %p166, %p167
      %p169 = scmp.ne.s32.totalorder %s157, %s158
      %p170 = scmp.eq.s32.totalorder %s22, 1
      %p171 = por %p169, %p170
      %p173 = scmp.ne.s32.totalorder %s158, %s172
      %p174 = scmp.eq.s32.totalorder %s22, 0
      %p175 = por %p173, %p174
      %s176 = ssub.s32 %s16, %s23
      %p177 = scmp.eq.s32.totalorder %s176, 0
      %s179 = sadd.s32 %s178, 1
      %s180 = scalar_select %p177, %s178, %s179
      %p183 = pneg %p177
      %p184 = scmp.eq.s32.totalorder %s16, 1
      %p185 = por %p183, %p184
      %p186 = scmp.ne.s32.totalorder %s178, %s181
      %p187 = scmp.eq.s32.totalorder %s16, 0
      %p188 = por %p186, %p187
      %p189 = scmp.ne.s32.totalorder %s178, %s181
      %p190 = scmp.eq.s32.totalorder %s21, 1
      %p191 = por %p189, %p190
      %p192 = scmp.ne.s32.totalorder %s181, %s182
      %p193 = scmp.eq.s32.totalorder %s21, 0
      %p194 = por %p192, %p193
      %p195 = scmp.ne.s32.totalorder %s181, %s182
      %p196 = scmp.eq.s32.totalorder %s22, 1
      %p197 = por %p195, %p196
      %p199 = scmp.ne.s32.totalorder %s182, %s198
      %p200 = scmp.eq.s32.totalorder %s22, 0
      %p201 = por %p199, %p200
      %p202 = scmp.le.s32.totalorder 1, %s16
      %p203 = scmp.lt.s32.totalorder %s16, 3
      %p204 = pnand %p202, %p203
      %p205 = pneg %p204
      // Predicated region
      $region9: #{_lambda_.2} parent=5 // pred_check
        _
      $region10: #{_lambda_.2} parent=5 // pred_check_branch
        %207 = sbr.rel (%p204) target = $region12
      $region11: #{_lambda_.2} parent=5 // pred_region
        %s208 = ssub.s32 %s16, 1
        // Predicated region
        $region13: #{_lambda_.2} parent=11 // pred_check
          %p209 = pneg %p63
        $region14: #{_lambda_.2} parent=11 // pred_check_branch
          %211 = sbr.rel (%p209) target = $region16
        $region15: #{_lambda_.2} parent=11 // pred_region
          %213 = vsyncadd [#allocation3], 0
          %s215 = sshll.u32 %s1, 4
          %s216 = int_to_ptr.hbm [resolvable:$true] %s215
          %s217 = sshll.u32 [#allocation2], 4
          %s218 = int_to_ptr.vmem [resolvable:$true] %s217
          %220 = dma.hbm_to_vmem [thread:$0]  %s216, 16, %s218, [#allocation3]
        $region16: #{_lambda_.2} parent=11 // pred_fallthru
          _
        // Predicated region
        $region17: #{_lambda_.2} parent=11 // pred_check
          %p221 = pneg %p84
        $region18: #{_lambda_.2} parent=11 // pred_check_branch
          %223 = sbr.rel (%p221) target = $region20
        $region19: #{_lambda_.2} parent=11 // pred_region
          %225 = vsyncadd [#allocation5], 0
          %s227 = sshll.u32 %s2, 4
          %s228 = int_to_ptr.hbm [resolvable:$true] %s227
          %s229 = sshll.u32 [#allocation4], 4
          %s230 = int_to_ptr.vmem [resolvable:$true] %s229
          %232 = dma.hbm_to_vmem [thread:$0]  %s228, 16, %s230, [#allocation5]
        $region20: #{_lambda_.2} parent=11 // pred_fallthru
          _
        // Predicated region
        $region21: #{_lambda_.2} parent=11 // pred_check
          %p233 = pneg %p105
        $region22: #{_lambda_.2} parent=11 // pred_check_branch
          %235 = sbr.rel (%p233) target = $region24
        $region23: #{_lambda_.2} parent=11 // pred_region
          %237 = vsyncadd [#allocation5], 0
          %s238 = sshll.u32 %s3, 4
          %s239 = int_to_ptr.hbm [resolvable:$true] %s238
          %s240 = sshll.u32 [#allocation6], 4
          %s241 = int_to_ptr.vmem [resolvable:$true] %s240
          %246 = dma.hbm_to_vmem [thread:$0]  %s239, 256, %s241, [#allocation5], 64, 64, 4
        $region24: #{_lambda_.2} parent=11 // pred_fallthru
          _
        // Predicated region
        $region25: #{_lambda_.2} parent=11 // pred_check
          %p247 = pneg %p126
        $region26: #{_lambda_.2} parent=11 // pred_check_branch
          %249 = sbr.rel (%p247) target = $region28
        $region27: #{_lambda_.2} parent=11 // pred_region
          %251 = vsyncadd [#allocation8], 0
          %s253 = sshll.u32 %s4, 4
          %s254 = int_to_ptr.hbm [resolvable:$true] %s253
          %s255 = sshll.u32 [#allocation7], 4
          %s256 = int_to_ptr.vmem [resolvable:$true] %s255
          %258 = dma.hbm_to_vmem [thread:$0]  %s254, 16, %s256, [#allocation8]
        $region28: #{_lambda_.2} parent=11 // pred_fallthru
          _
        // Predicated region
        $region29: #{_lambda_.2} parent=11 // pred_check
          %p259 = pneg %p147
        $region30: #{_lambda_.2} parent=11 // pred_check_branch
          %261 = sbr.rel (%p259) target = $region32
        $region31: #{_lambda_.2} parent=11 // pred_region
          _
        $region32: #{_lambda_.2} parent=11 // pred_fallthru
          _
        // Predicated region
        $region33: #{_lambda_.2} parent=11 // pred_check
          %p262 = pneg %p168
        $region34: #{_lambda_.2} parent=11 // pred_check_branch
          %264 = sbr.rel (%p262) target = $region36
        $region35: #{_lambda_.2} parent=11 // pred_region
          %266 = vsyncadd [#allocation8], 0
          %s268 = sshll.u32 %s6, 4
          %s269 = int_to_ptr.hbm [resolvable:$true] %s268
          %s270 = sshll.u32 [#allocation9], 4
          %s271 = int_to_ptr.vmem [resolvable:$true] %s270
          %273 = dma.hbm_to_vmem [thread:$0]  %s269, 16, %s271, [#allocation8]
        $region36: #{_lambda_.2} parent=11 // pred_fallthru
          _
      $region12: #{_lambda_.2} parent=5 // pred_fallthru
        _
      %p274 = scmp.lt.s32.totalorder %s16, 2
      // Predicated region
      $region37: #{_lambda_.2} parent=5 // pred_check
        %p275 = pneg %p274
      $region38: #{_lambda_.2} parent=5 // pred_check_branch
        %277 = sbr.rel (%p275) target = $region40
      $region39: #{_lambda_.2} parent=5 // pred_region
        // Predicated region
        $region41: #{_lambda_.2} parent=39 // pred_check
          %p278 = pneg %p36
        $region42: #{_lambda_.2} parent=39 // pred_check_branch
          %280 = sbr.rel (%p278) target = $region44
        $region43: #{_lambda_.2} parent=39 // pred_region
          %p281 = scmp.lt.s32.totalorder %s16, 1
          %s282 = scalar_select %p281, %s16, 1
          %s283 = smul.addr %s282, 8
          %s284 = scalar_lea.vmem %s0, %s283
        $region44: #{_lambda_.2} parent=39 // pred_fallthru
          _
      $region40: #{_lambda_.2} parent=5 // pred_fallthru
        _
      %p285 = scmp.le.s32.totalorder 1, %s16
      %p286 = scmp.lt.s32.totalorder %s16, 3
      %p287 = pnand %p285, %p286
      %p288 = pneg %p287
      // Predicated region
      $region45: #{_lambda_.2} parent=5 // pred_check
        _
      $region46: #{_lambda_.2} parent=5 // pred_check_branch
        %290 = sbr.rel (%p287) target = $region48
      $region47: #{_lambda_.2} parent=5 // pred_region
        %s291 = ssub.s32 %s16, 1
        // Predicated region
        $region49: #{_lambda_.2} parent=47 // pred_check
          %p292 = pneg %p63
        $region50: #{_lambda_.2} parent=47 // pred_check_branch
          %294 = sbr.rel (%p292) target = $region52
        $region51: #{_lambda_.2} parent=47 // pred_region
          %296 = dma.done [#allocation3], 16
        $region52: #{_lambda_.2} parent=47 // pred_fallthru
          _
        // Predicated region
        $region53: #{_lambda_.2} parent=47 // pred_check
          %p297 = pneg %p84
        $region54: #{_lambda_.2} parent=47 // pred_check_branch
          %299 = sbr.rel (%p297) target = $region56
        $region55: #{_lambda_.2} parent=47 // pred_region
          %301 = dma.done [#allocation5], 16
        $region56: #{_lambda_.2} parent=47 // pred_fallthru
          _
        // Predicated region
        $region57: #{_lambda_.2} parent=47 // pred_check
          %p302 = pneg %p105
        $region58: #{_lambda_.2} parent=47 // pred_check_branch
          %304 = sbr.rel (%p302) target = $region60
        $region59: #{_lambda_.2} parent=47 // pred_region
          %306 = dma.done [#allocation5], 256
        $region60: #{_lambda_.2} parent=47 // pred_fallthru
          _
        // Predicated region
        $region61: #{_lambda_.2} parent=47 // pred_check
          %p307 = pneg %p126
        $region62: #{_lambda_.2} parent=47 // pred_check_branch
          %309 = sbr.rel (%p307) target = $region64
        $region63: #{_lambda_.2} parent=47 // pred_region
          %311 = dma.done [#allocation8], 16
        $region64: #{_lambda_.2} parent=47 // pred_fallthru
          _
        // Predicated region
        $region65: #{_lambda_.2} parent=47 // pred_check
          %p312 = pneg %p168
        $region66: #{_lambda_.2} parent=47 // pred_check_branch
          %314 = sbr.rel (%p312) target = $region68
        $region67: #{_lambda_.2} parent=47 // pred_region
          %316 = dma.done [#allocation8], 16
        $region68: #{_lambda_.2} parent=47 // pred_fallthru
          _
        %p317 = scmp.lt.s32.totalorder %s21, 1
        %s318 = scalar_select %p317, %s21, 1
        %s319 = smul.addr %s318, 8
        %s320 = scalar_lea.vmem %s0, %s319
        %p321 = pneg %p42
        %p322 = pneg %p39
        %p323 = pneg %p63
        %p324 = pneg %p60
        %p325 = pneg %p84
        %p326 = pneg %p81
        %p327 = pneg %p105
        %p328 = pneg %p102
        %p329 = pneg %p126
        %p330 = pneg %p123
        %p331 = pneg %p147
        %p332 = pneg %p144
        %p333 = pneg %p168
        %p334 = pneg %p165
        %p335 = pneg %p194
        %p336 = pneg %p191
        %p337 = scmp.lt.s32.totalorder %s21, 1
        %s338 = scalar_select %p337, %s21, 1
        %s339 = smul.addr %s338, 8
        %s340 = scalar_lea.vmem %s7, %s339
        %p341 = scmp.lt.s32.totalorder %s21, 1
        %s342 = scalar_select %p341, %s21, 1
        %s343 = smul.addr %s342, 8
        %s344 = scalar_lea.vmem %s0, %s343
        %p345 = scmp.lt.s32.totalorder %s21, 1
        %s346 = scalar_select %p345, %s21, 1
        %s347 = smul.addr %s346, 8
        %s348 = scalar_lea.vmem %s7, %s347
        %v350 = vld [vmem:[%s344] sm:$0xff]
        %vm351 = vcmask 261120
        %v352 = vsel %vm351, %v350, 0.0
        %353 = vadd.xlane.f32.xlu0 %v352
        %v354 = vpop.xlane.xlu0 %353
        %v355 = vrcp.pop 32.0
        %v356 = vmul.f32 32.0, %v355
        %v357 = vsub.f32 1.0, %v356
        %v358 = vmul.f32 %v355, %v357
        %v359 = vadd.f32 %v355, %v358
        %vm360 = vweird.f32 %v355
        %v361 = vsel %vm360, %v355, %v359
        %v362 = vmul.f32 %v354, %v361
        %v363 = vsub.f32 %v350, %v362
        %v364 = vmul.f32 %v363, %v363
        %v365 = vsel %vm351, %v364, 0.0
        %366 = vadd.xlane.f32.xlu0 %v365
        %v367 = vpop.xlane.xlu0 %366
        %v368 = vmul.f32 %v367, %v361
        %v369 = vadd.f32 %v368, 1e-05
        %v370 = vrsqrt.pop %v369
        %v371 = vmul.f32 %v370, %v369
        %v372 = vmul.f32 %v371, %v370
        %v373 = vmul.f32 0.5, %v372
        %v374 = vsub.f32 1.5, %v373
        %v375 = vmul.f32 %v370, %v374
        %vm376 = vweird.f32 %v369
        %vm377 = vweird.f32 %v370
        %vm378 = vmor %vm376, %vm377
        %v379 = vsel %vm378, %v370, %v375
        %v380 = vmul.f32 %v363, %v379
        %v381 = vld [vmem:[#allocation2] sm:$0x1]
        %v383 = vperm.slane %v381, 0
        %v385 = vmul.f32 %v380, %v383
        %v386 = vld [vmem:[#allocation4] sm:$0x1]
        %v388 = vperm.slane %v386, 0
        %v390 = vadd.f32 %v385, %v388
        %v391 = vpack.c.bf16 %v390, %v390
        %v392 = vld [vmem:[#allocation6] sm:$0xf]
        %v393 = vld [vmem:[#allocation6 + $0x4] sm:$0xf]
        %v394 = vld [vmem:[#allocation6 + $0x8] sm:$0xf]
        %v395 = vld [vmem:[#allocation6 + $0xc] sm:$0xf]
        %v396 = vld [vmem:[#allocation7] sm:$0x1]
        %v398 = vperm.slane %v396, 0
        %v404 = vunpack.c.l.b16 %v392
        %v405 = vunpack.c.l.b16 %v393
        %v406 = vunpack.c.l.b16 %v394
        %v407 = vunpack.c.l.b16 %v395
        %v408 = vpack.c.b16 %v405, %v404
        %v409 = vpack.c.b16 %v407, %v406
        %v413 = vsel %vm351, %v391, 0
        %415 = vmatpush.bf16.msra.mxu0 0
        %416 = vmatpush.bf16.msra.mxu0 0
        %417 = vmatpush.bf16.msra.mxu0 0
        %418 = vmatpush.bf16.msra.mxu0 0
        %419 = vmatpush.bf16.msra.mxu0 0
        %420 = vmatpush.bf16.msra.mxu0 0
        %421 = vmatpush.bf16.msra.mxu0 %v409
        %422 = vmatpush.bf16.msra.mxu0 %v408
        %423 = vmatmul.bf16.gmra.mxu0 %v413
        %v424 = vpop.f32.mrf.mxu0
        %v425 = vadd.f32 %v398, %v424
        %v426 = vpop.f32.mrf.mxu0
        %427 = vdwg.mxu0
        %v428 = vmul.f32 %v425, 0.35355338
        %v429 = vpack.c.bf16 %v428, %v428
        %v430 = vpack.c.bf16 %v425, %v425
        %432 = vrot.lane.b32.xlu0 %v430, 96
        %v433 = vpop.permute.xlu0 %432
        %vm434 = vcmask 64512
        %v436 = vsel %vm434, %v429, 0
        %v439 = vsel %vm434, %v433, 0
        %441 = vmatpush.bf16.xpose.msra.mxu0 0
        %442 = vmatpush.bf16.xpose.msra.mxu0 0
        %443 = vmatpush.bf16.xpose.msra.mxu0 0
        %444 = vmatpush.bf16.xpose.msra.mxu0 0
        %445 = vmatpush.bf16.xpose.msra.mxu0 0
        %446 = vmatpush.bf16.xpose.msra.mxu0 0
        %447 = vmatpush.bf16.xpose.msra.mxu0 0
        %448 = vmatpush.bf16.xpose.msra.mxu0 %v439
        %449 = vmatmul.bf16.gmra.mxu0 %v436
        %v450 = vpop.f32.mrf.mxu0
        %v451 = vadd.f32 0.0, %v450
        %v452 = vpop.f32.mrf.mxu0
        %453 = vdwg.mxu0
        %v454 = vsel %vm434, %v451, -inf
        %455 = vmax.xlane.f32.xlu0 %v454
        %v456 = vpop.xlane.xlu0 %455
        %v457 = vsub.f32 %v451, %v456
        %v458 = vmul.f32 %v457, 1.442695
        %v459 = vpow.pop %v458
        %v460 = vsel %vm434, %v459, 0.0
        %461 = vadd.xlane.f32.xlu0 %v460
        %v462 = vpop.xlane.xlu0 %461
        %v463 = vrcp.pop %v462
        %v464 = vmul.f32 %v459, %v463
        %v465 = vpack.c.bf16 %v464, %v464
        %466 = vrot.lane.b32.xlu0 %v430, 64
        %v467 = vpop.permute.xlu0 %466
        %v469 = vsel %vm434, %v465, 0
        %vm471 = vcmask 1043456
        %v473 = vsel %vm471, %v467, 0
        %475 = vmatpush.bf16.msra.mxu0 0
        %476 = vmatpush.bf16.msra.mxu0 0
        %477 = vmatpush.bf16.msra.mxu0 0
        %478 = vmatpush.bf16.msra.mxu0 0
        %479 = vmatpush.bf16.msra.mxu0 0
        %480 = vmatpush.bf16.msra.mxu0 0
        %481 = vmatpush.bf16.msra.mxu0 0
        %482 = vmatpush.bf16.msra.mxu0 %v473
        %483 = vmatmul.bf16.gmra.mxu0 %v469
        %v484 = vpop.f32.mrf.mxu0
        %v485 = vadd.f32 0.0, %v484
        %v486 = vpop.f32.mrf.mxu0
        %487 = vdwg.mxu0
        %489 = vrot.lane.b32.xlu0 %v429, 120
        %v490 = vpop.permute.xlu0 %489
        %491 = vrot.lane.b32.xlu0 %v430, 88
        %v492 = vpop.permute.xlu0 %491
        %v494 = vsel %vm434, %v490, 0
        %v497 = vsel %vm434, %v492, 0
        %499 = vmatpush.bf16.xpose.msra.mxu0 0
        %500 = vmatpush.bf16.xpose.msra.mxu0 0
        %501 = vmatpush.bf16.xpose.msra.mxu0 0
        %502 = vmatpush.bf16.xpose.msra.mxu0 0
        %503 = vmatpush.bf16.xpose.msra.mxu0 0
        %504 = vmatpush.bf16.xpose.msra.mxu0 0
        %505 = vmatpush.bf16.xpose.msra.mxu0 0
        %506 = vmatpush.bf16.xpose.msra.mxu0 %v497
        %507 = vmatmul.bf16.gmra.mxu0 %v494
        %v508 = vpop.f32.mrf.mxu0
        %v509 = vadd.f32 0.0, %v508
        %v510 = vpop.f32.mrf.mxu0
        %511 = vdwg.mxu0
        %v512 = vsel %vm434, %v509, -inf
        %513 = vmax.xlane.f32.xlu0 %v512
        %v514 = vpop.xlane.xlu0 %513
        %v515 = vsub.f32 %v509, %v514
        %v516 = vmul.f32 %v515, 1.442695
        %v517 = vpow.pop %v516
        %v518 = vsel %vm434, %v517, 0.0
        %519 = vadd.xlane.f32.xlu0 %v518
        %v520 = vpop.xlane.xlu0 %519
        %v521 = vrcp.pop %v520
        %v522 = vmul.f32 %v517, %v521
        %v523 = vpack.c.bf16 %v522, %v522
        %524 = vrot.lane.b32.xlu0 %v430, 56
        %v525 = vpop.permute.xlu0 %524
        %v527 = vsel %vm434, %v523, 0
        %v530 = vsel %vm471, %v525, 0
        %532 = vmatpush.bf16.msra.mxu0 0
        %533 = vmatpush.bf16.msra.mxu0 0
        %534 = vmatpush.bf16.msra.mxu0 0
        %535 = vmatpush.bf16.msra.mxu0 0
        %536 = vmatpush.bf16.msra.mxu0 0
        %537 = vmatpush.bf16.msra.mxu0 0
        %538 = vmatpush.bf16.msra.mxu0 0
        %539 = vmatpush.bf16.msra.mxu0 %v530
        %540 = vmatmul.bf16.gmra.mxu0 %v527
        %v541 = vpop.f32.mrf.mxu0
        %v542 = vadd.f32 0.0, %v541
        %v543 = vpop.f32.mrf.mxu0
        %544 = vdwg.mxu0
        %545 = vrot.lane.b32.xlu0 %v429, 112
        %v546 = vpop.permute.xlu0 %545
        %547 = vrot.lane.b32.xlu0 %v430, 80
        %v548 = vpop.permute.xlu0 %547
        %v550 = vsel %vm434, %v546, 0
        %v553 = vsel %vm434, %v548, 0
        %555 = vmatpush.bf16.xpose.msra.mxu0 0
        %556 = vmatpush.bf16.xpose.msra.mxu0 0
        %557 = vmatpush.bf16.xpose.msra.mxu0 0
        %558 = vmatpush.bf16.xpose.msra.mxu0 0
        %559 = vmatpush.bf16.xpose.msra.mxu0 0
        %560 = vmatpush.bf16.xpose.msra.mxu0 0
        %561 = vmatpush.bf16.xpose.msra.mxu0 0
        %562 = vmatpush.bf16.xpose.msra.mxu0 %v553
        %563 = vmatmul.bf16.gmra.mxu0 %v550
        %v564 = vpop.f32.mrf.mxu0
        %v565 = vadd.f32 0.0, %v564
        %v566 = vpop.f32.mrf.mxu0
        %567 = vdwg.mxu0
        %v568 = vsel %vm434, %v565, -inf
        %569 = vmax.xlane.f32.xlu0 %v568
        %v570 = vpop.xlane.xlu0 %569
        %v571 = vsub.f32 %v565, %v570
        %v572 = vmul.f32 %v571, 1.442695
        %v573 = vpow.pop %v572
        %v574 = vsel %vm434, %v573, 0.0
        %575 = vadd.xlane.f32.xlu0 %v574
        %v576 = vpop.xlane.xlu0 %575
        %v577 = vrcp.pop %v576
        %v578 = vmul.f32 %v573, %v577
        %v579 = vpack.c.bf16 %v578, %v578
        %580 = vrot.lane.b32.xlu0 %v430, 48
        %v581 = vpop.permute.xlu0 %580
        %v583 = vsel %vm434, %v579, 0
        %v586 = vsel %vm471, %v581, 0
        %588 = vmatpush.bf16.msra.mxu0 0
        %589 = vmatpush.bf16.msra.mxu0 0
        %590 = vmatpush.bf16.msra.mxu0 0
        %591 = vmatpush.bf16.msra.mxu0 0
        %592 = vmatpush.bf16.msra.mxu0 0
        %593 = vmatpush.bf16.msra.mxu0 0
        %594 = vmatpush.bf16.msra.mxu0 0
        %595 = vmatpush.bf16.msra.mxu0 %v586
        %596 = vmatmul.bf16.gmra.mxu0 %v583
        %v597 = vpop.f32.mrf.mxu0
        %v598 = vadd.f32 0.0, %v597
        %v599 = vpop.f32.mrf.mxu0
        %600 = vdwg.mxu0
        %601 = vrot.lane.b32.xlu0 %v429, 104
        %v602 = vpop.permute.xlu0 %601
        %603 = vrot.lane.b32.xlu0 %v430, 72
        %v604 = vpop.permute.xlu0 %603
        %v606 = vsel %vm434, %v602, 0
        %v609 = vsel %vm434, %v604, 0
        %611 = vmatpush.bf16.xpose.msra.mxu0 0
        %612 = vmatpush.bf16.xpose.msra.mxu0 0
        %613 = vmatpush.bf16.xpose.msra.mxu0 0
        %614 = vmatpush.bf16.xpose.msra.mxu0 0
        %615 = vmatpush.bf16.xpose.msra.mxu0 0
        %616 = vmatpush.bf16.xpose.msra.mxu0 0
        %617 = vmatpush.bf16.xpose.msra.mxu0 0
        %618 = vmatpush.bf16.xpose.msra.mxu0 %v609
        %619 = vmatmul.bf16.gmra.mxu0 %v606
        %v620 = vpop.f32.mrf.mxu0
        %v621 = vadd.f32 0.0, %v620
        %v622 = vpop.f32.mrf.mxu0
        %623 = vdwg.mxu0
        %v624 = vsel %vm434, %v621, -inf
        %625 = vmax.xlane.f32.xlu0 %v624
        %v626 = vpop.xlane.xlu0 %625
        %v627 = vsub.f32 %v621, %v626
        %v628 = vmul.f32 %v627, 1.442695
        %v629 = vpow.pop %v628
        %v630 = vsel %vm434, %v629, 0.0
        %631 = vadd.xlane.f32.xlu0 %v630
        %v632 = vpop.xlane.xlu0 %631
        %v633 = vrcp.pop %v632
        %v634 = vmul.f32 %v629, %v633
        %v635 = vpack.c.bf16 %v634, %v634
        %636 = vrot.lane.b32.xlu0 %v430, 40
        %v637 = vpop.permute.xlu0 %636
        %v639 = vsel %vm434, %v635, 0
        %v642 = vsel %vm471, %v637, 0
        %644 = vmatpush.bf16.msra.mxu0 0
        %645 = vmatpush.bf16.msra.mxu0 0
        %646 = vmatpush.bf16.msra.mxu0 0
        %647 = vmatpush.bf16.msra.mxu0 0
        %648 = vmatpush.bf16.msra.mxu0 0
        %649 = vmatpush.bf16.msra.mxu0 0
        %650 = vmatpush.bf16.msra.mxu0 0
        %651 = vmatpush.bf16.msra.mxu0 %v642
        %652 = vmatmul.bf16.gmra.mxu0 %v639
        %v653 = vpop.f32.mrf.mxu0
        %v654 = vadd.f32 0.0, %v653
        %v655 = vpop.f32.mrf.mxu0
        %656 = vdwg.mxu0
        %658 = vrot.lane.b32.xlu0 %v542, 8
        %v659 = vpop.permute.xlu0 %658
        %662 = vrot.lane.b32.xlu0 %v598, 16
        %v663 = vpop.permute.xlu0 %662
        %666 = vrot.lane.b32.xlu0 %v654, 24
        %v667 = vpop.permute.xlu0 %666
        %v669 = vsel %vm434, %v485, %v659
        %vm670 = vcmask 130048
        %v671 = vsel %vm670, %v669, %v663
        %vm672 = vcmask 195584
        %v673 = vsel %vm672, %v671, %v667
        %v674 = vpack.c.bf16 %v673, %v673
        %v675 = vld [vmem:[%s5] sm:$0xf]
        %v676 = vld [vmem:[%s5 + $0x4] sm:$0xf]
        %v677 = vld [vmem:[%s5 + $0x8] sm:$0xf]
        %v678 = vld [vmem:[%s5 + $0xc] sm:$0xf]
        %v679 = vld [vmem:[#allocation9] sm:$0x1]
        %v681 = vperm.slane %v679, 0
        %v687 = vunpack.c.l.b16 %v675
        %v688 = vunpack.c.l.b16 %v676
        %v689 = vunpack.c.l.b16 %v677
        %v690 = vunpack.c.l.b16 %v678
        %v691 = vpack.c.b16 %v688, %v687
        %v692 = vpack.c.b16 %v690, %v689
        %v696 = vsel %vm351, %v674, 0
        %698 = vmatpush.bf16.msra.mxu0 0
        %699 = vmatpush.bf16.msra.mxu0 0
        %700 = vmatpush.bf16.msra.mxu0 0
        %701 = vmatpush.bf16.msra.mxu0 0
        %702 = vmatpush.bf16.msra.mxu0 0
        %703 = vmatpush.bf16.msra.mxu0 0
        %704 = vmatpush.bf16.msra.mxu0 %v692
        %705 = vmatpush.bf16.msra.mxu0 %v691
        %706 = vmatmul.bf16.gmra.mxu0 %v696
        %v707 = vpop.f32.mrf.mxu0
        %v708 = vadd.f32 %v681, %v707
        %v709 = vpop.f32.mrf.mxu0
        %710 = vdwg.mxu0
        %v711 = vadd.f32 %v350, %v708
        %712 = vst.msk [vmem:[%s348] sm:$0xff] %vm351, %v711
        %p713 = scmp.lt.s32.totalorder %s21, 1
        %s714 = scalar_select %p713, %s21, 1
        %s715 = smul.addr %s714, 8
        %s716 = scalar_lea.vmem %s7, %s715
        // Predicated region
        $region69: #{_lambda_.2} parent=47 // pred_check
          %p717 = pneg %p191
        $region70: #{_lambda_.2} parent=47 // pred_check_branch
          %719 = sbr.rel (%p717) target = $region72
        $region71: #{_lambda_.2} parent=47 // pred_region
          _
        $region72: #{_lambda_.2} parent=47 // pred_fallthru
          _
      $region48: #{_lambda_.2} parent=5 // pred_fallthru
        _
      %p720 = scmp.le.s32.totalorder 2, %s16
      // Predicated region
      $region73: #{_lambda_.2} parent=5 // pred_check
        %p721 = pneg %p720
      $region74: #{_lambda_.2} parent=5 // pred_check_branch
        %723 = sbr.rel (%p721) target = $region76
      $region75: #{_lambda_.2} parent=5 // pred_region
        %s724 = ssub.s32 %s16, 2
        // Predicated region
        $region77: #{_lambda_.2} parent=75 // pred_check
          %p725 = pneg %p197
        $region78: #{_lambda_.2} parent=75 // pred_check_branch
          %727 = sbr.rel (%p725) target = $region80
        $region79: #{_lambda_.2} parent=75 // pred_region
          %p728 = scmp.lt.s32.totalorder %s22, 1
          %s729 = scalar_select %p728, %s22, 1
          %s730 = smul.addr %s729, 8
          %s731 = scalar_lea.vmem %s7, %s730
        $region80: #{_lambda_.2} parent=75 // pred_fallthru
          _
      $region76: #{_lambda_.2} parent=5 // pred_fallthru
        _
    $region6: #{_lambda_.2} parent=1 // loop_footer
      %s20 = sadd.s32 1, %s16
    $region7: #{_lambda_.2} parent=1 // loop_footer_branch
      %15 = sbr.rel target = $region3
    $region8: #{_lambda_.2} parent=1 // loop_exit
      _
    %732 = vsyncpa [#allocation3], 1
    %s733 = scalar_lea.sflag [#allocation3], 1
    %734 = vsyncpa %s733, 1
    %735 = vsyncpa [#allocation5], 1
    %736 = vsyncpa [#allocation8], 1

</llo_original>
